<compile_context>
chip_gen: v7x
topology: tpu7x:2x2x1
jax: 0.10.0
libtpu: 0.0.40
codegen_flags: <defaults>
</compile_context>

<pallas_src>
import math

import jax
import jax.numpy as jnp
from jax.experimental import pallas as pl
from jax.experimental.pallas import tpu as pltpu

DIM = 2
HID = 256
K1_PAD = 16   # layer-1 contraction dim zero-padded to the bf16 sublane tile (MXU path)


def _leaky_relu(x, slope=0.01):
    # For 0 < slope < 1, max(x, slope*x) == LeakyReLU(x): mul+max (2 VALU ops) vs cmp+sel+mul.
    return jnp.maximum(x, slope * x)


def _device_flags():
    """Pick the precision / tiling strategy from the attached TPU generation."""
    try:
        kind = jax.devices()[0].device_kind.lower()
    except Exception:
        kind = ""
    is_v5 = "v5" in kind
    is_v7 = "v7" in kind
    bf16_epilogue = not is_v5            # v6e/v7x: packed-bf16 VPU path + layer-1 on MXU
    two_cores = is_v7                    # v7x: 2 TensorCores/chip share the (parallel) grid
    vmem_limit = (48 if is_v7 else 64) * 1024 * 1024
    return bf16_epilogue, two_cores, vmem_limit


def _choose_tiling(n, two_cores, cap=4096):
    """128-aligned batch tile; even tile count on v7x so both cores stay busy."""
    n128 = ((n + 127) // 128) * 128
    min_tiles = 2 if two_cores else 1
    n_tiles = min_tiles * max(1, math.ceil(n128 / (min_tiles * cap)))
    tm = ((math.ceil(n128 / n_tiles) + 127) // 128) * 128
    tm = max(tm, 128)
    return tm, n_tiles, n_tiles * tm


def _make_kernel(bf16_epilogue):
    def kernel(x_ref,
               w1_ref, b1_ref,
               w2_ref, b2_ref,
               w3_ref, b3_ref,
               w4_ref, b4_ref,
               o_ref):
        x = x_ref[...]                                     # (K, tm)   batch on lanes

        if bf16_epilogue:
            # v6e/v7x: layer 1 on the MXU (zero-padded K), bf16 bias+activation epilogues.
            h = jnp.dot(w1_ref[...], x,
                        preferred_element_type=jnp.float32).astype(jnp.bfloat16)
            h = _leaky_relu(h + b1_ref[...])               # bf16, (256, tm)
            # nn.Dropout(0.2): identity at inference time.
            h = jnp.dot(w2_ref[...], h,
                        preferred_element_type=jnp.float32).astype(jnp.bfloat16)
            h = _leaky_relu(h + b2_ref[...])
            h = jnp.dot(w3_ref[...], h,
                        preferred_element_type=jnp.float32).astype(jnp.bfloat16)
            h = _leaky_relu(h + b3_ref[...])
        else:
            # v5e: no bf16 VPU -- layer 1 as two f32 broadcast FMAs, f32 epilogues.
            w1 = w1_ref[...]                               # (256, 2) f32
            h = _leaky_relu(w1[:, 0:1] * x[0:1, :] + w1[:, 1:2] * x[1:2, :] + b1_ref[...])
            h = _leaky_relu(jnp.dot(w2_ref[...], h.astype(jnp.bfloat16),
                                    preferred_element_type=jnp.float32) + b2_ref[...])
            h = _leaky_relu(jnp.dot(w3_ref[...], h.astype(jnp.bfloat16),
                                    preferred_element_type=jnp.float32) + b3_ref[...])
            h = h.astype(jnp.bfloat16)

        # Layer 4 + sigmoid: (1, 256) @ (256, tm) -> lane-dense (1, tm) output block.
        logits = jnp.dot(w4_ref[...], h,
                         preferred_element_type=jnp.float32) + b4_ref[...]
        # Sigmoid via EUP: exp + approximate reciprocal (frees VALU slots on the epilogue).
        o_ref[...] = pl.reciprocal(1.0 + jnp.exp(-logits), approx=True)

    return kernel


def prepare_params(params, bf16_epilogue):
    """Cast PyTorch-layout f32 params ((out,in) weights, (out,1) biases) to kernel dtypes."""
    w1, b1, w2, b2, w3, b3, w4, b4 = params
    if bf16_epilogue:
        w1p = jnp.zeros((HID, K1_PAD), jnp.bfloat16).at[:, :DIM].set(w1.astype(jnp.bfloat16))
        b1p, b2p, b3p = (b.astype(jnp.bfloat16) for b in (b1, b2, b3))
    else:
        w1p = w1.astype(jnp.float32)
        b1p, b2p, b3p = (b.astype(jnp.float32) for b in (b1, b2, b3))
    return (w1p, b1p,
            w2.astype(jnp.bfloat16), b2p,
            w3.astype(jnp.bfloat16), b3p,
            w4.astype(jnp.bfloat16), b4.astype(jnp.float32))


def escape_model_2d(x, prepared, *, bf16_epilogue, two_cores=False,
                    vmem_limit=64 * 1024 * 1024, tm=None):
    """x: (N, 2) float32 points. Returns (N, 1) float32 escape probabilities."""
    n, d = x.shape
    assert d == DIM
    if tm is None:
        tm, n_tiles, n_pad = _choose_tiling(n, two_cores)
    else:
        assert tm % 128 == 0
        n_tiles = math.ceil(n / tm)
        n_pad = n_tiles * tm

    w1, b1, w2, b2, w3, b3, w4, b4 = prepared
    xk = w1.shape[1]                                   # 16 (MXU path) or 2 (VPU path)
    x_dtype = jnp.bfloat16 if bf16_epilogue else jnp.float32

    # Boundary layout plumbing: feature-major, zero-padded input (padded rows/cols are zero).
    x_t = jnp.zeros((xk, n_pad), x_dtype).at[:DIM, :n].set(x.astype(x_dtype).T)

    rep = lambda shape: pl.BlockSpec(shape, lambda i: (0, 0))   # VMEM-resident operand

    out = pl.pallas_call(
        _make_kernel(bf16_epilogue),
        out_shape=jax.ShapeDtypeStruct((1, n_pad), jnp.float32),
        grid_spec=pltpu.PrefetchScalarGridSpec(
            num_scalar_prefetch=0,
            grid=(n_tiles,),
            in_specs=[
                pl.BlockSpec((xk, tm), lambda i: (0, i)),   # x tile (batch on lanes)
                rep((HID, xk)), rep((HID, 1)),              # layer 1
                rep((HID, HID)), rep((HID, 1)),             # layer 2
                rep((HID, HID)), rep((HID, 1)),             # layer 3
                rep((1, HID)), rep((1, 1)),                 # layer 4
            ],
            out_specs=pl.BlockSpec((1, tm), lambda i: (0, i)),  # lane-dense output block
        ),
        compiler_params=pltpu.CompilerParams(
            dimension_semantics=("parallel",),
            vmem_limit_bytes=vmem_limit,
        ),
    )(x_t, w1, b1, w2, b2, w3, b3, w4, b4)

    return out[:, :n].T                                    # back to (N, 1)


def init_params(key):
    """PyTorch-Linear-style init U(-1/sqrt(fan_in), 1/sqrt(fan_in)), W as (out,in), b as (out,1)."""
    ks = jax.random.split(key, 8)

    def linear(kw, kb, fan_in, fan_out):
        bound = fan_in ** -0.5
        w = jax.random.uniform(kw, (fan_out, fan_in), jnp.float32, -bound, bound)
        b = jax.random.uniform(kb, (fan_out, 1), jnp.float32, -bound, bound)
        return w, b

    w1, b1 = linear(ks[0], ks[1], DIM, HID)
    w2, b2 = linear(ks[2], ks[3], HID, HID)
    w3, b3 = linear(ks[4], ks[5], HID, HID)
    w4, b4 = linear(ks[6], ks[7], HID, 1)
    return (w1, b1, w2, b2, w3, b3, w4, b4)


def reference_forward(x, prepared, bf16_epilogue):
    """Plain-JAX reference replicating the kernel's precision path exactly."""
    w1, b1, w2, b2, w3, b3, w4, b4 = prepared
    if bf16_epilogue:
        x_t = jnp.zeros((w1.shape[1], x.shape[0]), jnp.bfloat16).at[:DIM, :].set(
            x.astype(jnp.bfloat16).T)
        h = jnp.dot(w1, x_t, preferred_element_type=jnp.float32).astype(jnp.bfloat16)
        h = _leaky_relu(h + b1)
        h = jnp.dot(w2, h, preferred_element_type=jnp.float32).astype(jnp.bfloat16)
        h = _leaky_relu(h + b2)
        h = jnp.dot(w3, h, preferred_element_type=jnp.float32).astype(jnp.bfloat16)
        h = _leaky_relu(h + b3)
    else:
        x_t = x.astype(jnp.float32).T
        h = _leaky_relu(w1[:, 0:1] * x_t[0:1, :] + w1[:, 1:2] * x_t[1:2, :] + b1)
        h = _leaky_relu(jnp.dot(w2, h.astype(jnp.bfloat16),
                                preferred_element_type=jnp.float32) + b2)
        h = _leaky_relu(jnp.dot(w3, h.astype(jnp.bfloat16),
                                preferred_element_type=jnp.float32) + b3)
        h = h.astype(jnp.bfloat16)
    logits = jnp.dot(w4, h, preferred_element_type=jnp.float32) + b4
    return jax.nn.sigmoid(logits).T                         # (N, 1)


if __name__ == "__main__":
    key = jax.random.PRNGKey(0)
    k_x, k_p = jax.random.split(key)

    # Small batch of 2-D points; N is deliberately not a multiple of 128 to exercise padding.
    N = 1000
    x = jax.random.normal(k_x, (N, DIM), jnp.float32)
    params = init_params(k_p)

    bf16_epilogue, two_cores, vmem_limit = _device_flags()
    prepared = prepare_params(params, bf16_epilogue)

    out = escape_model_2d(x, prepared, bf16_epilogue=bf16_epilogue,
                          two_cores=two_cores, vmem_limit=vmem_limit)
    out = jax.block_until_ready(out)

    ref = reference_forward(x, prepared, bf16_epilogue)
    assert out.shape == (N, 1)
    max_err = float(jnp.max(jnp.abs(out - ref)))
    # Tolerance covers the approximate (EUP) reciprocal in the sigmoid and any ULP-level
    # drift of the bf16/f32 accumulate path vs. the XLA reference (see review notes).
    assert max_err < 1e-2, f"max abs err {max_err}"

    print("KERNEL_OK")
</pallas_src>

<mosaic_0001>
module attributes {stable_mosaic.version = 11 : i64} {
  func.func @kernel(%arg0: i32, %arg1: memref<16x1024xbf16, #tpu.memory_space<vmem>>, %arg2: memref<256x16xbf16, #tpu.memory_space<vmem>>, %arg3: memref<256x1xbf16, #tpu.memory_space<vmem>>, %arg4: memref<256x256xbf16, #tpu.memory_space<vmem>>, %arg5: memref<256x1xbf16, #tpu.memory_space<vmem>>, %arg6: memref<256x256xbf16, #tpu.memory_space<vmem>>, %arg7: memref<256x1xbf16, #tpu.memory_space<vmem>>, %arg8: memref<1x256xbf16, #tpu.memory_space<vmem>>, %arg9: memref<1x1xf32, #tpu.memory_space<vmem>>, %arg10: memref<1x1024xf32, #tpu.memory_space<vmem>>) attributes {dimension_semantics = [#tpu.dimension_semantics<parallel>], iteration_bounds = array<i64: 1>, scalar_prefetch = 0 : i64, scratch_operands = 0 : i64, tpu.core_type = #tpu.core_type<tc>, window_params = [{transform_indices = @transform_0, window_bounds = array<i64: 16, 1024>}, {pipeline_mode = #tpu.pipeline_mode<synchronous>, transform_indices = @transform_1, window_bounds = array<i64: 256, 16>}, {pipeline_mode = #tpu.pipeline_mode<synchronous>, transform_indices = @transform_2, window_bounds = array<i64: 256, 1>}, {pipeline_mode = #tpu.pipeline_mode<synchronous>, transform_indices = @transform_3, window_bounds = array<i64: 256, 256>}, {pipeline_mode = #tpu.pipeline_mode<synchronous>, transform_indices = @transform_4, window_bounds = array<i64: 256, 1>}, {pipeline_mode = #tpu.pipeline_mode<synchronous>, transform_indices = @transform_5, window_bounds = array<i64: 256, 256>}, {pipeline_mode = #tpu.pipeline_mode<synchronous>, transform_indices = @transform_6, window_bounds = array<i64: 256, 1>}, {pipeline_mode = #tpu.pipeline_mode<synchronous>, transform_indices = @transform_7, window_bounds = array<i64: 1, 256>}, {pipeline_mode = #tpu.pipeline_mode<synchronous>, transform_indices = @transform_8, window_bounds = array<i64: 1, 1>}, {transform_indices = @transform_9, window_bounds = array<i64: 1, 1024>}]} {
    %c0 = arith.constant 0 : index
    %c0_0 = arith.constant 0 : index
    %0 = vector.load %arg1[%c0, %c0_0] : memref<16x1024xbf16, #tpu.memory_space<vmem>>, vector<16x1024xbf16>
    %c0_1 = arith.constant 0 : index
    %c0_2 = arith.constant 0 : index
    %1 = vector.load %arg2[%c0_1, %c0_2] : memref<256x16xbf16, #tpu.memory_space<vmem>>, vector<256x16xbf16>
    %cst = arith.constant dense<0.000000e+00> : vector<256x1024xf32>
    %2 = tpu.matmul %1, %0, %cst {dimension_numbers = #tpu.dot_dimension_numbers<[1], [0], [0], [1], [0, 0, 1, 1], [], []>} : vector<256x16xbf16>, vector<16x1024xbf16>, vector<256x1024xf32> -> vector<256x1024xf32>
    %3 = arith.truncf %2 : vector<256x1024xf32> to vector<256x1024xbf16>
    %c0_3 = arith.constant 0 : index
    %c0_4 = arith.constant 0 : index
    %4 = vector.load %arg3[%c0_3, %c0_4] : memref<256x1xbf16, #tpu.memory_space<vmem>>, vector<256x1xbf16>
    %5 = vector.broadcast %4 : vector<256x1xbf16> to vector<256x1024xbf16>
    %6 = arith.addf %3, %5 : vector<256x1024xbf16>
    %cst_5 = arith.constant 1.000980e-02 : bf16
    %7 = vector.broadcast %cst_5 : bf16 to vector<256x1024xbf16>
    %8 = arith.mulf %7, %6 : vector<256x1024xbf16>
    %9 = arith.maximumf %6, %8 : vector<256x1024xbf16>
    %c0_6 = arith.constant 0 : index
    %c0_7 = arith.constant 0 : index
    %10 = vector.load %arg4[%c0_6, %c0_7] : memref<256x256xbf16, #tpu.memory_space<vmem>>, vector<256x256xbf16>
    %cst_8 = arith.constant dense<0.000000e+00> : vector<256x1024xf32>
    %11 = tpu.matmul %10, %9, %cst_8 {dimension_numbers = #tpu.dot_dimension_numbers<[1], [0], [0], [1], [0, 0, 1, 1], [], []>} : vector<256x256xbf16>, vector<256x1024xbf16>, vector<256x1024xf32> -> vector<256x1024xf32>
    %12 = arith.truncf %11 : vector<256x1024xf32> to vector<256x1024xbf16>
    %c0_9 = arith.constant 0 : index
    %c0_10 = arith.constant 0 : index
    %13 = vector.load %arg5[%c0_9, %c0_10] : memref<256x1xbf16, #tpu.memory_space<vmem>>, vector<256x1xbf16>
    %14 = vector.broadcast %13 : vector<256x1xbf16> to vector<256x1024xbf16>
    %15 = arith.addf %12, %14 : vector<256x1024xbf16>
    %cst_11 = arith.constant 1.000980e-02 : bf16
    %16 = vector.broadcast %cst_11 : bf16 to vector<256x1024xbf16>
    %17 = arith.mulf %16, %15 : vector<256x1024xbf16>
    %18 = arith.maximumf %15, %17 : vector<256x1024xbf16>
    %c0_12 = arith.constant 0 : index
    %c0_13 = arith.constant 0 : index
    %19 = vector.load %arg6[%c0_12, %c0_13] : memref<256x256xbf16, #tpu.memory_space<vmem>>, vector<256x256xbf16>
    %cst_14 = arith.constant dense<0.000000e+00> : vector<256x1024xf32>
    %20 = tpu.matmul %19, %18, %cst_14 {dimension_numbers = #tpu.dot_dimension_numbers<[1], [0], [0], [1], [0, 0, 1, 1], [], []>} : vector<256x256xbf16>, vector<256x1024xbf16>, vector<256x1024xf32> -> vector<256x1024xf32>
    %21 = arith.truncf %20 : vector<256x1024xf32> to vector<256x1024xbf16>
    %c0_15 = arith.constant 0 : index
    %c0_16 = arith.constant 0 : index
    %22 = vector.load %arg7[%c0_15, %c0_16] : memref<256x1xbf16, #tpu.memory_space<vmem>>, vector<256x1xbf16>
    %23 = vector.broadcast %22 : vector<256x1xbf16> to vector<256x1024xbf16>
    %24 = arith.addf %21, %23 : vector<256x1024xbf16>
    %cst_17 = arith.constant 1.000980e-02 : bf16
    %25 = vector.broadcast %cst_17 : bf16 to vector<256x1024xbf16>
    %26 = arith.mulf %25, %24 : vector<256x1024xbf16>
    %27 = arith.maximumf %24, %26 : vector<256x1024xbf16>
    %c0_18 = arith.constant 0 : index
    %c0_19 = arith.constant 0 : index
    %28 = vector.load %arg8[%c0_18, %c0_19] : memref<1x256xbf16, #tpu.memory_space<vmem>>, vector<1x256xbf16>
    %cst_20 = arith.constant dense<0.000000e+00> : vector<1x1024xf32>
    %29 = tpu.matmul %28, %27, %cst_20 {dimension_numbers = #tpu.dot_dimension_numbers<[1], [0], [0], [1], [0, 0, 1, 1], [], []>} : vector<1x256xbf16>, vector<256x1024xbf16>, vector<1x1024xf32> -> vector<1x1024xf32>
    %c0_21 = arith.constant 0 : index
    %c0_22 = arith.constant 0 : index
    %30 = vector.load %arg9[%c0_21, %c0_22] : memref<1x1xf32, #tpu.memory_space<vmem>>, vector<1x1xf32>
    %31 = vector.broadcast %30 : vector<1x1xf32> to vector<1x1024xf32>
    %32 = arith.addf %29, %31 : vector<1x1024xf32>
    %cst_23 = arith.constant 0.000000e+00 : f32
    %33 = vector.broadcast %cst_23 : f32 to vector<1x1024xf32>
    %34 = arith.subf %33, %32 : vector<1x1024xf32>
    %35 = math.exp %34 : vector<1x1024xf32>
    %cst_24 = arith.constant 1.000000e+00 : f32
    %36 = vector.broadcast %cst_24 : f32 to vector<1x1024xf32>
    %37 = arith.addf %36, %35 : vector<1x1024xf32>
    %38 = tpu.reciprocal %37 {approx = true} : vector<1x1024xf32> -> vector<1x1024xf32>
    %c0_25 = arith.constant 0 : index
    %c0_26 = arith.constant 0 : index
    %39 = vector.load %arg10[%c0_25, %c0_26] : memref<1x1024xf32, #tpu.memory_space<vmem>>, vector<1x1024xf32>
    tpu.vector_store %arg10[%c0_25, %c0_26], %38 {strides = array<i32>} : memref<1x1024xf32, #tpu.memory_space<vmem>>, vector<1x1024xf32>,
    return
  }
  func.func @transform_0(%arg0: i32) -> (i32, i32) {
    %c0_i32 = arith.constant 0 : i32
    %c0_i32_0 = arith.constant 0 : i32
    return %c0_i32, %arg0 : i32, i32
  }
  func.func @transform_1(%arg0: i32) -> (i32, i32) {
    %c0_i32 = arith.constant 0 : i32
    %c0_i32_0 = arith.constant 0 : i32
    %c0_i32_1 = arith.constant 0 : i32
    return %c0_i32, %c0_i32_0 : i32, i32
  }
  func.func @transform_2(%arg0: i32) -> (i32, i32) {
    %c0_i32 = arith.constant 0 : i32
    %c0_i32_0 = arith.constant 0 : i32
    %c0_i32_1 = arith.constant 0 : i32
    return %c0_i32, %c0_i32_0 : i32, i32
  }
  func.func @transform_3(%arg0: i32) -> (i32, i32) {
    %c0_i32 = arith.constant 0 : i32
    %c0_i32_0 = arith.constant 0 : i32
    %c0_i32_1 = arith.constant 0 : i32
    return %c0_i32, %c0_i32_0 : i32, i32
  }
  func.func @transform_4(%arg0: i32) -> (i32, i32) {
    %c0_i32 = arith.constant 0 : i32
    %c0_i32_0 = arith.constant 0 : i32
    %c0_i32_1 = arith.constant 0 : i32
    return %c0_i32, %c0_i32_0 : i32, i32
  }
  func.func @transform_5(%arg0: i32) -> (i32, i32) {
    %c0_i32 = arith.constant 0 : i32
    %c0_i32_0 = arith.constant 0 : i32
    %c0_i32_1 = arith.constant 0 : i32
    return %c0_i32, %c0_i32_0 : i32, i32
  }
  func.func @transform_6(%arg0: i32) -> (i32, i32) {
    %c0_i32 = arith.constant 0 : i32
    %c0_i32_0 = arith.constant 0 : i32
    %c0_i32_1 = arith.constant 0 : i32
    return %c0_i32, %c0_i32_0 : i32, i32
  }
  func.func @transform_7(%arg0: i32) -> (i32, i32) {
    %c0_i32 = arith.constant 0 : i32
    %c0_i32_0 = arith.constant 0 : i32
    %c0_i32_1 = arith.constant 0 : i32
    return %c0_i32, %c0_i32_0 : i32, i32
  }
  func.func @transform_8(%arg0: i32) -> (i32, i32) {
    %c0_i32 = arith.constant 0 : i32
    %c0_i32_0 = arith.constant 0 : i32
    %c0_i32_1 = arith.constant 0 : i32
    return %c0_i32, %c0_i32_0 : i32, i32
  }
  func.func @transform_9(%arg0: i32) -> (i32, i32) {
    %c0_i32 = arith.constant 0 : i32
    %c0_i32_0 = arith.constant 0 : i32
    return %c0_i32, %arg0 : i32, i32
  }
}

</mosaic_0001>

<llo_original>
// kernel: tpu_custom_call.1
$region0: #{tpu_custom_call.1}
  #allocation0 [shape = 'u32[]', space=smem, size = 0x4, offset = 0x4, fixed_abs, tag = 'smem constant byte address 0x4 - core index']
  #allocation1 [shape = 'u32[144,128]{1,0:T(1,128)}', space=vmem, size = 0x12000, scoped, tag = 'internal scratch']
  #allocation2 [shape = 'f32[1,1]{1,0:T(1,128)S(1)}', space=vmem, size = 0x200, scoped, tag = 'scoped memory for tpu_custom_call.1']
  %s0 = inlined_call_operand.hbm [shape: bf16[16,1024], index: 0, kind: input, shape index: {}]
  %s1 = inlined_call_operand.hbm [shape: bf16[256,16], index: 1, kind: input, shape index: {}]
  %s2 = inlined_call_operand.hbm [shape: bf16[256,1], index: 2, kind: input, shape index: {}]
  %s3 = inlined_call_operand.hbm [shape: bf16[256,256], index: 3, kind: input, shape index: {}]
  %s4 = inlined_call_operand.hbm [shape: bf16[256,1], index: 4, kind: input, shape index: {}]
  %s5 = inlined_call_operand.hbm [shape: bf16[256,256], index: 5, kind: input, shape index: {}]
  %s6 = inlined_call_operand.hbm [shape: bf16[256,1], index: 6, kind: input, shape index: {}]
  %s7 = inlined_call_operand.hbm [shape: bf16[1,256], index: 7, kind: input, shape index: {}]
  %s8 = inlined_call_operand.<no memory space> [shape: f32[1,1], index: 8, kind: input, shape index: {}]
  %s9 = inlined_call_operand.hbm [shape: f32[1,1024], index: 9, kind: output, shape index: {}]
  %s10 = sld [smem:[#allocation0]]
  $region78: #{tpu_custom_call.1} parent=0
    _
  %s12 = ssub.s32 1, %s10
  %s13 = scalar_select 0, %s12, %s10
  %v14 = vstv %s8
  %15 = vst [vmem:[#allocation2] sm:$0x1] %v14
  $region1: #{tpu_custom_call.1} parent=0
    #allocation3 [shape = 'u8[32768]{0}', space=vmem, size = 0x8000, scoped, tag = 'input window, operand 0, single buffered']
    #allocation4 [shape = 's32[1]{0}', space=sflag, size = 0x4, scoped, tag = 'scoped memory for tpu_custom_call.1']
    #allocation5 [shape = 's32[1]{0}', space=sflag, size = 0x4, scoped, tag = 'scoped memory for tpu_custom_call.1']
    #allocation6 [shape = 'u8[65536]{0}', space=vmem, size = 0x10000, scoped, tag = 'input window, operand 1, single buffered']
    #allocation7 [shape = 's32[1]{0}', space=sflag, size = 0x4, scoped, tag = 'scoped memory for tpu_custom_call.1']
    #allocation8 [shape = 'u8[65536]{0}', space=vmem, size = 0x10000, scoped, tag = 'input window, operand 2, single buffered']
    #allocation9 [shape = 'u8[131072]{0}', space=vmem, size = 0x20000, scoped, tag = 'input window, operand 3, single buffered']
    #allocation10 [shape = 's32[1]{0}', space=sflag, size = 0x4, scoped, tag = 'scoped memory for tpu_custom_call.1']
    #allocation11 [shape = 'u8[65536]{0}', space=vmem, size = 0x10000, scoped, tag = 'input window, operand 4, single buffered']
    #allocation12 [shape = 'u8[131072]{0}', space=vmem, size = 0x20000, scoped, tag = 'input window, operand 5, single buffered']
    #allocation13 [shape = 's32[1]{0}', space=sflag, size = 0x4, scoped, tag = 'scoped memory for tpu_custom_call.1']
    #allocation14 [shape = 'u8[65536]{0}', space=vmem, size = 0x10000, scoped, tag = 'input window, operand 6, single buffered']
    #allocation15 [shape = 'u8[1024]{0}', space=vmem, size = 0x400, scoped, tag = 'input window, operand 7, single buffered']
    #allocation16 [shape = 's32[1]{0}', space=sflag, size = 0x4, scoped, tag = 'scoped memory for tpu_custom_call.1']
    #allocation17 [shape = 'u8[4096]{0}', space=vmem, size = 0x1000, scoped, tag = 'output window, operand 0, single buffered']
    %16 = vsyncpa [#allocation4], 0
    %17 = vsyncpa [#allocation7], 0
    %18 = vsyncpa [#allocation10], 0
    %19 = vsyncpa [#allocation13], 0
    %20 = vsyncpa [#allocation16], 0
    %21 = vsyncpa [#allocation5], 0
    // Predicated region
    $region2: #{tpu_custom_call.1} parent=1 // pred_check
      _
    $region3: #{tpu_custom_call.1} parent=1 // pred_check_branch
      %23 = sbr.rel (0) target = $region5
    $region4: #{tpu_custom_call.1} parent=1 // pred_region
      %s25 = ssub.s32 1024, 1024
      %26 = vsyncadd [#allocation4], %s25
      %s27 = sshll.u32 [#allocation3], 4
      %s28 = int_to_ptr.vmem [resolvable:$true] %s27
      %33 = dma.hbm_to_vmem [thread:$0]  %s0, 1024, %s28, [#allocation4], 512, 512, 32
    $region5: #{tpu_custom_call.1} parent=1 // pred_fallthru
      _
    // Predicated region
    $region6: #{tpu_custom_call.1} parent=1 // pred_check
      _
    $region7: #{tpu_custom_call.1} parent=1 // pred_check_branch
      %35 = sbr.rel (0) target = $region9
    $region8: #{tpu_custom_call.1} parent=1 // pred_region
      %s37 = ssub.s32 2048, 2048
      %38 = vsyncadd [#allocation7], %s37
      %s39 = sshll.u32 [#allocation6], 4
      %s40 = int_to_ptr.vmem [resolvable:$true] %s39
      %45 = dma.hbm_to_vmem [thread:$0]  %s1, 2048, %s40, [#allocation7], 64, 64, 4
    $region9: #{tpu_custom_call.1} parent=1 // pred_fallthru
      _
    // Predicated region
    $region10: #{tpu_custom_call.1} parent=1 // pred_check
      _
    $region11: #{tpu_custom_call.1} parent=1 // pred_check_branch
      %47 = sbr.rel (0) target = $region13
    $region12: #{tpu_custom_call.1} parent=1 // pred_region
      %s49 = ssub.s32 2048, 2048
      %50 = vsyncadd [#allocation7], %s49
      %s51 = sshll.u32 [#allocation8], 4
      %s52 = int_to_ptr.vmem [resolvable:$true] %s51
      %57 = dma.hbm_to_vmem [thread:$0]  %s2, 2048, %s52, [#allocation7], 64, 64, 4
    $region13: #{tpu_custom_call.1} parent=1 // pred_fallthru
      _
    // Predicated region
    $region14: #{tpu_custom_call.1} parent=1 // pred_check
      _
    $region15: #{tpu_custom_call.1} parent=1 // pred_check_branch
      %59 = sbr.rel (0) target = $region17
    $region16: #{tpu_custom_call.1} parent=1 // pred_region
      %s61 = ssub.s32 4096, 4096
      %62 = vsyncadd [#allocation10], %s61
      %s63 = sshll.u32 [#allocation9], 4
      %s64 = int_to_ptr.vmem [resolvable:$true] %s63
      %69 = dma.hbm_to_vmem [thread:$0]  %s3, 4096, %s64, [#allocation10], 128, 128, 8
    $region17: #{tpu_custom_call.1} parent=1 // pred_fallthru
      _
    // Predicated region
    $region18: #{tpu_custom_call.1} parent=1 // pred_check
      _
    $region19: #{tpu_custom_call.1} parent=1 // pred_check_branch
      %71 = sbr.rel (0) target = $region21
    $region20: #{tpu_custom_call.1} parent=1 // pred_region
      %s73 = ssub.s32 2048, 2048
      %74 = vsyncadd [#allocation10], %s73
      %s75 = sshll.u32 [#allocation11], 4
      %s76 = int_to_ptr.vmem [resolvable:$true] %s75
      %81 = dma.hbm_to_vmem [thread:$0]  %s4, 2048, %s76, [#allocation10], 64, 64, 4
    $region21: #{tpu_custom_call.1} parent=1 // pred_fallthru
      _
    // Predicated region
    $region22: #{tpu_custom_call.1} parent=1 // pred_check
      _
    $region23: #{tpu_custom_call.1} parent=1 // pred_check_branch
      %83 = sbr.rel (0) target = $region25
    $region24: #{tpu_custom_call.1} parent=1 // pred_region
      %s85 = ssub.s32 4096, 4096
      %86 = vsyncadd [#allocation13], %s85
      %s87 = sshll.u32 [#allocation12], 4
      %s88 = int_to_ptr.vmem [resolvable:$true] %s87
      %93 = dma.hbm_to_vmem [thread:$0]  %s5, 4096, %s88, [#allocation13], 128, 128, 8
    $region25: #{tpu_custom_call.1} parent=1 // pred_fallthru
      _
    // Predicated region
    $region26: #{tpu_custom_call.1} parent=1 // pred_check
      _
    $region27: #{tpu_custom_call.1} parent=1 // pred_check_branch
      %95 = sbr.rel (0) target = $region29
    $region28: #{tpu_custom_call.1} parent=1 // pred_region
      %s97 = ssub.s32 2048, 2048
      %98 = vsyncadd [#allocation13], %s97
      %s99 = sshll.u32 [#allocation14], 4
      %s100 = int_to_ptr.vmem [resolvable:$true] %s99
      %105 = dma.hbm_to_vmem [thread:$0]  %s6, 2048, %s100, [#allocation13], 64, 64, 4
    $region29: #{tpu_custom_call.1} parent=1 // pred_fallthru
      _
    // Predicated region
    $region30: #{tpu_custom_call.1} parent=1 // pred_check
      _
    $region31: #{tpu_custom_call.1} parent=1 // pred_check_branch
      %107 = sbr.rel (0) target = $region33
    $region32: #{tpu_custom_call.1} parent=1 // pred_region
      %s109 = ssub.s32 32, 32
      %110 = vsyncadd [#allocation16], %s109
      %s112 = sshll.u32 [#allocation15], 4
      %s113 = int_to_ptr.vmem [resolvable:$true] %s112
      %115 = dma.hbm_to_vmem [thread:$0]  %s7, 32, %s113, [#allocation16]
    $region33: #{tpu_custom_call.1} parent=1 // pred_fallthru
      _
    // Predicated region
    $region34: #{tpu_custom_call.1} parent=1 // pred_check
      _
    $region35: #{tpu_custom_call.1} parent=1 // pred_check_branch
      %117 = sbr.rel (0) target = $region37
    $region36: #{tpu_custom_call.1} parent=1 // pred_region
      _
    $region37: #{tpu_custom_call.1} parent=1 // pred_fallthru
      _
    // Predicated region
    $region38: #{tpu_custom_call.1} parent=1 // pred_check
      _
    $region39: #{tpu_custom_call.1} parent=1 // pred_check_branch
      %119 = sbr.rel (0) target = $region41
    $region40: #{tpu_custom_call.1} parent=1 // pred_region
      %120 = dma.done [#allocation4], 1024
    $region41: #{tpu_custom_call.1} parent=1 // pred_fallthru
      _
    // Predicated region
    $region42: #{tpu_custom_call.1} parent=1 // pred_check
      _
    $region43: #{tpu_custom_call.1} parent=1 // pred_check_branch
      %122 = sbr.rel (0) target = $region45
    $region44: #{tpu_custom_call.1} parent=1 // pred_region
      %123 = dma.done [#allocation7], 2048
    $region45: #{tpu_custom_call.1} parent=1 // pred_fallthru
      _
    // Predicated region
    $region46: #{tpu_custom_call.1} parent=1 // pred_check
      _
    $region47: #{tpu_custom_call.1} parent=1 // pred_check_branch
      %125 = sbr.rel (0) target = $region49
    $region48: #{tpu_custom_call.1} parent=1 // pred_region
      %126 = dma.done [#allocation7], 2048
    $region49: #{tpu_custom_call.1} parent=1 // pred_fallthru
      _
    // Predicated region
    $region50: #{tpu_custom_call.1} parent=1 // pred_check
      _
    $region51: #{tpu_custom_call.1} parent=1 // pred_check_branch
      %128 = sbr.rel (0) target = $region53
    $region52: #{tpu_custom_call.1} parent=1 // pred_region
      %129 = dma.done [#allocation10], 4096
    $region53: #{tpu_custom_call.1} parent=1 // pred_fallthru
      _
    // Predicated region
    $region54: #{tpu_custom_call.1} parent=1 // pred_check
      _
    $region55: #{tpu_custom_call.1} parent=1 // pred_check_branch
      %131 = sbr.rel (0) target = $region57
    $region56: #{tpu_custom_call.1} parent=1 // pred_region
      %132 = dma.done [#allocation10], 2048
    $region57: #{tpu_custom_call.1} parent=1 // pred_fallthru
      _
    // Predicated region
    $region58: #{tpu_custom_call.1} parent=1 // pred_check
      _
    $region59: #{tpu_custom_call.1} parent=1 // pred_check_branch
      %134 = sbr.rel (0) target = $region61
    $region60: #{tpu_custom_call.1} parent=1 // pred_region
      %135 = dma.done [#allocation13], 4096
    $region61: #{tpu_custom_call.1} parent=1 // pred_fallthru
      _
    // Predicated region
    $region62: #{tpu_custom_call.1} parent=1 // pred_check
      _
    $region63: #{tpu_custom_call.1} parent=1 // pred_check_branch
      %137 = sbr.rel (0) target = $region65
    $region64: #{tpu_custom_call.1} parent=1 // pred_region
      %138 = dma.done [#allocation13], 2048
    $region65: #{tpu_custom_call.1} parent=1 // pred_fallthru
      _
    // Predicated region
    $region66: #{tpu_custom_call.1} parent=1 // pred_check
      _
    $region67: #{tpu_custom_call.1} parent=1 // pred_check_branch
      %140 = sbr.rel (0) target = $region69
    $region68: #{tpu_custom_call.1} parent=1 // pred_region
      %141 = dma.done [#allocation16], 32
    $region69: #{tpu_custom_call.1} parent=1 // pred_fallthru
      _
    %v144 = vld [vmem:[#allocation3] sm:$0xff]
    %v145 = vld [vmem:[#allocation3 + $0x8] sm:$0xff]
    %v146 = vld [vmem:[#allocation3 + $0x10] sm:$0xff]
    %v147 = vld [vmem:[#allocation3 + $0x18] sm:$0xff]
    %v148 = vld [vmem:[#allocation3 + $0x20] sm:$0xff]
    %v149 = vld [vmem:[#allocation3 + $0x28] sm:$0xff]
    %v150 = vld [vmem:[#allocation3 + $0x30] sm:$0xff]
    %v151 = vld [vmem:[#allocation3 + $0x38] sm:$0xff]
    %v152 = vld [vmem:[#allocation6] sm:$0xf]
    %v153 = vld [vmem:[#allocation6 + $0x4] sm:$0xf]
    %v154 = vld [vmem:[#allocation6 + $0x8] sm:$0xf]
    %v155 = vld [vmem:[#allocation6 + $0xc] sm:$0xf]
    %v156 = vld [vmem:[#allocation6 + $0x10] sm:$0xf]
    %v157 = vld [vmem:[#allocation6 + $0x14] sm:$0xf]
    %v158 = vld [vmem:[#allocation6 + $0x18] sm:$0xf]
    %v159 = vld [vmem:[#allocation6 + $0x1c] sm:$0xf]
    %v160 = vld [vmem:[#allocation6 + $0x20] sm:$0xf]
    %v161 = vld [vmem:[#allocation6 + $0x24] sm:$0xf]
    %v162 = vld [vmem:[#allocation6 + $0x28] sm:$0xf]
    %v163 = vld [vmem:[#allocation6 + $0x2c] sm:$0xf]
    %v164 = vld [vmem:[#allocation6 + $0x30] sm:$0xf]
    %v165 = vld [vmem:[#allocation6 + $0x34] sm:$0xf]
    %v166 = vld [vmem:[#allocation6 + $0x38] sm:$0xf]
    %v167 = vld [vmem:[#allocation6 + $0x3c] sm:$0xf]
    %v168 = vld [vmem:[#allocation6 + $0x40] sm:$0xf]
    %v169 = vld [vmem:[#allocation6 + $0x44] sm:$0xf]
    %v170 = vld [vmem:[#allocation6 + $0x48] sm:$0xf]
    %v171 = vld [vmem:[#allocation6 + $0x4c] sm:$0xf]
    %v172 = vld [vmem:[#allocation6 + $0x50] sm:$0xf]
    %v173 = vld [vmem:[#allocation6 + $0x54] sm:$0xf]
    %v174 = vld [vmem:[#allocation6 + $0x58] sm:$0xf]
    %v175 = vld [vmem:[#allocation6 + $0x5c] sm:$0xf]
    %v176 = vld [vmem:[#allocation6 + $0x60] sm:$0xf]
    %v177 = vld [vmem:[#allocation6 + $0x64] sm:$0xf]
    %v178 = vld [vmem:[#allocation6 + $0x68] sm:$0xf]
    %v179 = vld [vmem:[#allocation6 + $0x6c] sm:$0xf]
    %v180 = vld [vmem:[#allocation6 + $0x70] sm:$0xf]
    %v181 = vld [vmem:[#allocation6 + $0x74] sm:$0xf]
    %v182 = vld [vmem:[#allocation6 + $0x78] sm:$0xf]
    %v183 = vld [vmem:[#allocation6 + $0x7c] sm:$0xf]
    %v216 = vunpack.c.l.b16 %v152
    %v217 = vunpack.c.l.b16 %v153
    %v218 = vunpack.c.l.b16 %v154
    %v219 = vunpack.c.l.b16 %v155
    %v220 = vunpack.c.l.b16 %v156
    %v221 = vunpack.c.l.b16 %v157
    %v222 = vunpack.c.l.b16 %v158
    %v223 = vunpack.c.l.b16 %v159
    %v224 = vunpack.c.l.b16 %v160
    %v225 = vunpack.c.l.b16 %v161
    %v226 = vunpack.c.l.b16 %v162
    %v227 = vunpack.c.l.b16 %v163
    %v228 = vunpack.c.l.b16 %v164
    %v229 = vunpack.c.l.b16 %v165
    %v230 = vunpack.c.l.b16 %v166
    %v231 = vunpack.c.l.b16 %v167
    %v232 = vunpack.c.l.b16 %v168
    %v233 = vunpack.c.l.b16 %v169
    %v234 = vunpack.c.l.b16 %v170
    %v235 = vunpack.c.l.b16 %v171
    %v236 = vunpack.c.l.b16 %v172
    %v237 = vunpack.c.l.b16 %v173
    %v238 = vunpack.c.l.b16 %v174
    %v239 = vunpack.c.l.b16 %v175
    %v240 = vunpack.c.l.b16 %v176
    %v241 = vunpack.c.l.b16 %v177
    %v242 = vunpack.c.l.b16 %v178
    %v243 = vunpack.c.l.b16 %v179
    %v244 = vunpack.c.l.b16 %v180
    %v245 = vunpack.c.l.b16 %v181
    %v246 = vunpack.c.l.b16 %v182
    %v247 = vunpack.c.l.b16 %v183
    %v248 = vpack.c.b16 %v217, %v216
    %v249 = vpack.c.b16 %v219, %v218
    %v250 = vpack.c.b16 %v221, %v220
    %v251 = vpack.c.b16 %v223, %v222
    %v252 = vpack.c.b16 %v225, %v224
    %v253 = vpack.c.b16 %v227, %v226
    %v254 = vpack.c.b16 %v229, %v228
    %v255 = vpack.c.b16 %v231, %v230
    %v256 = vpack.c.b16 %v233, %v232
    %v257 = vpack.c.b16 %v235, %v234
    %v258 = vpack.c.b16 %v237, %v236
    %v259 = vpack.c.b16 %v239, %v238
    %v260 = vpack.c.b16 %v241, %v240
    %v261 = vpack.c.b16 %v243, %v242
    %v262 = vpack.c.b16 %v245, %v244
    %v263 = vpack.c.b16 %v247, %v246
    %v272 = vunpack.c.l.b16 %v144
    %v273 = vunpack.c.h.b16 %v144
    %v274 = vunpack.c.l.b16 %v145
    %v275 = vunpack.c.h.b16 %v145
    %v276 = vunpack.c.l.b16 %v146
    %v277 = vunpack.c.h.b16 %v146
    %v278 = vunpack.c.l.b16 %v147
    %v279 = vunpack.c.h.b16 %v147
    %v280 = vunpack.c.l.b16 %v148
    %v281 = vunpack.c.h.b16 %v148
    %v282 = vunpack.c.l.b16 %v149
    %v283 = vunpack.c.h.b16 %v149
    %v284 = vunpack.c.l.b16 %v150
    %v285 = vunpack.c.h.b16 %v150
    %v286 = vunpack.c.l.b16 %v151
    %v287 = vunpack.c.h.b16 %v151
    %v288 = vpack.c.b16 %v280, %v272
    %v289 = vpack.c.b16 %v281, %v273
    %v290 = vpack.c.b16 %v282, %v274
    %v291 = vpack.c.b16 %v283, %v275
    %v292 = vpack.c.b16 %v284, %v276
    %v293 = vpack.c.b16 %v285, %v277
    %v294 = vpack.c.b16 %v286, %v278
    %v295 = vpack.c.b16 %v287, %v279
    %vm304 = vcmask 130048
    %v306 = vsel %vm304, %v248, 0
    %v309 = vsel %vm304, %v249, 0
    %v312 = vsel %vm304, %v250, 0
    %v315 = vsel %vm304, %v251, 0
    %v318 = vsel %vm304, %v252, 0
    %v321 = vsel %vm304, %v253, 0
    %v324 = vsel %vm304, %v254, 0
    %v327 = vsel %vm304, %v255, 0
    %v330 = vsel %vm304, %v256, 0
    %v333 = vsel %vm304, %v257, 0
    %v336 = vsel %vm304, %v258, 0
    %v339 = vsel %vm304, %v259, 0
    %v342 = vsel %vm304, %v260, 0
    %v345 = vsel %vm304, %v261, 0
    %v348 = vsel %vm304, %v262, 0
    %v351 = vsel %vm304, %v263, 0
    %353 = vmatprep.subr.bf16.mxu0 %v289
    %354 = vmatpush1.bf16.msra.mxu0 %v288
    %355 = vmatprep.subr.bf16.mxu0 0
    %356 = vmatpush1.bf16.msra.mxu0 0
    %357 = vmatprep.subr.bf16.mxu0 0
    %358 = vmatpush1.bf16.msra.mxu0 0
    %359 = vmatprep.subr.bf16.mxu0 0
    %360 = vmatpush1.bf16.msra.mxu0 0
    %361 = vmatprep.subr.bf16.mxu0 0
    %362 = vmatpush1.bf16.msra.mxu0 0
    %363 = vmatprep.subr.bf16.mxu0 0
    %364 = vmatpush1.bf16.msra.mxu0 0
    %365 = vmatprep.subr.bf16.mxu0 0
    %366 = vmatpush1.bf16.msra.mxu0 0
    %367 = vmatprep.subr.bf16.mxu0 0
    %368 = vmatpush1.bf16.msra.mxu0 0
    %369 = vmatprep.subr.bf16.mxu0 0
    %370 = vmatpush1.bf16.msra.mxu0 0
    %371 = vmatprep.subr.bf16.mxu0 0
    %372 = vmatpush1.bf16.msra.mxu0 0
    %373 = vmatprep.subr.bf16.mxu0 0
    %374 = vmatpush1.bf16.msra.mxu0 0
    %375 = vmatprep.subr.bf16.mxu0 0
    %376 = vmatpush1.bf16.msra.mxu0 0
    %377 = vmatprep.subr.bf16.mxu0 0
    %378 = vmatpush1.bf16.msra.mxu0 0
    %379 = vmatprep.subr.bf16.mxu0 0
    %380 = vmatpush1.bf16.msra.mxu0 0
    %381 = vmatprep.subr.bf16.mxu0 0
    %382 = vmatpush1.bf16.msra.mxu0 0
    %383 = vmatprep.subr.bf16.mxu0 0
    %384 = vmatpush1.bf16.msra.mxu0 0
    %385 = vmatprep.mubr.bf16.mxu0 0
    %386 = vmatmul.mubr.bf16.gmra.mrb[0].mxu0 %v306
    %v387 = vpop.f32.mrb[0].mxu0
    %v388 = vadd.f32 0.0, %v387
    %v389 = vpop.f32.mrb[0].mxu0
    %v390 = vadd.f32 0.0, %v389
    %v391 = vpop.f32.mrb[0].mxu0
    %v392 = vadd.f32 0.0, %v391
    %v393 = vpop.f32.mrb[0].mxu0
    %v394 = vadd.f32 0.0, %v393
    %395 = vmatprep.mubr.bf16.mxu0 0
    %396 = vmatmul.mubr.bf16.gmra.mrb[0].mxu0 %v309
    %v397 = vpop.f32.mrb[0].mxu0
    %v398 = vadd.f32 0.0, %v397
    %v399 = vpop.f32.mrb[0].mxu0
    %v400 = vadd.f32 0.0, %v399
    %v401 = vpop.f32.mrb[0].mxu0
    %v402 = vadd.f32 0.0, %v401
    %v403 = vpop.f32.mrb[0].mxu0
    %v404 = vadd.f32 0.0, %v403
    %405 = vmatprep.mubr.bf16.mxu0 0
    %406 = vmatmul.mubr.bf16.gmra.mrb[0].mxu0 %v312
    %v407 = vpop.f32.mrb[0].mxu0
    %v408 = vadd.f32 0.0, %v407
    %v409 = vpop.f32.mrb[0].mxu0
    %v410 = vadd.f32 0.0, %v409
    %v411 = vpop.f32.mrb[0].mxu0
    %v412 = vadd.f32 0.0, %v411
    %v413 = vpop.f32.mrb[0].mxu0
    %v414 = vadd.f32 0.0, %v413
    %415 = vmatprep.mubr.bf16.mxu0 0
    %416 = vmatmul.mubr.bf16.gmra.mrb[0].mxu0 %v315
    %v417 = vpop.f32.mrb[0].mxu0
    %v418 = vadd.f32 0.0, %v417
    %v419 = vpop.f32.mrb[0].mxu0
    %v420 = vadd.f32 0.0, %v419
    %v421 = vpop.f32.mrb[0].mxu0
    %v422 = vadd.f32 0.0, %v421
    %v423 = vpop.f32.mrb[0].mxu0
    %v424 = vadd.f32 0.0, %v423
    %425 = vmatprep.mubr.bf16.mxu0 0
    %426 = vmatmul.mubr.bf16.gmra.mrb[0].mxu0 %v318
    %v427 = vpop.f32.mrb[0].mxu0
    %v428 = vadd.f32 0.0, %v427
    %v429 = vpop.f32.mrb[0].mxu0
    %v430 = vadd.f32 0.0, %v429
    %v431 = vpop.f32.mrb[0].mxu0
    %v432 = vadd.f32 0.0, %v431
    %v433 = vpop.f32.mrb[0].mxu0
    %v434 = vadd.f32 0.0, %v433
    %435 = vmatprep.mubr.bf16.mxu0 0
    %436 = vmatmul.mubr.bf16.gmra.mrb[0].mxu0 %v321
    %v437 = vpop.f32.mrb[0].mxu0
    %v438 = vadd.f32 0.0, %v437
    %v439 = vpop.f32.mrb[0].mxu0
    %v440 = vadd.f32 0.0, %v439
    %v441 = vpop.f32.mrb[0].mxu0
    %v442 = vadd.f32 0.0, %v441
    %v443 = vpop.f32.mrb[0].mxu0
    %v444 = vadd.f32 0.0, %v443
    %445 = vmatprep.mubr.bf16.mxu0 0
    %446 = vmatmul.mubr.bf16.gmra.mrb[0].mxu0 %v324
    %v447 = vpop.f32.mrb[0].mxu0
    %v448 = vadd.f32 0.0, %v447
    %v449 = vpop.f32.mrb[0].mxu0
    %v450 = vadd.f32 0.0, %v449
    %v451 = vpop.f32.mrb[0].mxu0
    %v452 = vadd.f32 0.0, %v451
    %v453 = vpop.f32.mrb[0].mxu0
    %v454 = vadd.f32 0.0, %v453
    %455 = vmatprep.mubr.bf16.mxu0 0
    %456 = vmatmul.mubr.bf16.gmra.mrb[0].mxu0 %v327
    %v457 = vpop.f32.mrb[0].mxu0
    %v458 = vadd.f32 0.0, %v457
    %v459 = vpop.f32.mrb[0].mxu0
    %v460 = vadd.f32 0.0, %v459
    %v461 = vpop.f32.mrb[0].mxu0
    %v462 = vadd.f32 0.0, %v461
    %v463 = vpop.f32.mrb[0].mxu0
    %v464 = vadd.f32 0.0, %v463
    %465 = vmatprep.mubr.bf16.mxu0 0
    %466 = vmatmul.mubr.bf16.gmra.mrb[0].mxu0 %v330
    %v467 = vpop.f32.mrb[0].mxu0
    %v468 = vadd.f32 0.0, %v467
    %v469 = vpop.f32.mrb[0].mxu0
    %v470 = vadd.f32 0.0, %v469
    %v471 = vpop.f32.mrb[0].mxu0
    %v472 = vadd.f32 0.0, %v471
    %v473 = vpop.f32.mrb[0].mxu0
    %v474 = vadd.f32 0.0, %v473
    %475 = vmatprep.mubr.bf16.mxu0 0
    %476 = vmatmul.mubr.bf16.gmra.mrb[0].mxu0 %v333
    %v477 = vpop.f32.mrb[0].mxu0
    %v478 = vadd.f32 0.0, %v477
    %v479 = vpop.f32.mrb[0].mxu0
    %v480 = vadd.f32 0.0, %v479
    %v481 = vpop.f32.mrb[0].mxu0
    %v482 = vadd.f32 0.0, %v481
    %v483 = vpop.f32.mrb[0].mxu0
    %v484 = vadd.f32 0.0, %v483
    %485 = vmatprep.mubr.bf16.mxu0 0
    %486 = vmatmul.mubr.bf16.gmra.mrb[0].mxu0 %v336
    %v487 = vpop.f32.mrb[0].mxu0
    %v488 = vadd.f32 0.0, %v487
    %v489 = vpop.f32.mrb[0].mxu0
    %v490 = vadd.f32 0.0, %v489
    %v491 = vpop.f32.mrb[0].mxu0
    %v492 = vadd.f32 0.0, %v491
    %v493 = vpop.f32.mrb[0].mxu0
    %v494 = vadd.f32 0.0, %v493
    %495 = vmatprep.mubr.bf16.mxu0 0
    %496 = vmatmul.mubr.bf16.gmra.mrb[0].mxu0 %v339
    %v497 = vpop.f32.mrb[0].mxu0
    %v498 = vadd.f32 0.0, %v497
    %v499 = vpop.f32.mrb[0].mxu0
    %v500 = vadd.f32 0.0, %v499
    %v501 = vpop.f32.mrb[0].mxu0
    %v502 = vadd.f32 0.0, %v501
    %v503 = vpop.f32.mrb[0].mxu0
    %v504 = vadd.f32 0.0, %v503
    %505 = vmatprep.mubr.bf16.mxu0 0
    %506 = vmatmul.mubr.bf16.gmra.mrb[0].mxu0 %v342
    %v507 = vpop.f32.mrb[0].mxu0
    %v508 = vadd.f32 0.0, %v507
    %v509 = vpop.f32.mrb[0].mxu0
    %v510 = vadd.f32 0.0, %v509
    %v511 = vpop.f32.mrb[0].mxu0
    %v512 = vadd.f32 0.0, %v511
    %v513 = vpop.f32.mrb[0].mxu0
    %v514 = vadd.f32 0.0, %v513
    %515 = vmatprep.mubr.bf16.mxu0 0
    %516 = vmatmul.mubr.bf16.gmra.mrb[0].mxu0 %v345
    %v517 = vpop.f32.mrb[0].mxu0
    %v518 = vadd.f32 0.0, %v517
    %v519 = vpop.f32.mrb[0].mxu0
    %v520 = vadd.f32 0.0, %v519
    %v521 = vpop.f32.mrb[0].mxu0
    %v522 = vadd.f32 0.0, %v521
    %v523 = vpop.f32.mrb[0].mxu0
    %v524 = vadd.f32 0.0, %v523
    %525 = vmatprep.mubr.bf16.mxu0 0
    %526 = vmatmul.mubr.bf16.gmra.mrb[0].mxu0 %v348
    %v527 = vpop.f32.mrb[0].mxu0
    %v528 = vadd.f32 0.0, %v527
    %v529 = vpop.f32.mrb[0].mxu0
    %v530 = vadd.f32 0.0, %v529
    %v531 = vpop.f32.mrb[0].mxu0
    %v532 = vadd.f32 0.0, %v531
    %v533 = vpop.f32.mrb[0].mxu0
    %v534 = vadd.f32 0.0, %v533
    %535 = vmatprep.mubr.bf16.mxu0 0
    %536 = vmatmul.mubr.bf16.gmra.mrb[0].mxu0 %v351
    %v537 = vpop.f32.mrb[0].mxu0
    %v538 = vadd.f32 0.0, %v537
    %v539 = vpop.f32.mrb[0].mxu0
    %v540 = vadd.f32 0.0, %v539
    %v541 = vpop.f32.mrb[0].mxu0
    %v542 = vadd.f32 0.0, %v541
    %v543 = vpop.f32.mrb[0].mxu0
    %v544 = vadd.f32 0.0, %v543
    %545 = vdwg.mxu0
    %546 = vmatprep.subr.bf16.mxu0 %v291
    %547 = vmatpush1.bf16.msra.mxu0 %v290
    %548 = vmatprep.subr.bf16.mxu0 0
    %549 = vmatpush1.bf16.msra.mxu0 0
    %550 = vmatprep.subr.bf16.mxu0 0
    %551 = vmatpush1.bf16.msra.mxu0 0
    %552 = vmatprep.subr.bf16.mxu0 0
    %553 = vmatpush1.bf16.msra.mxu0 0
    %554 = vmatprep.subr.bf16.mxu0 0
    %555 = vmatpush1.bf16.msra.mxu0 0
    %556 = vmatprep.subr.bf16.mxu0 0
    %557 = vmatpush1.bf16.msra.mxu0 0
    %558 = vmatprep.subr.bf16.mxu0 0
    %559 = vmatpush1.bf16.msra.mxu0 0
    %560 = vmatprep.subr.bf16.mxu0 0
    %561 = vmatpush1.bf16.msra.mxu0 0
    %562 = vmatprep.subr.bf16.mxu0 0
    %563 = vmatpush1.bf16.msra.mxu0 0
    %564 = vmatprep.subr.bf16.mxu0 0
    %565 = vmatpush1.bf16.msra.mxu0 0
    %566 = vmatprep.subr.bf16.mxu0 0
    %567 = vmatpush1.bf16.msra.mxu0 0
    %568 = vmatprep.subr.bf16.mxu0 0
    %569 = vmatpush1.bf16.msra.mxu0 0
    %570 = vmatprep.subr.bf16.mxu0 0
    %571 = vmatpush1.bf16.msra.mxu0 0
    %572 = vmatprep.subr.bf16.mxu0 0
    %573 = vmatpush1.bf16.msra.mxu0 0
    %574 = vmatprep.subr.bf16.mxu0 0
    %575 = vmatpush1.bf16.msra.mxu0 0
    %576 = vmatprep.subr.bf16.mxu0 0
    %577 = vmatpush1.bf16.msra.mxu0 0
    %578 = vmatprep.mubr.bf16.mxu0 0
    %579 = vmatmul.mubr.bf16.gmra.mrb[0].mxu0 %v306
    %v580 = vpop.f32.mrb[0].mxu0
    %v581 = vadd.f32 0.0, %v580
    %v582 = vpop.f32.mrb[0].mxu0
    %v583 = vadd.f32 0.0, %v582
    %v584 = vpop.f32.mrb[0].mxu0
    %v585 = vadd.f32 0.0, %v584
    %v586 = vpop.f32.mrb[0].mxu0
    %v587 = vadd.f32 0.0, %v586
    %588 = vmatprep.mubr.bf16.mxu0 0
    %589 = vmatmul.mubr.bf16.gmra.mrb[0].mxu0 %v309
    %v590 = vpop.f32.mrb[0].mxu0
    %v591 = vadd.f32 0.0, %v590
    %v592 = vpop.f32.mrb[0].mxu0
    %v593 = vadd.f32 0.0, %v592
    %v594 = vpop.f32.mrb[0].mxu0
    %v595 = vadd.f32 0.0, %v594
    %v596 = vpop.f32.mrb[0].mxu0
    %v597 = vadd.f32 0.0, %v596
    %598 = vmatprep.mubr.bf16.mxu0 0
    %599 = vmatmul.mubr.bf16.gmra.mrb[0].mxu0 %v312
    %v600 = vpop.f32.mrb[0].mxu0
    %v601 = vadd.f32 0.0, %v600
    %v602 = vpop.f32.mrb[0].mxu0
    %v603 = vadd.f32 0.0, %v602
    %v604 = vpop.f32.mrb[0].mxu0
    %v605 = vadd.f32 0.0, %v604
    %v606 = vpop.f32.mrb[0].mxu0
    %v607 = vadd.f32 0.0, %v606
    %608 = vmatprep.mubr.bf16.mxu0 0
    %609 = vmatmul.mubr.bf16.gmra.mrb[0].mxu0 %v315
    %v610 = vpop.f32.mrb[0].mxu0
    %v611 = vadd.f32 0.0, %v610
    %v612 = vpop.f32.mrb[0].mxu0
    %v613 = vadd.f32 0.0, %v612
    %v614 = vpop.f32.mrb[0].mxu0
    %v615 = vadd.f32 0.0, %v614
    %v616 = vpop.f32.mrb[0].mxu0
    %v617 = vadd.f32 0.0, %v616
    %618 = vmatprep.mubr.bf16.mxu0 0
    %619 = vmatmul.mubr.bf16.gmra.mrb[0].mxu0 %v318
    %v620 = vpop.f32.mrb[0].mxu0
    %v621 = vadd.f32 0.0, %v620
    %v622 = vpop.f32.mrb[0].mxu0
    %v623 = vadd.f32 0.0, %v622
    %v624 = vpop.f32.mrb[0].mxu0
    %v625 = vadd.f32 0.0, %v624
    %v626 = vpop.f32.mrb[0].mxu0
    %v627 = vadd.f32 0.0, %v626
    %628 = vmatprep.mubr.bf16.mxu0 0
    %629 = vmatmul.mubr.bf16.gmra.mrb[0].mxu0 %v321
    %v630 = vpop.f32.mrb[0].mxu0
    %v631 = vadd.f32 0.0, %v630
    %v632 = vpop.f32.mrb[0].mxu0
    %v633 = vadd.f32 0.0, %v632
    %v634 = vpop.f32.mrb[0].mxu0
    %v635 = vadd.f32 0.0, %v634
    %v636 = vpop.f32.mrb[0].mxu0
    %v637 = vadd.f32 0.0, %v636
    %638 = vmatprep.mubr.bf16.mxu0 0
    %639 = vmatmul.mubr.bf16.gmra.mrb[0].mxu0 %v324
    %v640 = vpop.f32.mrb[0].mxu0
    %v641 = vadd.f32 0.0, %v640
    %v642 = vpop.f32.mrb[0].mxu0
    %v643 = vadd.f32 0.0, %v642
    %v644 = vpop.f32.mrb[0].mxu0
    %v645 = vadd.f32 0.0, %v644
    %v646 = vpop.f32.mrb[0].mxu0
    %v647 = vadd.f32 0.0, %v646
    %648 = vmatprep.mubr.bf16.mxu0 0
    %649 = vmatmul.mubr.bf16.gmra.mrb[0].mxu0 %v327
    %v650 = vpop.f32.mrb[0].mxu0
    %v651 = vadd.f32 0.0, %v650
    %v652 = vpop.f32.mrb[0].mxu0
    %v653 = vadd.f32 0.0, %v652
    %v654 = vpop.f32.mrb[0].mxu0
    %v655 = vadd.f32 0.0, %v654
    %v656 = vpop.f32.mrb[0].mxu0
    %v657 = vadd.f32 0.0, %v656
    %658 = vmatprep.mubr.bf16.mxu0 0
    %659 = vmatmul.mubr.bf16.gmra.mrb[0].mxu0 %v330
    %v660 = vpop.f32.mrb[0].mxu0
    %v661 = vadd.f32 0.0, %v660
    %v662 = vpop.f32.mrb[0].mxu0
    %v663 = vadd.f32 0.0, %v662
    %v664 = vpop.f32.mrb[0].mxu0
    %v665 = vadd.f32 0.0, %v664
    %v666 = vpop.f32.mrb[0].mxu0
    %v667 = vadd.f32 0.0, %v666
    %668 = vmatprep.mubr.bf16.mxu0 0
    %669 = vmatmul.mubr.bf16.gmra.mrb[0].mxu0 %v333
    %v670 = vpop.f32.mrb[0].mxu0
    %v671 = vadd.f32 0.0, %v670
    %v672 = vpop.f32.mrb[0].mxu0
    %v673 = vadd.f32 0.0, %v672
    %v674 = vpop.f32.mrb[0].mxu0
    %v675 = vadd.f32 0.0, %v674
    %v676 = vpop.f32.mrb[0].mxu0
    %v677 = vadd.f32 0.0, %v676
    %678 = vmatprep.mubr.bf16.mxu0 0
    %679 = vmatmul.mubr.bf16.gmra.mrb[0].mxu0 %v336
    %v680 = vpop.f32.mrb[0].mxu0
    %v681 = vadd.f32 0.0, %v680
    %v682 = vpop.f32.mrb[0].mxu0
    %v683 = vadd.f32 0.0, %v682
    %v684 = vpop.f32.mrb[0].mxu0
    %v685 = vadd.f32 0.0, %v684
    %v686 = vpop.f32.mrb[0].mxu0
    %v687 = vadd.f32 0.0, %v686
    %688 = vmatprep.mubr.bf16.mxu0 0
    %689 = vmatmul.mubr.bf16.gmra.mrb[0].mxu0 %v339
    %v690 = vpop.f32.mrb[0].mxu0
    %v691 = vadd.f32 0.0, %v690
    %v692 = vpop.f32.mrb[0].mxu0
    %v693 = vadd.f32 0.0, %v692
    %v694 = vpop.f32.mrb[0].mxu0
    %v695 = vadd.f32 0.0, %v694
    %v696 = vpop.f32.mrb[0].mxu0
    %v697 = vadd.f32 0.0, %v696
    %698 = vmatprep.mubr.bf16.mxu0 0
    %699 = vmatmul.mubr.bf16.gmra.mrb[0].mxu0 %v342
    %v700 = vpop.f32.mrb[0].mxu0
    %v701 = vadd.f32 0.0, %v700
    %v702 = vpop.f32.mrb[0].mxu0
    %v703 = vadd.f32 0.0, %v702
    %v704 = vpop.f32.mrb[0].mxu0
    %v705 = vadd.f32 0.0, %v704
    %v706 = vpop.f32.mrb[0].mxu0
    %v707 = vadd.f32 0.0, %v706
    %708 = vmatprep.mubr.bf16.mxu0 0
    %709 = vmatmul.mubr.bf16.gmra.mrb[0].mxu0 %v345
    %v710 = vpop.f32.mrb[0].mxu0
    %v711 = vadd.f32 0.0, %v710
    %v712 = vpop.f32.mrb[0].mxu0
    %v713 = vadd.f32 0.0, %v712
    %v714 = vpop.f32.mrb[0].mxu0
    %v715 = vadd.f32 0.0, %v714
    %v716 = vpop.f32.mrb[0].mxu0
    %v717 = vadd.f32 0.0, %v716
    %718 = vmatprep.mubr.bf16.mxu0 0
    %719 = vmatmul.mubr.bf16.gmra.mrb[0].mxu0 %v348
    %v720 = vpop.f32.mrb[0].mxu0
    %v721 = vadd.f32 0.0, %v720
    %v722 = vpop.f32.mrb[0].mxu0
    %v723 = vadd.f32 0.0, %v722
    %v724 = vpop.f32.mrb[0].mxu0
    %v725 = vadd.f32 0.0, %v724
    %v726 = vpop.f32.mrb[0].mxu0
    %v727 = vadd.f32 0.0, %v726
    %728 = vmatprep.mubr.bf16.mxu0 0
    %729 = vmatmul.mubr.bf16.gmra.mrb[0].mxu0 %v351
    %v730 = vpop.f32.mrb[0].mxu0
    %v731 = vadd.f32 0.0, %v730
    %v732 = vpop.f32.mrb[0].mxu0
    %v733 = vadd.f32 0.0, %v732
    %v734 = vpop.f32.mrb[0].mxu0
    %v735 = vadd.f32 0.0, %v734
    %v736 = vpop.f32.mrb[0].mxu0
    %v737 = vadd.f32 0.0, %v736
    %738 = vdwg.mxu0
    %739 = vmatprep.subr.bf16.mxu0 %v293
    %740 = vmatpush1.bf16.msra.mxu0 %v292
    %741 = vmatprep.subr.bf16.mxu0 0
    %742 = vmatpush1.bf16.msra.mxu0 0
    %743 = vmatprep.subr.bf16.mxu0 0
    %744 = vmatpush1.bf16.msra.mxu0 0
    %745 = vmatprep.subr.bf16.mxu0 0
    %746 = vmatpush1.bf16.msra.mxu0 0
    %747 = vmatprep.subr.bf16.mxu0 0
    %748 = vmatpush1.bf16.msra.mxu0 0
    %749 = vmatprep.subr.bf16.mxu0 0
    %750 = vmatpush1.bf16.msra.mxu0 0
    %751 = vmatprep.subr.bf16.mxu0 0
    %752 = vmatpush1.bf16.msra.mxu0 0
    %753 = vmatprep.subr.bf16.mxu0 0
    %754 = vmatpush1.bf16.msra.mxu0 0
    %755 = vmatprep.subr.bf16.mxu0 0
    %756 = vmatpush1.bf16.msra.mxu0 0
    %757 = vmatprep.subr.bf16.mxu0 0
    %758 = vmatpush1.bf16.msra.mxu0 0
    %759 = vmatprep.subr.bf16.mxu0 0
    %760 = vmatpush1.bf16.msra.mxu0 0
    %761 = vmatprep.subr.bf16.mxu0 0
    %762 = vmatpush1.bf16.msra.mxu0 0
    %763 = vmatprep.subr.bf16.mxu0 0
    %764 = vmatpush1.bf16.msra.mxu0 0
    %765 = vmatprep.subr.bf16.mxu0 0
    %766 = vmatpush1.bf16.msra.mxu0 0
    %767 = vmatprep.subr.bf16.mxu0 0
    %768 = vmatpush1.bf16.msra.mxu0 0
    %769 = vmatprep.subr.bf16.mxu0 0
    %770 = vmatpush1.bf16.msra.mxu0 0
    %771 = vmatprep.mubr.bf16.mxu0 0
    %772 = vmatmul.mubr.bf16.gmra.mrb[0].mxu0 %v306
    %v773 = vpop.f32.mrb[0].mxu0
    %v774 = vadd.f32 0.0, %v773
    %v775 = vpop.f32.mrb[0].mxu0
    %v776 = vadd.f32 0.0, %v775
    %v777 = vpop.f32.mrb[0].mxu0
    %v778 = vadd.f32 0.0, %v777
    %v779 = vpop.f32.mrb[0].mxu0
    %v780 = vadd.f32 0.0, %v779
    %781 = vmatprep.mubr.bf16.mxu0 0
    %782 = vmatmul.mubr.bf16.gmra.mrb[0].mxu0 %v309
    %v783 = vpop.f32.mrb[0].mxu0
    %v784 = vadd.f32 0.0, %v783
    %v785 = vpop.f32.mrb[0].mxu0
    %v786 = vadd.f32 0.0, %v785
    %v787 = vpop.f32.mrb[0].mxu0
    %v788 = vadd.f32 0.0, %v787
    %v789 = vpop.f32.mrb[0].mxu0
    %v790 = vadd.f32 0.0, %v789
    %791 = vmatprep.mubr.bf16.mxu0 0
    %792 = vmatmul.mubr.bf16.gmra.mrb[0].mxu0 %v312
    %v793 = vpop.f32.mrb[0].mxu0
    %v794 = vadd.f32 0.0, %v793
    %v795 = vpop.f32.mrb[0].mxu0
    %v796 = vadd.f32 0.0, %v795
    %v797 = vpop.f32.mrb[0].mxu0
    %v798 = vadd.f32 0.0, %v797
    %v799 = vpop.f32.mrb[0].mxu0
    %v800 = vadd.f32 0.0, %v799
    %801 = vmatprep.mubr.bf16.mxu0 0
    %802 = vmatmul.mubr.bf16.gmra.mrb[0].mxu0 %v315
    %v803 = vpop.f32.mrb[0].mxu0
    %v804 = vadd.f32 0.0, %v803
    %v805 = vpop.f32.mrb[0].mxu0
    %v806 = vadd.f32 0.0, %v805
    %v807 = vpop.f32.mrb[0].mxu0
    %v808 = vadd.f32 0.0, %v807
    %v809 = vpop.f32.mrb[0].mxu0
    %v810 = vadd.f32 0.0, %v809
    %811 = vmatprep.mubr.bf16.mxu0 0
    %812 = vmatmul.mubr.bf16.gmra.mrb[0].mxu0 %v318
    %v813 = vpop.f32.mrb[0].mxu0
    %v814 = vadd.f32 0.0, %v813
    %v815 = vpop.f32.mrb[0].mxu0
    %v816 = vadd.f32 0.0, %v815
    %v817 = vpop.f32.mrb[0].mxu0
    %v818 = vadd.f32 0.0, %v817
    %v819 = vpop.f32.mrb[0].mxu0
    %v820 = vadd.f32 0.0, %v819
    %821 = vmatprep.mubr.bf16.mxu0 0
    %822 = vmatmul.mubr.bf16.gmra.mrb[0].mxu0 %v321
    %v823 = vpop.f32.mrb[0].mxu0
    %v824 = vadd.f32 0.0, %v823
    %v825 = vpop.f32.mrb[0].mxu0
    %v826 = vadd.f32 0.0, %v825
    %v827 = vpop.f32.mrb[0].mxu0
    %v828 = vadd.f32 0.0, %v827
    %v829 = vpop.f32.mrb[0].mxu0
    %v830 = vadd.f32 0.0, %v829
    %831 = vmatprep.mubr.bf16.mxu0 0
    %832 = vmatmul.mubr.bf16.gmra.mrb[0].mxu0 %v324
    %v833 = vpop.f32.mrb[0].mxu0
    %v834 = vadd.f32 0.0, %v833
    %v835 = vpop.f32.mrb[0].mxu0
    %v836 = vadd.f32 0.0, %v835
    %v837 = vpop.f32.mrb[0].mxu0
    %v838 = vadd.f32 0.0, %v837
    %v839 = vpop.f32.mrb[0].mxu0
    %v840 = vadd.f32 0.0, %v839
    %841 = vmatprep.mubr.bf16.mxu0 0
    %842 = vmatmul.mubr.bf16.gmra.mrb[0].mxu0 %v327
    %v843 = vpop.f32.mrb[0].mxu0
    %v844 = vadd.f32 0.0, %v843
    %v845 = vpop.f32.mrb[0].mxu0
    %v846 = vadd.f32 0.0, %v845
    %v847 = vpop.f32.mrb[0].mxu0
    %v848 = vadd.f32 0.0, %v847
    %v849 = vpop.f32.mrb[0].mxu0
    %v850 = vadd.f32 0.0, %v849
    %851 = vmatprep.mubr.bf16.mxu0 0
    %852 = vmatmul.mubr.bf16.gmra.mrb[0].mxu0 %v330
    %v853 = vpop.f32.mrb[0].mxu0
    %v854 = vadd.f32 0.0, %v853
    %v855 = vpop.f32.mrb[0].mxu0
    %v856 = vadd.f32 0.0, %v855
    %v857 = vpop.f32.mrb[0].mxu0
    %v858 = vadd.f32 0.0, %v857
    %v859 = vpop.f32.mrb[0].mxu0
    %v860 = vadd.f32 0.0, %v859
    %861 = vmatprep.mubr.bf16.mxu0 0
    %862 = vmatmul.mubr.bf16.gmra.mrb[0].mxu0 %v333
    %v863 = vpop.f32.mrb[0].mxu0
    %v864 = vadd.f32 0.0, %v863
    %v865 = vpop.f32.mrb[0].mxu0
    %v866 = vadd.f32 0.0, %v865
    %v867 = vpop.f32.mrb[0].mxu0
    %v868 = vadd.f32 0.0, %v867
    %v869 = vpop.f32.mrb[0].mxu0
    %v870 = vadd.f32 0.0, %v869
    %871 = vmatprep.mubr.bf16.mxu0 0
    %872 = vmatmul.mubr.bf16.gmra.mrb[0].mxu0 %v336
    %v873 = vpop.f32.mrb[0].mxu0
    %v874 = vadd.f32 0.0, %v873
    %v875 = vpop.f32.mrb[0].mxu0
    %v876 = vadd.f32 0.0, %v875
    %v877 = vpop.f32.mrb[0].mxu0
    %v878 = vadd.f32 0.0, %v877
    %v879 = vpop.f32.mrb[0].mxu0
    %v880 = vadd.f32 0.0, %v879
    %881 = vmatprep.mubr.bf16.mxu0 0
    %882 = vmatmul.mubr.bf16.gmra.mrb[0].mxu0 %v339
    %v883 = vpop.f32.mrb[0].mxu0
    %v884 = vadd.f32 0.0, %v883
    %v885 = vpop.f32.mrb[0].mxu0
    %v886 = vadd.f32 0.0, %v885
    %v887 = vpop.f32.mrb[0].mxu0
    %v888 = vadd.f32 0.0, %v887
    %v889 = vpop.f32.mrb[0].mxu0
    %v890 = vadd.f32 0.0, %v889
    %891 = vmatprep.mubr.bf16.mxu0 0
    %892 = vmatmul.mubr.bf16.gmra.mrb[0].mxu0 %v342
    %v893 = vpop.f32.mrb[0].mxu0
    %v894 = vadd.f32 0.0, %v893
    %v895 = vpop.f32.mrb[0].mxu0
    %v896 = vadd.f32 0.0, %v895
    %v897 = vpop.f32.mrb[0].mxu0
    %v898 = vadd.f32 0.0, %v897
    %v899 = vpop.f32.mrb[0].mxu0
    %v900 = vadd.f32 0.0, %v899
    %901 = vmatprep.mubr.bf16.mxu0 0
    %902 = vmatmul.mubr.bf16.gmra.mrb[0].mxu0 %v345
    %v903 = vpop.f32.mrb[0].mxu0
    %v904 = vadd.f32 0.0, %v903
    %v905 = vpop.f32.mrb[0].mxu0
    %v906 = vadd.f32 0.0, %v905
    %v907 = vpop.f32.mrb[0].mxu0
    %v908 = vadd.f32 0.0, %v907
    %v909 = vpop.f32.mrb[0].mxu0
    %v910 = vadd.f32 0.0, %v909
    %911 = vmatprep.mubr.bf16.mxu0 0
    %912 = vmatmul.mubr.bf16.gmra.mrb[0].mxu0 %v348
    %v913 = vpop.f32.mrb[0].mxu0
    %v914 = vadd.f32 0.0, %v913
    %v915 = vpop.f32.mrb[0].mxu0
    %v916 = vadd.f32 0.0, %v915
    %v917 = vpop.f32.mrb[0].mxu0
    %v918 = vadd.f32 0.0, %v917
    %v919 = vpop.f32.mrb[0].mxu0
    %v920 = vadd.f32 0.0, %v919
    %921 = vmatprep.mubr.bf16.mxu0 0
    %922 = vmatmul.mubr.bf16.gmra.mrb[0].mxu0 %v351
    %v923 = vpop.f32.mrb[0].mxu0
    %v924 = vadd.f32 0.0, %v923
    %v925 = vpop.f32.mrb[0].mxu0
    %v926 = vadd.f32 0.0, %v925
    %v927 = vpop.f32.mrb[0].mxu0
    %v928 = vadd.f32 0.0, %v927
    %v929 = vpop.f32.mrb[0].mxu0
    %v930 = vadd.f32 0.0, %v929
    %931 = vdwg.mxu0
    %932 = vmatprep.subr.bf16.mxu0 %v295
    %933 = vmatpush1.bf16.msra.mxu0 %v294
    %934 = vmatprep.subr.bf16.mxu0 0
    %935 = vmatpush1.bf16.msra.mxu0 0
    %936 = vmatprep.subr.bf16.mxu0 0
    %937 = vmatpush1.bf16.msra.mxu0 0
    %938 = vmatprep.subr.bf16.mxu0 0
    %939 = vmatpush1.bf16.msra.mxu0 0
    %940 = vmatprep.subr.bf16.mxu0 0
    %941 = vmatpush1.bf16.msra.mxu0 0
    %942 = vmatprep.subr.bf16.mxu0 0
    %943 = vmatpush1.bf16.msra.mxu0 0
    %944 = vmatprep.subr.bf16.mxu0 0
    %945 = vmatpush1.bf16.msra.mxu0 0
    %946 = vmatprep.subr.bf16.mxu0 0
    %947 = vmatpush1.bf16.msra.mxu0 0
    %948 = vmatprep.subr.bf16.mxu0 0
    %949 = vmatpush1.bf16.msra.mxu0 0
    %950 = vmatprep.subr.bf16.mxu0 0
    %951 = vmatpush1.bf16.msra.mxu0 0
    %952 = vmatprep.subr.bf16.mxu0 0
    %953 = vmatpush1.bf16.msra.mxu0 0
    %954 = vmatprep.subr.bf16.mxu0 0
    %955 = vmatpush1.bf16.msra.mxu0 0
    %956 = vmatprep.subr.bf16.mxu0 0
    %957 = vmatpush1.bf16.msra.mxu0 0
    %958 = vmatprep.subr.bf16.mxu0 0
    %959 = vmatpush1.bf16.msra.mxu0 0
    %960 = vmatprep.subr.bf16.mxu0 0
    %961 = vmatpush1.bf16.msra.mxu0 0
    %962 = vmatprep.subr.bf16.mxu0 0
    %963 = vmatpush1.bf16.msra.mxu0 0
    %964 = vmatprep.mubr.bf16.mxu0 0
    %965 = vmatmul.mubr.bf16.gmra.mrb[0].mxu0 %v306
    %v966 = vpop.f32.mrb[0].mxu0
    %v967 = vadd.f32 0.0, %v966
    %v968 = vpop.f32.mrb[0].mxu0
    %v969 = vadd.f32 0.0, %v968
    %v970 = vpop.f32.mrb[0].mxu0
    %v971 = vadd.f32 0.0, %v970
    %v972 = vpop.f32.mrb[0].mxu0
    %v973 = vadd.f32 0.0, %v972
    %974 = vmatprep.mubr.bf16.mxu0 0
    %975 = vmatmul.mubr.bf16.gmra.mrb[0].mxu0 %v309
    %v976 = vpop.f32.mrb[0].mxu0
    %v977 = vadd.f32 0.0, %v976
    %v978 = vpop.f32.mrb[0].mxu0
    %v979 = vadd.f32 0.0, %v978
    %v980 = vpop.f32.mrb[0].mxu0
    %v981 = vadd.f32 0.0, %v980
    %v982 = vpop.f32.mrb[0].mxu0
    %v983 = vadd.f32 0.0, %v982
    %984 = vmatprep.mubr.bf16.mxu0 0
    %985 = vmatmul.mubr.bf16.gmra.mrb[0].mxu0 %v312
    %v986 = vpop.f32.mrb[0].mxu0
    %v987 = vadd.f32 0.0, %v986
    %v988 = vpop.f32.mrb[0].mxu0
    %v989 = vadd.f32 0.0, %v988
    %v990 = vpop.f32.mrb[0].mxu0
    %v991 = vadd.f32 0.0, %v990
    %v992 = vpop.f32.mrb[0].mxu0
    %v993 = vadd.f32 0.0, %v992
    %994 = vmatprep.mubr.bf16.mxu0 0
    %995 = vmatmul.mubr.bf16.gmra.mrb[0].mxu0 %v315
    %v996 = vpop.f32.mrb[0].mxu0
    %v997 = vadd.f32 0.0, %v996
    %v998 = vpop.f32.mrb[0].mxu0
    %v999 = vadd.f32 0.0, %v998
    %v1000 = vpop.f32.mrb[0].mxu0
    %v1001 = vadd.f32 0.0, %v1000
    %v1002 = vpop.f32.mrb[0].mxu0
    %v1003 = vadd.f32 0.0, %v1002
    %1004 = vmatprep.mubr.bf16.mxu0 0
    %1005 = vmatmul.mubr.bf16.gmra.mrb[0].mxu0 %v318
    %v1006 = vpop.f32.mrb[0].mxu0
    %v1007 = vadd.f32 0.0, %v1006
    %v1008 = vpop.f32.mrb[0].mxu0
    %v1009 = vadd.f32 0.0, %v1008
    %v1010 = vpop.f32.mrb[0].mxu0
    %v1011 = vadd.f32 0.0, %v1010
    %v1012 = vpop.f32.mrb[0].mxu0
    %v1013 = vadd.f32 0.0, %v1012
    %1014 = vmatprep.mubr.bf16.mxu0 0
    %1015 = vmatmul.mubr.bf16.gmra.mrb[0].mxu0 %v321
    %v1016 = vpop.f32.mrb[0].mxu0
    %v1017 = vadd.f32 0.0, %v1016
    %v1018 = vpop.f32.mrb[0].mxu0
    %v1019 = vadd.f32 0.0, %v1018
    %v1020 = vpop.f32.mrb[0].mxu0
    %v1021 = vadd.f32 0.0, %v1020
    %v1022 = vpop.f32.mrb[0].mxu0
    %v1023 = vadd.f32 0.0, %v1022
    %1024 = vmatprep.mubr.bf16.mxu0 0
    %1025 = vmatmul.mubr.bf16.gmra.mrb[0].mxu0 %v324
    %v1026 = vpop.f32.mrb[0].mxu0
    %v1027 = vadd.f32 0.0, %v1026
    %v1028 = vpop.f32.mrb[0].mxu0
    %v1029 = vadd.f32 0.0, %v1028
    %v1030 = vpop.f32.mrb[0].mxu0
    %v1031 = vadd.f32 0.0, %v1030
    %v1032 = vpop.f32.mrb[0].mxu0
    %v1033 = vadd.f32 0.0, %v1032
    %1034 = vmatprep.mubr.bf16.mxu0 0
    %1035 = vmatmul.mubr.bf16.gmra.mrb[0].mxu0 %v327
    %v1036 = vpop.f32.mrb[0].mxu0
    %v1037 = vadd.f32 0.0, %v1036
    %v1038 = vpop.f32.mrb[0].mxu0
    %v1039 = vadd.f32 0.0, %v1038
    %v1040 = vpop.f32.mrb[0].mxu0
    %v1041 = vadd.f32 0.0, %v1040
    %v1042 = vpop.f32.mrb[0].mxu0
    %v1043 = vadd.f32 0.0, %v1042
    %1044 = vmatprep.mubr.bf16.mxu0 0
    %1045 = vmatmul.mubr.bf16.gmra.mrb[0].mxu0 %v330
    %v1046 = vpop.f32.mrb[0].mxu0
    %v1047 = vadd.f32 0.0, %v1046
    %v1048 = vpop.f32.mrb[0].mxu0
    %v1049 = vadd.f32 0.0, %v1048
    %v1050 = vpop.f32.mrb[0].mxu0
    %v1051 = vadd.f32 0.0, %v1050
    %v1052 = vpop.f32.mrb[0].mxu0
    %v1053 = vadd.f32 0.0, %v1052
    %1054 = vmatprep.mubr.bf16.mxu0 0
    %1055 = vmatmul.mubr.bf16.gmra.mrb[0].mxu0 %v333
    %v1056 = vpop.f32.mrb[0].mxu0
    %v1057 = vadd.f32 0.0, %v1056
    %v1058 = vpop.f32.mrb[0].mxu0
    %v1059 = vadd.f32 0.0, %v1058
    %v1060 = vpop.f32.mrb[0].mxu0
    %v1061 = vadd.f32 0.0, %v1060
    %v1062 = vpop.f32.mrb[0].mxu0
    %v1063 = vadd.f32 0.0, %v1062
    %1064 = vmatprep.mubr.bf16.mxu0 0
    %1065 = vmatmul.mubr.bf16.gmra.mrb[0].mxu0 %v336
    %v1066 = vpop.f32.mrb[0].mxu0
    %v1067 = vadd.f32 0.0, %v1066
    %v1068 = vpop.f32.mrb[0].mxu0
    %v1069 = vadd.f32 0.0, %v1068
    %v1070 = vpop.f32.mrb[0].mxu0
    %v1071 = vadd.f32 0.0, %v1070
    %v1072 = vpop.f32.mrb[0].mxu0
    %v1073 = vadd.f32 0.0, %v1072
    %1074 = vmatprep.mubr.bf16.mxu0 0
    %1075 = vmatmul.mubr.bf16.gmra.mrb[0].mxu0 %v339
    %v1076 = vpop.f32.mrb[0].mxu0
    %v1077 = vadd.f32 0.0, %v1076
    %v1078 = vpop.f32.mrb[0].mxu0
    %v1079 = vadd.f32 0.0, %v1078
    %v1080 = vpop.f32.mrb[0].mxu0
    %v1081 = vadd.f32 0.0, %v1080
    %v1082 = vpop.f32.mrb[0].mxu0
    %v1083 = vadd.f32 0.0, %v1082
    %1084 = vmatprep.mubr.bf16.mxu0 0
    %1085 = vmatmul.mubr.bf16.gmra.mrb[0].mxu0 %v342
    %v1086 = vpop.f32.mrb[0].mxu0
    %v1087 = vadd.f32 0.0, %v1086
    %v1088 = vpop.f32.mrb[0].mxu0
    %v1089 = vadd.f32 0.0, %v1088
    %v1090 = vpop.f32.mrb[0].mxu0
    %v1091 = vadd.f32 0.0, %v1090
    %v1092 = vpop.f32.mrb[0].mxu0
    %v1093 = vadd.f32 0.0, %v1092
    %1094 = vmatprep.mubr.bf16.mxu0 0
    %1095 = vmatmul.mubr.bf16.gmra.mrb[0].mxu0 %v345
    %v1096 = vpop.f32.mrb[0].mxu0
    %v1097 = vadd.f32 0.0, %v1096
    %v1098 = vpop.f32.mrb[0].mxu0
    %v1099 = vadd.f32 0.0, %v1098
    %v1100 = vpop.f32.mrb[0].mxu0
    %v1101 = vadd.f32 0.0, %v1100
    %v1102 = vpop.f32.mrb[0].mxu0
    %v1103 = vadd.f32 0.0, %v1102
    %1104 = vmatprep.mubr.bf16.mxu0 0
    %1105 = vmatmul.mubr.bf16.gmra.mrb[0].mxu0 %v348
    %v1106 = vpop.f32.mrb[0].mxu0
    %v1107 = vadd.f32 0.0, %v1106
    %v1108 = vpop.f32.mrb[0].mxu0
    %v1109 = vadd.f32 0.0, %v1108
    %v1110 = vpop.f32.mrb[0].mxu0
    %v1111 = vadd.f32 0.0, %v1110
    %v1112 = vpop.f32.mrb[0].mxu0
    %v1113 = vadd.f32 0.0, %v1112
    %1114 = vmatprep.mubr.bf16.mxu0 0
    %1115 = vmatmul.mubr.bf16.gmra.mrb[0].mxu0 %v351
    %v1116 = vpop.f32.mrb[0].mxu0
    %v1117 = vadd.f32 0.0, %v1116
    %v1118 = vpop.f32.mrb[0].mxu0
    %v1119 = vadd.f32 0.0, %v1118
    %v1120 = vpop.f32.mrb[0].mxu0
    %v1121 = vadd.f32 0.0, %v1120
    %v1122 = vpop.f32.mrb[0].mxu0
    %v1123 = vadd.f32 0.0, %v1122
    %1124 = vdwg.mxu0
    %v1125 = vpack.c.bf16 %v392, %v388
    %v1126 = vpack.c.bf16 %v394, %v390
    %v1127 = vpack.c.bf16 %v585, %v581
    %v1128 = vpack.c.bf16 %v587, %v583
    %v1129 = vpack.c.bf16 %v778, %v774
    %v1130 = vpack.c.bf16 %v780, %v776
    %v1131 = vpack.c.bf16 %v971, %v967
    %v1132 = vpack.c.bf16 %v973, %v969
    %v1133 = vpack.c.bf16 %v402, %v398
    %v1134 = vpack.c.bf16 %v404, %v400
    %v1135 = vpack.c.bf16 %v595, %v591
    %v1136 = vpack.c.bf16 %v597, %v593
    %v1137 = vpack.c.bf16 %v788, %v784
    %v1138 = vpack.c.bf16 %v790, %v786
    %v1139 = vpack.c.bf16 %v981, %v977
    %v1140 = vpack.c.bf16 %v983, %v979
    %v1141 = vpack.c.bf16 %v412, %v408
    %v1142 = vpack.c.bf16 %v414, %v410
    %v1143 = vpack.c.bf16 %v605, %v601
    %v1144 = vpack.c.bf16 %v607, %v603
    %v1145 = vpack.c.bf16 %v798, %v794
    %v1146 = vpack.c.bf16 %v800, %v796
    %v1147 = vpack.c.bf16 %v991, %v987
    %v1148 = vpack.c.bf16 %v993, %v989
    %v1149 = vpack.c.bf16 %v422, %v418
    %v1150 = vpack.c.bf16 %v424, %v420
    %v1151 = vpack.c.bf16 %v615, %v611
    %v1152 = vpack.c.bf16 %v617, %v613
    %v1153 = vpack.c.bf16 %v808, %v804
    %v1154 = vpack.c.bf16 %v810, %v806
    %v1155 = vpack.c.bf16 %v1001, %v997
    %v1156 = vpack.c.bf16 %v1003, %v999
    %v1157 = vpack.c.bf16 %v432, %v428
    %v1158 = vpack.c.bf16 %v434, %v430
    %v1159 = vpack.c.bf16 %v625, %v621
    %v1160 = vpack.c.bf16 %v627, %v623
    %v1161 = vpack.c.bf16 %v818, %v814
    %v1162 = vpack.c.bf16 %v820, %v816
    %v1163 = vpack.c.bf16 %v1011, %v1007
    %v1164 = vpack.c.bf16 %v1013, %v1009
    %v1165 = vpack.c.bf16 %v442, %v438
    %v1166 = vpack.c.bf16 %v444, %v440
    %v1167 = vpack.c.bf16 %v635, %v631
    %v1168 = vpack.c.bf16 %v637, %v633
    %v1169 = vpack.c.bf16 %v828, %v824
    %v1170 = vpack.c.bf16 %v830, %v826
    %v1171 = vpack.c.bf16 %v1021, %v1017
    %v1172 = vpack.c.bf16 %v1023, %v1019
    %v1173 = vpack.c.bf16 %v452, %v448
    %v1174 = vpack.c.bf16 %v454, %v450
    %v1175 = vpack.c.bf16 %v645, %v641
    %v1176 = vpack.c.bf16 %v647, %v643
    %v1177 = vpack.c.bf16 %v838, %v834
    %v1178 = vpack.c.bf16 %v840, %v836
    %v1179 = vpack.c.bf16 %v1031, %v1027
    %v1180 = vpack.c.bf16 %v1033, %v1029
    %v1181 = vpack.c.bf16 %v462, %v458
    %v1182 = vpack.c.bf16 %v464, %v460
    %v1183 = vpack.c.bf16 %v655, %v651
    %v1184 = vpack.c.bf16 %v657, %v653
    %v1185 = vpack.c.bf16 %v848, %v844
    %v1186 = vpack.c.bf16 %v850, %v846
    %v1187 = vpack.c.bf16 %v1041, %v1037
    %v1188 = vpack.c.bf16 %v1043, %v1039
    %v1189 = vpack.c.bf16 %v472, %v468
    %v1190 = vpack.c.bf16 %v474, %v470
    %v1191 = vpack.c.bf16 %v665, %v661
    %v1192 = vpack.c.bf16 %v667, %v663
    %v1193 = vpack.c.bf16 %v858, %v854
    %v1194 = vpack.c.bf16 %v860, %v856
    %v1195 = vpack.c.bf16 %v1051, %v1047
    %v1196 = vpack.c.bf16 %v1053, %v1049
    %v1197 = vpack.c.bf16 %v482, %v478
    %v1198 = vpack.c.bf16 %v484, %v480
    %v1199 = vpack.c.bf16 %v675, %v671
    %v1200 = vpack.c.bf16 %v677, %v673
    %v1201 = vpack.c.bf16 %v868, %v864
    %v1202 = vpack.c.bf16 %v870, %v866
    %v1203 = vpack.c.bf16 %v1061, %v1057
    %v1204 = vpack.c.bf16 %v1063, %v1059
    %v1205 = vpack.c.bf16 %v492, %v488
    %v1206 = vpack.c.bf16 %v494, %v490
    %v1207 = vpack.c.bf16 %v685, %v681
    %v1208 = vpack.c.bf16 %v687, %v683
    %v1209 = vpack.c.bf16 %v878, %v874
    %v1210 = vpack.c.bf16 %v880, %v876
    %v1211 = vpack.c.bf16 %v1071, %v1067
    %v1212 = vpack.c.bf16 %v1073, %v1069
    %v1213 = vpack.c.bf16 %v502, %v498
    %v1214 = vpack.c.bf16 %v504, %v500
    %v1215 = vpack.c.bf16 %v695, %v691
    %v1216 = vpack.c.bf16 %v697, %v693
    %v1217 = vpack.c.bf16 %v888, %v884
    %v1218 = vpack.c.bf16 %v890, %v886
    %v1219 = vpack.c.bf16 %v1081, %v1077
    %v1220 = vpack.c.bf16 %v1083, %v1079
    %v1221 = vpack.c.bf16 %v512, %v508
    %v1222 = vpack.c.bf16 %v514, %v510
    %v1223 = vpack.c.bf16 %v705, %v701
    %v1224 = vpack.c.bf16 %v707, %v703
    %v1225 = vpack.c.bf16 %v898, %v894
    %v1226 = vpack.c.bf16 %v900, %v896
    %v1227 = vpack.c.bf16 %v1091, %v1087
    %v1228 = vpack.c.bf16 %v1093, %v1089
    %v1229 = vpack.c.bf16 %v522, %v518
    %v1230 = vpack.c.bf16 %v524, %v520
    %v1231 = vpack.c.bf16 %v715, %v711
    %v1232 = vpack.c.bf16 %v717, %v713
    %v1233 = vpack.c.bf16 %v908, %v904
    %v1234 = vpack.c.bf16 %v910, %v906
    %v1235 = vpack.c.bf16 %v1101, %v1097
    %v1236 = vpack.c.bf16 %v1103, %v1099
    %v1237 = vpack.c.bf16 %v532, %v528
    %v1238 = vpack.c.bf16 %v534, %v530
    %v1239 = vpack.c.bf16 %v725, %v721
    %v1240 = vpack.c.bf16 %v727, %v723
    %v1241 = vpack.c.bf16 %v918, %v914
    %v1242 = vpack.c.bf16 %v920, %v916
    %v1243 = vpack.c.bf16 %v1111, %v1107
    %v1244 = vpack.c.bf16 %v1113, %v1109
    %v1245 = vpack.c.bf16 %v542, %v538
    %v1246 = vpack.c.bf16 %v544, %v540
    %v1247 = vpack.c.bf16 %v735, %v731
    %v1248 = vpack.c.bf16 %v737, %v733
    %v1249 = vpack.c.bf16 %v928, %v924
    %v1250 = vpack.c.bf16 %v930, %v926
    %v1251 = vpack.c.bf16 %v1121, %v1117
    %v1252 = vpack.c.bf16 %v1123, %v1119
    %v1253 = vld [vmem:[#allocation8] sm:$0xf]
    %v1254 = vld [vmem:[#allocation8 + $0x4] sm:$0xf]
    %v1255 = vld [vmem:[#allocation8 + $0x8] sm:$0xf]
    %v1256 = vld [vmem:[#allocation8 + $0xc] sm:$0xf]
    %v1257 = vld [vmem:[#allocation8 + $0x10] sm:$0xf]
    %v1258 = vld [vmem:[#allocation8 + $0x14] sm:$0xf]
    %v1259 = vld [vmem:[#allocation8 + $0x18] sm:$0xf]
    %v1260 = vld [vmem:[#allocation8 + $0x1c] sm:$0xf]
    %v1261 = vld [vmem:[#allocation8 + $0x20] sm:$0xf]
    %v1262 = vld [vmem:[#allocation8 + $0x24] sm:$0xf]
    %v1263 = vld [vmem:[#allocation8 + $0x28] sm:$0xf]
    %v1264 = vld [vmem:[#allocation8 + $0x2c] sm:$0xf]
    %v1265 = vld [vmem:[#allocation8 + $0x30] sm:$0xf]
    %v1266 = vld [vmem:[#allocation8 + $0x34] sm:$0xf]
    %v1267 = vld [vmem:[#allocation8 + $0x38] sm:$0xf]
    %v1268 = vld [vmem:[#allocation8 + $0x3c] sm:$0xf]
    %v1269 = vld [vmem:[#allocation8 + $0x40] sm:$0xf]
    %v1270 = vld [vmem:[#allocation8 + $0x44] sm:$0xf]
    %v1271 = vld [vmem:[#allocation8 + $0x48] sm:$0xf]
    %v1272 = vld [vmem:[#allocation8 + $0x4c] sm:$0xf]
    %v1273 = vld [vmem:[#allocation8 + $0x50] sm:$0xf]
    %v1274 = vld [vmem:[#allocation8 + $0x54] sm:$0xf]
    %v1275 = vld [vmem:[#allocation8 + $0x58] sm:$0xf]
    %v1276 = vld [vmem:[#allocation8 + $0x5c] sm:$0xf]
    %v1277 = vld [vmem:[#allocation8 + $0x60] sm:$0xf]
    %v1278 = vld [vmem:[#allocation8 + $0x64] sm:$0xf]
    %v1279 = vld [vmem:[#allocation8 + $0x68] sm:$0xf]
    %v1280 = vld [vmem:[#allocation8 + $0x6c] sm:$0xf]
    %v1281 = vld [vmem:[#allocation8 + $0x70] sm:$0xf]
    %v1282 = vld [vmem:[#allocation8 + $0x74] sm:$0xf]
    %v1283 = vld [vmem:[#allocation8 + $0x78] sm:$0xf]
    %v1284 = vld [vmem:[#allocation8 + $0x7c] sm:$0xf]
    %1286 = vset.pattern.permute.xlu0 0
    %1287 = vperm.xlu0 %1286, %v1253
    %v1288 = vpop.permute.xlu0 %1287
    %v1291 = vunpack.c.l.s4 839922192
    %v1292 = vunpack.c.0.s8 %v1291
    %v1293 = vlaneseq
    %v1294 = vshrl.u32 %v1293, 7
    %v1295 = vsub.s32 %v1292, %v1294
    %v1296 = vrot.slane %v1288, %v1295
    %1298 = vset.pattern.permute.xlu0 0
    %1299 = vperm.xlu0 %1298, %v1254
    %v1300 = vpop.permute.xlu0 %1299
    %v1303 = vunpack.c.l.s4 839922192
    %v1304 = vunpack.c.0.s8 %v1303
    %v1305 = vlaneseq
    %v1306 = vshrl.u32 %v1305, 7
    %v1307 = vsub.s32 %v1304, %v1306
    %v1308 = vrot.slane %v1300, %v1307
    %1310 = vset.pattern.permute.xlu0 0
    %1311 = vperm.xlu0 %1310, %v1255
    %v1312 = vpop.permute.xlu0 %1311
    %v1315 = vunpack.c.l.s4 839922192
    %v1316 = vunpack.c.0.s8 %v1315
    %v1317 = vlaneseq
    %v1318 = vshrl.u32 %v1317, 7
    %v1319 = vsub.s32 %v1316, %v1318
    %v1320 = vrot.slane %v1312, %v1319
    %1322 = vset.pattern.permute.xlu0 0
    %1323 = vperm.xlu0 %1322, %v1256
    %v1324 = vpop.permute.xlu0 %1323
    %v1327 = vunpack.c.l.s4 839922192
    %v1328 = vunpack.c.0.s8 %v1327
    %v1329 = vlaneseq
    %v1330 = vshrl.u32 %v1329, 7
    %v1331 = vsub.s32 %v1328, %v1330
    %v1332 = vrot.slane %v1324, %v1331
    %1334 = vset.pattern.permute.xlu0 0
    %1335 = vperm.xlu0 %1334, %v1257
    %v1336 = vpop.permute.xlu0 %1335
    %v1339 = vunpack.c.l.s4 839922192
    %v1340 = vunpack.c.0.s8 %v1339
    %v1341 = vlaneseq
    %v1342 = vshrl.u32 %v1341, 7
    %v1343 = vsub.s32 %v1340, %v1342
    %v1344 = vrot.slane %v1336, %v1343
    %1346 = vset.pattern.permute.xlu0 0
    %1347 = vperm.xlu0 %1346, %v1258
    %v1348 = vpop.permute.xlu0 %1347
    %v1351 = vunpack.c.l.s4 839922192
    %v1352 = vunpack.c.0.s8 %v1351
    %v1353 = vlaneseq
    %v1354 = vshrl.u32 %v1353, 7
    %v1355 = vsub.s32 %v1352, %v1354
    %v1356 = vrot.slane %v1348, %v1355
    %1358 = vset.pattern.permute.xlu0 0
    %1359 = vperm.xlu0 %1358, %v1259
    %v1360 = vpop.permute.xlu0 %1359
    %v1363 = vunpack.c.l.s4 839922192
    %v1364 = vunpack.c.0.s8 %v1363
    %v1365 = vlaneseq
    %v1366 = vshrl.u32 %v1365, 7
    %v1367 = vsub.s32 %v1364, %v1366
    %v1368 = vrot.slane %v1360, %v1367
    %1370 = vset.pattern.permute.xlu0 0
    %1371 = vperm.xlu0 %1370, %v1260
    %v1372 = vpop.permute.xlu0 %1371
    %v1375 = vunpack.c.l.s4 839922192
    %v1376 = vunpack.c.0.s8 %v1375
    %v1377 = vlaneseq
    %v1378 = vshrl.u32 %v1377, 7
    %v1379 = vsub.s32 %v1376, %v1378
    %v1380 = vrot.slane %v1372, %v1379
    %1382 = vset.pattern.permute.xlu0 0
    %1383 = vperm.xlu0 %1382, %v1261
    %v1384 = vpop.permute.xlu0 %1383
    %v1387 = vunpack.c.l.s4 839922192
    %v1388 = vunpack.c.0.s8 %v1387
    %v1389 = vlaneseq
    %v1390 = vshrl.u32 %v1389, 7
    %v1391 = vsub.s32 %v1388, %v1390
    %v1392 = vrot.slane %v1384, %v1391
    %1394 = vset.pattern.permute.xlu0 0
    %1395 = vperm.xlu0 %1394, %v1262
    %v1396 = vpop.permute.xlu0 %1395
    %v1399 = vunpack.c.l.s4 839922192
    %v1400 = vunpack.c.0.s8 %v1399
    %v1401 = vlaneseq
    %v1402 = vshrl.u32 %v1401, 7
    %v1403 = vsub.s32 %v1400, %v1402
    %v1404 = vrot.slane %v1396, %v1403
    %1406 = vset.pattern.permute.xlu0 0
    %1407 = vperm.xlu0 %1406, %v1263
    %v1408 = vpop.permute.xlu0 %1407
    %v1411 = vunpack.c.l.s4 839922192
    %v1412 = vunpack.c.0.s8 %v1411
    %v1413 = vlaneseq
    %v1414 = vshrl.u32 %v1413, 7
    %v1415 = vsub.s32 %v1412, %v1414
    %v1416 = vrot.slane %v1408, %v1415
    %1418 = vset.pattern.permute.xlu0 0
    %1419 = vperm.xlu0 %1418, %v1264
    %v1420 = vpop.permute.xlu0 %1419
    %v1423 = vunpack.c.l.s4 839922192
    %v1424 = vunpack.c.0.s8 %v1423
    %v1425 = vlaneseq
    %v1426 = vshrl.u32 %v1425, 7
    %v1427 = vsub.s32 %v1424, %v1426
    %v1428 = vrot.slane %v1420, %v1427
    %1430 = vset.pattern.permute.xlu0 0
    %1431 = vperm.xlu0 %1430, %v1265
    %v1432 = vpop.permute.xlu0 %1431
    %v1435 = vunpack.c.l.s4 839922192
    %v1436 = vunpack.c.0.s8 %v1435
    %v1437 = vlaneseq
    %v1438 = vshrl.u32 %v1437, 7
    %v1439 = vsub.s32 %v1436, %v1438
    %v1440 = vrot.slane %v1432, %v1439
    %1442 = vset.pattern.permute.xlu0 0
    %1443 = vperm.xlu0 %1442, %v1266
    %v1444 = vpop.permute.xlu0 %1443
    %v1447 = vunpack.c.l.s4 839922192
    %v1448 = vunpack.c.0.s8 %v1447
    %v1449 = vlaneseq
    %v1450 = vshrl.u32 %v1449, 7
    %v1451 = vsub.s32 %v1448, %v1450
    %v1452 = vrot.slane %v1444, %v1451
    %1454 = vset.pattern.permute.xlu0 0
    %1455 = vperm.xlu0 %1454, %v1267
    %v1456 = vpop.permute.xlu0 %1455
    %v1459 = vunpack.c.l.s4 839922192
    %v1460 = vunpack.c.0.s8 %v1459
    %v1461 = vlaneseq
    %v1462 = vshrl.u32 %v1461, 7
    %v1463 = vsub.s32 %v1460, %v1462
    %v1464 = vrot.slane %v1456, %v1463
    %1466 = vset.pattern.permute.xlu0 0
    %1467 = vperm.xlu0 %1466, %v1268
    %v1468 = vpop.permute.xlu0 %1467
    %v1471 = vunpack.c.l.s4 839922192
    %v1472 = vunpack.c.0.s8 %v1471
    %v1473 = vlaneseq
    %v1474 = vshrl.u32 %v1473, 7
    %v1475 = vsub.s32 %v1472, %v1474
    %v1476 = vrot.slane %v1468, %v1475
    %1478 = vset.pattern.permute.xlu0 0
    %1479 = vperm.xlu0 %1478, %v1269
    %v1480 = vpop.permute.xlu0 %1479
    %v1483 = vunpack.c.l.s4 839922192
    %v1484 = vunpack.c.0.s8 %v1483
    %v1485 = vlaneseq
    %v1486 = vshrl.u32 %v1485, 7
    %v1487 = vsub.s32 %v1484, %v1486
    %v1488 = vrot.slane %v1480, %v1487
    %1490 = vset.pattern.permute.xlu0 0
    %1491 = vperm.xlu0 %1490, %v1270
    %v1492 = vpop.permute.xlu0 %1491
    %v1495 = vunpack.c.l.s4 839922192
    %v1496 = vunpack.c.0.s8 %v1495
    %v1497 = vlaneseq
    %v1498 = vshrl.u32 %v1497, 7
    %v1499 = vsub.s32 %v1496, %v1498
    %v1500 = vrot.slane %v1492, %v1499
    %1502 = vset.pattern.permute.xlu0 0
    %1503 = vperm.xlu0 %1502, %v1271
    %v1504 = vpop.permute.xlu0 %1503
    %v1507 = vunpack.c.l.s4 839922192
    %v1508 = vunpack.c.0.s8 %v1507
    %v1509 = vlaneseq
    %v1510 = vshrl.u32 %v1509, 7
    %v1511 = vsub.s32 %v1508, %v1510
    %v1512 = vrot.slane %v1504, %v1511
    %1514 = vset.pattern.permute.xlu0 0
    %1515 = vperm.xlu0 %1514, %v1272
    %v1516 = vpop.permute.xlu0 %1515
    %v1519 = vunpack.c.l.s4 839922192
    %v1520 = vunpack.c.0.s8 %v1519
    %v1521 = vlaneseq
    %v1522 = vshrl.u32 %v1521, 7
    %v1523 = vsub.s32 %v1520, %v1522
    %v1524 = vrot.slane %v1516, %v1523
    %1526 = vset.pattern.permute.xlu0 0
    %1527 = vperm.xlu0 %1526, %v1273
    %v1528 = vpop.permute.xlu0 %1527
    %v1531 = vunpack.c.l.s4 839922192
    %v1532 = vunpack.c.0.s8 %v1531
    %v1533 = vlaneseq
    %v1534 = vshrl.u32 %v1533, 7
    %v1535 = vsub.s32 %v1532, %v1534
    %v1536 = vrot.slane %v1528, %v1535
    %1538 = vset.pattern.permute.xlu0 0
    %1539 = vperm.xlu0 %1538, %v1274
    %v1540 = vpop.permute.xlu0 %1539
    %v1543 = vunpack.c.l.s4 839922192
    %v1544 = vunpack.c.0.s8 %v1543
    %v1545 = vlaneseq
    %v1546 = vshrl.u32 %v1545, 7
    %v1547 = vsub.s32 %v1544, %v1546
    %v1548 = vrot.slane %v1540, %v1547
    %1550 = vset.pattern.permute.xlu0 0
    %1551 = vperm.xlu0 %1550, %v1275
    %v1552 = vpop.permute.xlu0 %1551
    %v1555 = vunpack.c.l.s4 839922192
    %v1556 = vunpack.c.0.s8 %v1555
    %v1557 = vlaneseq
    %v1558 = vshrl.u32 %v1557, 7
    %v1559 = vsub.s32 %v1556, %v1558
    %v1560 = vrot.slane %v1552, %v1559
    %1562 = vset.pattern.permute.xlu0 0
    %1563 = vperm.xlu0 %1562, %v1276
    %v1564 = vpop.permute.xlu0 %1563
    %v1567 = vunpack.c.l.s4 839922192
    %v1568 = vunpack.c.0.s8 %v1567
    %v1569 = vlaneseq
    %v1570 = vshrl.u32 %v1569, 7
    %v1571 = vsub.s32 %v1568, %v1570
    %v1572 = vrot.slane %v1564, %v1571
    %1574 = vset.pattern.permute.xlu0 0
    %1575 = vperm.xlu0 %1574, %v1277
    %v1576 = vpop.permute.xlu0 %1575
    %v1579 = vunpack.c.l.s4 839922192
    %v1580 = vunpack.c.0.s8 %v1579
    %v1581 = vlaneseq
    %v1582 = vshrl.u32 %v1581, 7
    %v1583 = vsub.s32 %v1580, %v1582
    %v1584 = vrot.slane %v1576, %v1583
    %1586 = vset.pattern.permute.xlu0 0
    %1587 = vperm.xlu0 %1586, %v1278
    %v1588 = vpop.permute.xlu0 %1587
    %v1591 = vunpack.c.l.s4 839922192
    %v1592 = vunpack.c.0.s8 %v1591
    %v1593 = vlaneseq
    %v1594 = vshrl.u32 %v1593, 7
    %v1595 = vsub.s32 %v1592, %v1594
    %v1596 = vrot.slane %v1588, %v1595
    %1598 = vset.pattern.permute.xlu0 0
    %1599 = vperm.xlu0 %1598, %v1279
    %v1600 = vpop.permute.xlu0 %1599
    %v1603 = vunpack.c.l.s4 839922192
    %v1604 = vunpack.c.0.s8 %v1603
    %v1605 = vlaneseq
    %v1606 = vshrl.u32 %v1605, 7
    %v1607 = vsub.s32 %v1604, %v1606
    %v1608 = vrot.slane %v1600, %v1607
    %1610 = vset.pattern.permute.xlu0 0
    %1611 = vperm.xlu0 %1610, %v1280
    %v1612 = vpop.permute.xlu0 %1611
    %v1615 = vunpack.c.l.s4 839922192
    %v1616 = vunpack.c.0.s8 %v1615
    %v1617 = vlaneseq
    %v1618 = vshrl.u32 %v1617, 7
    %v1619 = vsub.s32 %v1616, %v1618
    %v1620 = vrot.slane %v1612, %v1619
    %1622 = vset.pattern.permute.xlu0 0
    %1623 = vperm.xlu0 %1622, %v1281
    %v1624 = vpop.permute.xlu0 %1623
    %v1627 = vunpack.c.l.s4 839922192
    %v1628 = vunpack.c.0.s8 %v1627
    %v1629 = vlaneseq
    %v1630 = vshrl.u32 %v1629, 7
    %v1631 = vsub.s32 %v1628, %v1630
    %v1632 = vrot.slane %v1624, %v1631
    %1634 = vset.pattern.permute.xlu0 0
    %1635 = vperm.xlu0 %1634, %v1282
    %v1636 = vpop.permute.xlu0 %1635
    %v1639 = vunpack.c.l.s4 839922192
    %v1640 = vunpack.c.0.s8 %v1639
    %v1641 = vlaneseq
    %v1642 = vshrl.u32 %v1641, 7
    %v1643 = vsub.s32 %v1640, %v1642
    %v1644 = vrot.slane %v1636, %v1643
    %1646 = vset.pattern.permute.xlu0 0
    %1647 = vperm.xlu0 %1646, %v1283
    %v1648 = vpop.permute.xlu0 %1647
    %v1651 = vunpack.c.l.s4 839922192
    %v1652 = vunpack.c.0.s8 %v1651
    %v1653 = vlaneseq
    %v1654 = vshrl.u32 %v1653, 7
    %v1655 = vsub.s32 %v1652, %v1654
    %v1656 = vrot.slane %v1648, %v1655
    %1658 = vset.pattern.permute.xlu0 0
    %1659 = vperm.xlu0 %1658, %v1284
    %v1660 = vpop.permute.xlu0 %1659
    %v1663 = vunpack.c.l.s4 839922192
    %v1664 = vunpack.c.0.s8 %v1663
    %v1665 = vlaneseq
    %v1666 = vshrl.u32 %v1665, 7
    %v1667 = vsub.s32 %v1664, %v1666
    %v1668 = vrot.slane %v1660, %v1667
    %v1701 = vunpack.c.l.b16 %v1296
    %v1702 = vunpack.c.l.b16 %v1308
    %v1703 = vunpack.c.l.b16 %v1320
    %v1704 = vunpack.c.l.b16 %v1332
    %v1705 = vunpack.c.l.b16 %v1344
    %v1706 = vunpack.c.l.b16 %v1356
    %v1707 = vunpack.c.l.b16 %v1368
    %v1708 = vunpack.c.l.b16 %v1380
    %v1709 = vunpack.c.l.b16 %v1392
    %v1710 = vunpack.c.l.b16 %v1404
    %v1711 = vunpack.c.l.b16 %v1416
    %v1712 = vunpack.c.l.b16 %v1428
    %v1713 = vunpack.c.l.b16 %v1440
    %v1714 = vunpack.c.l.b16 %v1452
    %v1715 = vunpack.c.l.b16 %v1464
    %v1716 = vunpack.c.l.b16 %v1476
    %v1717 = vunpack.c.l.b16 %v1488
    %v1718 = vunpack.c.l.b16 %v1500
    %v1719 = vunpack.c.l.b16 %v1512
    %v1720 = vunpack.c.l.b16 %v1524
    %v1721 = vunpack.c.l.b16 %v1536
    %v1722 = vunpack.c.l.b16 %v1548
    %v1723 = vunpack.c.l.b16 %v1560
    %v1724 = vunpack.c.l.b16 %v1572
    %v1725 = vunpack.c.l.b16 %v1584
    %v1726 = vunpack.c.l.b16 %v1596
    %v1727 = vunpack.c.l.b16 %v1608
    %v1728 = vunpack.c.l.b16 %v1620
    %v1729 = vunpack.c.l.b16 %v1632
    %v1730 = vunpack.c.l.b16 %v1644
    %v1731 = vunpack.c.l.b16 %v1656
    %v1732 = vunpack.c.l.b16 %v1668
    %v1733 = vpack.c.b16 %v1702, %v1701
    %v1734 = vpack.c.b16 %v1704, %v1703
    %v1735 = vpack.c.b16 %v1706, %v1705
    %v1736 = vpack.c.b16 %v1708, %v1707
    %v1737 = vpack.c.b16 %v1710, %v1709
    %v1738 = vpack.c.b16 %v1712, %v1711
    %v1739 = vpack.c.b16 %v1714, %v1713
    %v1740 = vpack.c.b16 %v1716, %v1715
    %v1741 = vpack.c.b16 %v1718, %v1717
    %v1742 = vpack.c.b16 %v1720, %v1719
    %v1743 = vpack.c.b16 %v1722, %v1721
    %v1744 = vpack.c.b16 %v1724, %v1723
    %v1745 = vpack.c.b16 %v1726, %v1725
    %v1746 = vpack.c.b16 %v1728, %v1727
    %v1747 = vpack.c.b16 %v1730, %v1729
    %v1748 = vpack.c.b16 %v1732, %v1731
    %v1765 = vadd.bf16 %v1125, %v1733
    %v1766 = vadd.bf16 %v1126, %v1733
    %v1767 = vadd.bf16 %v1127, %v1733
    %v1768 = vadd.bf16 %v1128, %v1733
    %v1769 = vadd.bf16 %v1129, %v1733
    %v1770 = vadd.bf16 %v1130, %v1733
    %v1771 = vadd.bf16 %v1131, %v1733
    %v1772 = vadd.bf16 %v1132, %v1733
    %v1773 = vadd.bf16 %v1133, %v1734
    %v1774 = vadd.bf16 %v1134, %v1734
    %v1775 = vadd.bf16 %v1135, %v1734
    %v1776 = vadd.bf16 %v1136, %v1734
    %v1777 = vadd.bf16 %v1137, %v1734
    %v1778 = vadd.bf16 %v1138, %v1734
    %v1779 = vadd.bf16 %v1139, %v1734
    %v1780 = vadd.bf16 %v1140, %v1734
    %v1781 = vadd.bf16 %v1141, %v1735
    %v1782 = vadd.bf16 %v1142, %v1735
    %v1783 = vadd.bf16 %v1143, %v1735
    %v1784 = vadd.bf16 %v1144, %v1735
    %v1785 = vadd.bf16 %v1145, %v1735
    %v1786 = vadd.bf16 %v1146, %v1735
    %v1787 = vadd.bf16 %v1147, %v1735
    %v1788 = vadd.bf16 %v1148, %v1735
    %v1789 = vadd.bf16 %v1149, %v1736
    %v1790 = vadd.bf16 %v1150, %v1736
    %v1791 = vadd.bf16 %v1151, %v1736
    %v1792 = vadd.bf16 %v1152, %v1736
    %v1793 = vadd.bf16 %v1153, %v1736
    %v1794 = vadd.bf16 %v1154, %v1736
    %v1795 = vadd.bf16 %v1155, %v1736
    %v1796 = vadd.bf16 %v1156, %v1736
    %v1797 = vadd.bf16 %v1157, %v1737
    %v1798 = vadd.bf16 %v1158, %v1737
    %v1799 = vadd.bf16 %v1159, %v1737
    %v1800 = vadd.bf16 %v1160, %v1737
    %v1801 = vadd.bf16 %v1161, %v1737
    %v1802 = vadd.bf16 %v1162, %v1737
    %v1803 = vadd.bf16 %v1163, %v1737
    %v1804 = vadd.bf16 %v1164, %v1737
    %v1805 = vadd.bf16 %v1165, %v1738
    %v1806 = vadd.bf16 %v1166, %v1738
    %v1807 = vadd.bf16 %v1167, %v1738
    %v1808 = vadd.bf16 %v1168, %v1738
    %v1809 = vadd.bf16 %v1169, %v1738
    %v1810 = vadd.bf16 %v1170, %v1738
    %v1811 = vadd.bf16 %v1171, %v1738
    %v1812 = vadd.bf16 %v1172, %v1738
    %v1813 = vadd.bf16 %v1173, %v1739
    %v1814 = vadd.bf16 %v1174, %v1739
    %v1815 = vadd.bf16 %v1175, %v1739
    %v1816 = vadd.bf16 %v1176, %v1739
    %v1817 = vadd.bf16 %v1177, %v1739
    %v1818 = vadd.bf16 %v1178, %v1739
    %v1819 = vadd.bf16 %v1179, %v1739
    %v1820 = vadd.bf16 %v1180, %v1739
    %v1821 = vadd.bf16 %v1181, %v1740
    %v1822 = vadd.bf16 %v1182, %v1740
    %v1823 = vadd.bf16 %v1183, %v1740
    %v1824 = vadd.bf16 %v1184, %v1740
    %v1825 = vadd.bf16 %v1185, %v1740
    %v1826 = vadd.bf16 %v1186, %v1740
    %v1827 = vadd.bf16 %v1187, %v1740
    %v1828 = vadd.bf16 %v1188, %v1740
    %v1829 = vadd.bf16 %v1189, %v1741
    %v1830 = vadd.bf16 %v1190, %v1741
    %v1831 = vadd.bf16 %v1191, %v1741
    %v1832 = vadd.bf16 %v1192, %v1741
    %v1833 = vadd.bf16 %v1193, %v1741
    %v1834 = vadd.bf16 %v1194, %v1741
    %v1835 = vadd.bf16 %v1195, %v1741
    %v1836 = vadd.bf16 %v1196, %v1741
    %v1837 = vadd.bf16 %v1197, %v1742
    %v1838 = vadd.bf16 %v1198, %v1742
    %v1839 = vadd.bf16 %v1199, %v1742
    %v1840 = vadd.bf16 %v1200, %v1742
    %v1841 = vadd.bf16 %v1201, %v1742
    %v1842 = vadd.bf16 %v1202, %v1742
    %v1843 = vadd.bf16 %v1203, %v1742
    %v1844 = vadd.bf16 %v1204, %v1742
    %v1845 = vadd.bf16 %v1205, %v1743
    %v1846 = vadd.bf16 %v1206, %v1743
    %v1847 = vadd.bf16 %v1207, %v1743
    %v1848 = vadd.bf16 %v1208, %v1743
    %v1849 = vadd.bf16 %v1209, %v1743
    %v1850 = vadd.bf16 %v1210, %v1743
    %v1851 = vadd.bf16 %v1211, %v1743
    %v1852 = vadd.bf16 %v1212, %v1743
    %v1853 = vadd.bf16 %v1213, %v1744
    %v1854 = vadd.bf16 %v1214, %v1744
    %v1855 = vadd.bf16 %v1215, %v1744
    %v1856 = vadd.bf16 %v1216, %v1744
    %v1857 = vadd.bf16 %v1217, %v1744
    %v1858 = vadd.bf16 %v1218, %v1744
    %v1859 = vadd.bf16 %v1219, %v1744
    %v1860 = vadd.bf16 %v1220, %v1744
    %v1861 = vadd.bf16 %v1221, %v1745
    %v1862 = vadd.bf16 %v1222, %v1745
    %v1863 = vadd.bf16 %v1223, %v1745
    %v1864 = vadd.bf16 %v1224, %v1745
    %v1865 = vadd.bf16 %v1225, %v1745
    %v1866 = vadd.bf16 %v1226, %v1745
    %v1867 = vadd.bf16 %v1227, %v1745
    %v1868 = vadd.bf16 %v1228, %v1745
    %v1869 = vadd.bf16 %v1229, %v1746
    %v1870 = vadd.bf16 %v1230, %v1746
    %v1871 = vadd.bf16 %v1231, %v1746
    %v1872 = vadd.bf16 %v1232, %v1746
    %v1873 = vadd.bf16 %v1233, %v1746
    %v1874 = vadd.bf16 %v1234, %v1746
    %v1875 = vadd.bf16 %v1235, %v1746
    %v1876 = vadd.bf16 %v1236, %v1746
    %v1877 = vadd.bf16 %v1237, %v1747
    %v1878 = vadd.bf16 %v1238, %v1747
    %v1879 = vadd.bf16 %v1239, %v1747
    %v1880 = vadd.bf16 %v1240, %v1747
    %v1881 = vadd.bf16 %v1241, %v1747
    %v1882 = vadd.bf16 %v1242, %v1747
    %v1883 = vadd.bf16 %v1243, %v1747
    %v1884 = vadd.bf16 %v1244, %v1747
    %v1885 = vadd.bf16 %v1245, %v1748
    %v1886 = vadd.bf16 %v1246, %v1748
    %v1887 = vadd.bf16 %v1247, %v1748
    %v1888 = vadd.bf16 %v1248, %v1748
    %v1889 = vadd.bf16 %v1249, %v1748
    %v1890 = vadd.bf16 %v1250, %v1748
    %v1891 = vadd.bf16 %v1251, %v1748
    %v1892 = vadd.bf16 %v1252, %v1748
    %v1893 = vmul.bf16 %v1765, 1009007652
    %v1894 = vmul.bf16 %v1766, 1009007652
    %v1895 = vmul.bf16 %v1767, 1009007652
    %v1896 = vmul.bf16 %v1768, 1009007652
    %v1897 = vmul.bf16 %v1769, 1009007652
    %v1898 = vmul.bf16 %v1770, 1009007652
    %v1899 = vmul.bf16 %v1771, 1009007652
    %v1900 = vmul.bf16 %v1772, 1009007652
    %v1901 = vmul.bf16 %v1773, 1009007652
    %v1902 = vmul.bf16 %v1774, 1009007652
    %v1903 = vmul.bf16 %v1775, 1009007652
    %v1904 = vmul.bf16 %v1776, 1009007652
    %v1905 = vmul.bf16 %v1777, 1009007652
    %v1906 = vmul.bf16 %v1778, 1009007652
    %v1907 = vmul.bf16 %v1779, 1009007652
    %v1908 = vmul.bf16 %v1780, 1009007652
    %v1909 = vmul.bf16 %v1781, 1009007652
    %v1910 = vmul.bf16 %v1782, 1009007652
    %v1911 = vmul.bf16 %v1783, 1009007652
    %v1912 = vmul.bf16 %v1784, 1009007652
    %v1913 = vmul.bf16 %v1785, 1009007652
    %v1914 = vmul.bf16 %v1786, 1009007652
    %v1915 = vmul.bf16 %v1787, 1009007652
    %v1916 = vmul.bf16 %v1788, 1009007652
    %v1917 = vmul.bf16 %v1789, 1009007652
    %v1918 = vmul.bf16 %v1790, 1009007652
    %v1919 = vmul.bf16 %v1791, 1009007652
    %v1920 = vmul.bf16 %v1792, 1009007652
    %v1921 = vmul.bf16 %v1793, 1009007652
    %v1922 = vmul.bf16 %v1794, 1009007652
    %v1923 = vmul.bf16 %v1795, 1009007652
    %v1924 = vmul.bf16 %v1796, 1009007652
    %v1925 = vmul.bf16 %v1797, 1009007652
    %v1926 = vmul.bf16 %v1798, 1009007652
    %v1927 = vmul.bf16 %v1799, 1009007652
    %v1928 = vmul.bf16 %v1800, 1009007652
    %v1929 = vmul.bf16 %v1801, 1009007652
    %v1930 = vmul.bf16 %v1802, 1009007652
    %v1931 = vmul.bf16 %v1803, 1009007652
    %v1932 = vmul.bf16 %v1804, 1009007652
    %v1933 = vmul.bf16 %v1805, 1009007652
    %v1934 = vmul.bf16 %v1806, 1009007652
    %v1935 = vmul.bf16 %v1807, 1009007652
    %v1936 = vmul.bf16 %v1808, 1009007652
    %v1937 = vmul.bf16 %v1809, 1009007652
    %v1938 = vmul.bf16 %v1810, 1009007652
    %v1939 = vmul.bf16 %v1811, 1009007652
    %v1940 = vmul.bf16 %v1812, 1009007652
    %v1941 = vmul.bf16 %v1813, 1009007652
    %v1942 = vmul.bf16 %v1814, 1009007652
    %v1943 = vmul.bf16 %v1815, 1009007652
    %v1944 = vmul.bf16 %v1816, 1009007652
    %v1945 = vmul.bf16 %v1817, 1009007652
    %v1946 = vmul.bf16 %v1818, 1009007652
    %v1947 = vmul.bf16 %v1819, 1009007652
    %v1948 = vmul.bf16 %v1820, 1009007652
    %v1949 = vmul.bf16 %v1821, 1009007652
    %v1950 = vmul.bf16 %v1822, 1009007652
    %v1951 = vmul.bf16 %v1823, 1009007652
    %v1952 = vmul.bf16 %v1824, 1009007652
    %v1953 = vmul.bf16 %v1825, 1009007652
    %v1954 = vmul.bf16 %v1826, 1009007652
    %v1955 = vmul.bf16 %v1827, 1009007652
    %v1956 = vmul.bf16 %v1828, 1009007652
    %v1957 = vmul.bf16 %v1829, 1009007652
    %v1958 = vmul.bf16 %v1830, 1009007652
    %v1959 = vmul.bf16 %v1831, 1009007652
    %v1960 = vmul.bf16 %v1832, 1009007652
    %v1961 = vmul.bf16 %v1833, 1009007652
    %v1962 = vmul.bf16 %v1834, 1009007652
    %v1963 = vmul.bf16 %v1835, 1009007652
    %v1964 = vmul.bf16 %v1836, 1009007652
    %v1965 = vmul.bf16 %v1837, 1009007652
    %v1966 = vmul.bf16 %v1838, 1009007652
    %v1967 = vmul.bf16 %v1839, 1009007652
    %v1968 = vmul.bf16 %v1840, 1009007652
    %v1969 = vmul.bf16 %v1841, 1009007652
    %v1970 = vmul.bf16 %v1842, 1009007652
    %v1971 = vmul.bf16 %v1843, 1009007652
    %v1972 = vmul.bf16 %v1844, 1009007652
    %v1973 = vmul.bf16 %v1845, 1009007652
    %v1974 = vmul.bf16 %v1846, 1009007652
    %v1975 = vmul.bf16 %v1847, 1009007652
    %v1976 = vmul.bf16 %v1848, 1009007652
    %v1977 = vmul.bf16 %v1849, 1009007652
    %v1978 = vmul.bf16 %v1850, 1009007652
    %v1979 = vmul.bf16 %v1851, 1009007652
    %v1980 = vmul.bf16 %v1852, 1009007652
    %v1981 = vmul.bf16 %v1853, 1009007652
    %v1982 = vmul.bf16 %v1854, 1009007652
    %v1983 = vmul.bf16 %v1855, 1009007652
    %v1984 = vmul.bf16 %v1856, 1009007652
    %v1985 = vmul.bf16 %v1857, 1009007652
    %v1986 = vmul.bf16 %v1858, 1009007652
    %v1987 = vmul.bf16 %v1859, 1009007652
    %v1988 = vmul.bf16 %v1860, 1009007652
    %v1989 = vmul.bf16 %v1861, 1009007652
    %v1990 = vmul.bf16 %v1862, 1009007652
    %v1991 = vmul.bf16 %v1863, 1009007652
    %v1992 = vmul.bf16 %v1864, 1009007652
    %v1993 = vmul.bf16 %v1865, 1009007652
    %v1994 = vmul.bf16 %v1866, 1009007652
    %v1995 = vmul.bf16 %v1867, 1009007652
    %v1996 = vmul.bf16 %v1868, 1009007652
    %v1997 = vmul.bf16 %v1869, 1009007652
    %v1998 = vmul.bf16 %v1870, 1009007652
    %v1999 = vmul.bf16 %v1871, 1009007652
    %v2000 = vmul.bf16 %v1872, 1009007652
    %v2001 = vmul.bf16 %v1873, 1009007652
    %v2002 = vmul.bf16 %v1874, 1009007652
    %v2003 = vmul.bf16 %v1875, 1009007652
    %v2004 = vmul.bf16 %v1876, 1009007652
    %v2005 = vmul.bf16 %v1877, 1009007652
    %v2006 = vmul.bf16 %v1878, 1009007652
    %v2007 = vmul.bf16 %v1879, 1009007652
    %v2008 = vmul.bf16 %v1880, 1009007652
    %v2009 = vmul.bf16 %v1881, 1009007652
    %v2010 = vmul.bf16 %v1882, 1009007652
    %v2011 = vmul.bf16 %v1883, 1009007652
    %v2012 = vmul.bf16 %v1884, 1009007652
    %v2013 = vmul.bf16 %v1885, 1009007652
    %v2014 = vmul.bf16 %v1886, 1009007652
    %v2015 = vmul.bf16 %v1887, 1009007652
    %v2016 = vmul.bf16 %v1888, 1009007652
    %v2017 = vmul.bf16 %v1889, 1009007652
    %v2018 = vmul.bf16 %v1890, 1009007652
    %v2019 = vmul.bf16 %v1891, 1009007652
    %v2020 = vmul.bf16 %v1892, 1009007652
    %v2021 = vmax.bf16 %v1765, %v1893
    %v2022 = vmax.bf16 %v1766, %v1894
    %v2023 = vmax.bf16 %v1767, %v1895
    %v2024 = vmax.bf16 %v1768, %v1896
    %v2025 = vmax.bf16 %v1769, %v1897
    %v2026 = vmax.bf16 %v1770, %v1898
    %v2027 = vmax.bf16 %v1771, %v1899
    %v2028 = vmax.bf16 %v1772, %v1900
    %v2029 = vmax.bf16 %v1773, %v1901
    %v2030 = vmax.bf16 %v1774, %v1902
    %v2031 = vmax.bf16 %v1775, %v1903
    %v2032 = vmax.bf16 %v1776, %v1904
    %v2033 = vmax.bf16 %v1777, %v1905
    %v2034 = vmax.bf16 %v1778, %v1906
    %v2035 = vmax.bf16 %v1779, %v1907
    %v2036 = vmax.bf16 %v1780, %v1908
    %v2037 = vmax.bf16 %v1781, %v1909
    %v2038 = vmax.bf16 %v1782, %v1910
    %v2039 = vmax.bf16 %v1783, %v1911
    %v2040 = vmax.bf16 %v1784, %v1912
    %v2041 = vmax.bf16 %v1785, %v1913
    %v2042 = vmax.bf16 %v1786, %v1914
    %v2043 = vmax.bf16 %v1787, %v1915
    %v2044 = vmax.bf16 %v1788, %v1916
    %v2045 = vmax.bf16 %v1789, %v1917
    %v2046 = vmax.bf16 %v1790, %v1918
    %v2047 = vmax.bf16 %v1791, %v1919
    %v2048 = vmax.bf16 %v1792, %v1920
    %v2049 = vmax.bf16 %v1793, %v1921
    %v2050 = vmax.bf16 %v1794, %v1922
    %v2051 = vmax.bf16 %v1795, %v1923
    %v2052 = vmax.bf16 %v1796, %v1924
    %v2053 = vmax.bf16 %v1797, %v1925
    %v2054 = vmax.bf16 %v1798, %v1926
    %v2055 = vmax.bf16 %v1799, %v1927
    %v2056 = vmax.bf16 %v1800, %v1928
    %v2057 = vmax.bf16 %v1801, %v1929
    %v2058 = vmax.bf16 %v1802, %v1930
    %v2059 = vmax.bf16 %v1803, %v1931
    %v2060 = vmax.bf16 %v1804, %v1932
    %v2061 = vmax.bf16 %v1805, %v1933
    %v2062 = vmax.bf16 %v1806, %v1934
    %v2063 = vmax.bf16 %v1807, %v1935
    %v2064 = vmax.bf16 %v1808, %v1936
    %v2065 = vmax.bf16 %v1809, %v1937
    %v2066 = vmax.bf16 %v1810, %v1938
    %v2067 = vmax.bf16 %v1811, %v1939
    %v2068 = vmax.bf16 %v1812, %v1940
    %v2069 = vmax.bf16 %v1813, %v1941
    %v2070 = vmax.bf16 %v1814, %v1942
    %v2071 = vmax.bf16 %v1815, %v1943
    %v2072 = vmax.bf16 %v1816, %v1944
    %v2073 = vmax.bf16 %v1817, %v1945
    %v2074 = vmax.bf16 %v1818, %v1946
    %v2075 = vmax.bf16 %v1819, %v1947
    %v2076 = vmax.bf16 %v1820, %v1948
    %v2077 = vmax.bf16 %v1821, %v1949
    %v2078 = vmax.bf16 %v1822, %v1950
    %v2079 = vmax.bf16 %v1823, %v1951
    %v2080 = vmax.bf16 %v1824, %v1952
    %v2081 = vmax.bf16 %v1825, %v1953
    %v2082 = vmax.bf16 %v1826, %v1954
    %v2083 = vmax.bf16 %v1827, %v1955
    %v2084 = vmax.bf16 %v1828, %v1956
    %v2085 = vmax.bf16 %v1829, %v1957
    %v2086 = vmax.bf16 %v1830, %v1958
    %v2087 = vmax.bf16 %v1831, %v1959
    %v2088 = vmax.bf16 %v1832, %v1960
    %v2089 = vmax.bf16 %v1833, %v1961
    %v2090 = vmax.bf16 %v1834, %v1962
    %v2091 = vmax.bf16 %v1835, %v1963
    %v2092 = vmax.bf16 %v1836, %v1964
    %v2093 = vmax.bf16 %v1837, %v1965
    %v2094 = vmax.bf16 %v1838, %v1966
    %v2095 = vmax.bf16 %v1839, %v1967
    %v2096 = vmax.bf16 %v1840, %v1968
    %v2097 = vmax.bf16 %v1841, %v1969
    %v2098 = vmax.bf16 %v1842, %v1970
    %v2099 = vmax.bf16 %v1843, %v1971
    %v2100 = vmax.bf16 %v1844, %v1972
    %v2101 = vmax.bf16 %v1845, %v1973
    %v2102 = vmax.bf16 %v1846, %v1974
    %v2103 = vmax.bf16 %v1847, %v1975
    %v2104 = vmax.bf16 %v1848, %v1976
    %v2105 = vmax.bf16 %v1849, %v1977
    %v2106 = vmax.bf16 %v1850, %v1978
    %v2107 = vmax.bf16 %v1851, %v1979
    %v2108 = vmax.bf16 %v1852, %v1980
    %v2109 = vmax.bf16 %v1853, %v1981
    %v2110 = vmax.bf16 %v1854, %v1982
    %v2111 = vmax.bf16 %v1855, %v1983
    %v2112 = vmax.bf16 %v1856, %v1984
    %v2113 = vmax.bf16 %v1857, %v1985
    %v2114 = vmax.bf16 %v1858, %v1986
    %v2115 = vmax.bf16 %v1859, %v1987
    %v2116 = vmax.bf16 %v1860, %v1988
    %v2117 = vmax.bf16 %v1861, %v1989
    %v2118 = vmax.bf16 %v1862, %v1990
    %v2119 = vmax.bf16 %v1863, %v1991
    %v2120 = vmax.bf16 %v1864, %v1992
    %v2121 = vmax.bf16 %v1865, %v1993
    %v2122 = vmax.bf16 %v1866, %v1994
    %v2123 = vmax.bf16 %v1867, %v1995
    %v2124 = vmax.bf16 %v1868, %v1996
    %v2125 = vmax.bf16 %v1869, %v1997
    %v2126 = vmax.bf16 %v1870, %v1998
    %v2127 = vmax.bf16 %v1871, %v1999
    %v2128 = vmax.bf16 %v1872, %v2000
    %v2129 = vmax.bf16 %v1873, %v2001
    %v2130 = vmax.bf16 %v1874, %v2002
    %v2131 = vmax.bf16 %v1875, %v2003
    %v2132 = vmax.bf16 %v1876, %v2004
    %v2133 = vmax.bf16 %v1877, %v2005
    %v2134 = vmax.bf16 %v1878, %v2006
    %v2135 = vmax.bf16 %v1879, %v2007
    %v2136 = vmax.bf16 %v1880, %v2008
    %v2137 = vmax.bf16 %v1881, %v2009
    %v2138 = vmax.bf16 %v1882, %v2010
    %v2139 = vmax.bf16 %v1883, %v2011
    %v2140 = vmax.bf16 %v1884, %v2012
    %v2141 = vmax.bf16 %v1885, %v2013
    %v2142 = vmax.bf16 %v1886, %v2014
    %v2143 = vmax.bf16 %v1887, %v2015
    %v2144 = vmax.bf16 %v1888, %v2016
    %v2145 = vmax.bf16 %v1889, %v2017
    %v2146 = vmax.bf16 %v1890, %v2018
    %v2147 = vmax.bf16 %v1891, %v2019
    %v2148 = vmax.bf16 %v1892, %v2020
    %v2149 = vld [vmem:[#allocation9] sm:$0xff]
    %v2150 = vld [vmem:[#allocation9 + $0x8] sm:$0xff]
    %v2151 = vld [vmem:[#allocation9 + $0x10] sm:$0xff]
    %v2152 = vld [vmem:[#allocation9 + $0x18] sm:$0xff]
    %v2153 = vld [vmem:[#allocation9 + $0x20] sm:$0xff]
    %v2154 = vld [vmem:[#allocation9 + $0x28] sm:$0xff]
    %v2155 = vld [vmem:[#allocation9 + $0x30] sm:$0xff]
    %v2156 = vld [vmem:[#allocation9 + $0x38] sm:$0xff]
    %v2157 = vld [vmem:[#allocation9 + $0x40] sm:$0xff]
    %v2158 = vld [vmem:[#allocation9 + $0x48] sm:$0xff]
    %v2159 = vld [vmem:[#allocation9 + $0x50] sm:$0xff]
    %v2160 = vld [vmem:[#allocation9 + $0x58] sm:$0xff]
    %v2161 = vld [vmem:[#allocation9 + $0x60] sm:$0xff]
    %v2162 = vld [vmem:[#allocation9 + $0x68] sm:$0xff]
    %v2163 = vld [vmem:[#allocation9 + $0x70] sm:$0xff]
    %v2164 = vld [vmem:[#allocation9 + $0x78] sm:$0xff]
    %v2165 = vld [vmem:[#allocation9 + $0x80] sm:$0xff]
    %v2166 = vld [vmem:[#allocation9 + $0x88] sm:$0xff]
    %v2167 = vld [vmem:[#allocation9 + $0x90] sm:$0xff]
    %v2168 = vld [vmem:[#allocation9 + $0x98] sm:$0xff]
    %v2169 = vld [vmem:[#allocation9 + $0xa0] sm:$0xff]
    %v2170 = vld [vmem:[#allocation9 + $0xa8] sm:$0xff]
    %v2171 = vld [vmem:[#allocation9 + $0xb0] sm:$0xff]
    %v2172 = vld [vmem:[#allocation9 + $0xb8] sm:$0xff]
    %v2173 = vld [vmem:[#allocation9 + $0xc0] sm:$0xff]
    %v2174 = vld [vmem:[#allocation9 + $0xc8] sm:$0xff]
    %v2175 = vld [vmem:[#allocation9 + $0xd0] sm:$0xff]
    %v2176 = vld [vmem:[#allocation9 + $0xd8] sm:$0xff]
    %v2177 = vld [vmem:[#allocation9 + $0xe0] sm:$0xff]
    %v2178 = vld [vmem:[#allocation9 + $0xe8] sm:$0xff]
    %v2179 = vld [vmem:[#allocation9 + $0xf0] sm:$0xff]
    %v2180 = vld [vmem:[#allocation9 + $0xf8] sm:$0xff]
    %v2213 = vunpack.c.l.b16 %v2149
    %v2214 = vunpack.c.h.b16 %v2149
    %v2215 = vunpack.c.l.b16 %v2150
    %v2216 = vunpack.c.h.b16 %v2150
    %v2217 = vunpack.c.l.b16 %v2151
    %v2218 = vunpack.c.h.b16 %v2151
    %v2219 = vunpack.c.l.b16 %v2152
    %v2220 = vunpack.c.h.b16 %v2152
    %v2221 = vunpack.c.l.b16 %v2153
    %v2222 = vunpack.c.h.b16 %v2153
    %v2223 = vunpack.c.l.b16 %v2154
    %v2224 = vunpack.c.h.b16 %v2154
    %v2225 = vunpack.c.l.b16 %v2155
    %v2226 = vunpack.c.h.b16 %v2155
    %v2227 = vunpack.c.l.b16 %v2156
    %v2228 = vunpack.c.h.b16 %v2156
    %v2229 = vunpack.c.l.b16 %v2157
    %v2230 = vunpack.c.h.b16 %v2157
    %v2231 = vunpack.c.l.b16 %v2158
    %v2232 = vunpack.c.h.b16 %v2158
    %v2233 = vunpack.c.l.b16 %v2159
    %v2234 = vunpack.c.h.b16 %v2159
    %v2235 = vunpack.c.l.b16 %v2160
    %v2236 = vunpack.c.h.b16 %v2160
    %v2237 = vunpack.c.l.b16 %v2161
    %v2238 = vunpack.c.h.b16 %v2161
    %v2239 = vunpack.c.l.b16 %v2162
    %v2240 = vunpack.c.h.b16 %v2162
    %v2241 = vunpack.c.l.b16 %v2163
    %v2242 = vunpack.c.h.b16 %v2163
    %v2243 = vunpack.c.l.b16 %v2164
    %v2244 = vunpack.c.h.b16 %v2164
    %v2245 = vunpack.c.l.b16 %v2165
    %v2246 = vunpack.c.h.b16 %v2165
    %v2247 = vunpack.c.l.b16 %v2166
    %v2248 = vunpack.c.h.b16 %v2166
    %v2249 = vunpack.c.l.b16 %v2167
    %v2250 = vunpack.c.h.b16 %v2167
    %v2251 = vunpack.c.l.b16 %v2168
    %v2252 = vunpack.c.h.b16 %v2168
    %v2253 = vunpack.c.l.b16 %v2169
    %v2254 = vunpack.c.h.b16 %v2169
    %v2255 = vunpack.c.l.b16 %v2170
    %v2256 = vunpack.c.h.b16 %v2170
    %v2257 = vunpack.c.l.b16 %v2171
    %v2258 = vunpack.c.h.b16 %v2171
    %v2259 = vunpack.c.l.b16 %v2172
    %v2260 = vunpack.c.h.b16 %v2172
    %v2261 = vunpack.c.l.b16 %v2173
    %v2262 = vunpack.c.h.b16 %v2173
    %v2263 = vunpack.c.l.b16 %v2174
    %v2264 = vunpack.c.h.b16 %v2174
    %v2265 = vunpack.c.l.b16 %v2175
    %v2266 = vunpack.c.h.b16 %v2175
    %v2267 = vunpack.c.l.b16 %v2176
    %v2268 = vunpack.c.h.b16 %v2176
    %v2269 = vunpack.c.l.b16 %v2177
    %v2270 = vunpack.c.h.b16 %v2177
    %v2271 = vunpack.c.l.b16 %v2178
    %v2272 = vunpack.c.h.b16 %v2178
    %v2273 = vunpack.c.l.b16 %v2179
    %v2274 = vunpack.c.h.b16 %v2179
    %v2275 = vunpack.c.l.b16 %v2180
    %v2276 = vunpack.c.h.b16 %v2180
    %v2277 = vpack.c.b16 %v2215, %v2213
    %v2278 = vpack.c.b16 %v2216, %v2214
    %v2279 = vpack.c.b16 %v2219, %v2217
    %v2280 = vpack.c.b16 %v2220, %v2218
    %v2281 = vpack.c.b16 %v2223, %v2221
    %v2282 = vpack.c.b16 %v2224, %v2222
    %v2283 = vpack.c.b16 %v2227, %v2225
    %v2284 = vpack.c.b16 %v2228, %v2226
    %v2285 = vpack.c.b16 %v2231, %v2229
    %v2286 = vpack.c.b16 %v2232, %v2230
    %v2287 = vpack.c.b16 %v2235, %v2233
    %v2288 = vpack.c.b16 %v2236, %v2234
    %v2289 = vpack.c.b16 %v2239, %v2237
    %v2290 = vpack.c.b16 %v2240, %v2238
    %v2291 = vpack.c.b16 %v2243, %v2241
    %v2292 = vpack.c.b16 %v2244, %v2242
    %v2293 = vpack.c.b16 %v2247, %v2245
    %v2294 = vpack.c.b16 %v2248, %v2246
    %v2295 = vpack.c.b16 %v2251, %v2249
    %v2296 = vpack.c.b16 %v2252, %v2250
    %v2297 = vpack.c.b16 %v2255, %v2253
    %v2298 = vpack.c.b16 %v2256, %v2254
    %v2299 = vpack.c.b16 %v2259, %v2257
    %v2300 = vpack.c.b16 %v2260, %v2258
    %v2301 = vpack.c.b16 %v2263, %v2261
    %v2302 = vpack.c.b16 %v2264, %v2262
    %v2303 = vpack.c.b16 %v2267, %v2265
    %v2304 = vpack.c.b16 %v2268, %v2266
    %v2305 = vpack.c.b16 %v2271, %v2269
    %v2306 = vpack.c.b16 %v2272, %v2270
    %v2307 = vpack.c.b16 %v2275, %v2273
    %v2308 = vpack.c.b16 %v2276, %v2274
    %2341 = vmatprep.subr.bf16.mxu0 %v2022
    %2342 = vmatpush1.bf16.msra.mxu0 %v2021
    %2343 = vmatprep.subr.bf16.mxu0 %v2030
    %2344 = vmatpush1.bf16.msra.mxu0 %v2029
    %2345 = vmatprep.subr.bf16.mxu0 %v2038
    %2346 = vmatpush1.bf16.msra.mxu0 %v2037
    %2347 = vmatprep.subr.bf16.mxu0 %v2046
    %2348 = vmatpush1.bf16.msra.mxu0 %v2045
    %2349 = vmatprep.subr.bf16.mxu0 %v2054
    %2350 = vmatpush1.bf16.msra.mxu0 %v2053
    %2351 = vmatprep.subr.bf16.mxu0 %v2062
    %2352 = vmatpush1.bf16.msra.mxu0 %v2061
    %2353 = vmatprep.subr.bf16.mxu0 %v2070
    %2354 = vmatpush1.bf16.msra.mxu0 %v2069
    %2355 = vmatprep.subr.bf16.mxu0 %v2078
    %2356 = vmatpush1.bf16.msra.mxu0 %v2077
    %2357 = vmatprep.subr.bf16.mxu0 %v2086
    %2358 = vmatpush1.bf16.msra.mxu0 %v2085
    %2359 = vmatprep.subr.bf16.mxu0 %v2094
    %2360 = vmatpush1.bf16.msra.mxu0 %v2093
    %2361 = vmatprep.subr.bf16.mxu0 %v2102
    %2362 = vmatpush1.bf16.msra.mxu0 %v2101
    %2363 = vmatprep.subr.bf16.mxu0 %v2110
    %2364 = vmatpush1.bf16.msra.mxu0 %v2109
    %2365 = vmatprep.subr.bf16.mxu0 %v2118
    %2366 = vmatpush1.bf16.msra.mxu0 %v2117
    %2367 = vmatprep.subr.bf16.mxu0 %v2126
    %2368 = vmatpush1.bf16.msra.mxu0 %v2125
    %2369 = vmatprep.subr.bf16.mxu0 %v2134
    %2370 = vmatpush1.bf16.msra.mxu0 %v2133
    %2371 = vmatprep.subr.bf16.mxu0 %v2142
    %2372 = vmatpush1.bf16.msra.mxu0 %v2141
    %2373 = vmatprep.mubr.bf16.mxu0 %v2278
    %2374 = vmatmul.mubr.bf16.gmra.mrb[0].mxu0 %v2277
    %v2375 = vpop.f32.mrb[0].mxu0
    %v2376 = vadd.f32 0.0, %v2375
    %v2377 = vpop.f32.mrb[0].mxu0
    %v2378 = vadd.f32 0.0, %v2377
    %v2379 = vpop.f32.mrb[0].mxu0
    %v2380 = vadd.f32 0.0, %v2379
    %v2381 = vpop.f32.mrb[0].mxu0
    %v2382 = vadd.f32 0.0, %v2381
    %2383 = vmatprep.mubr.bf16.mxu0 %v2280
    %2384 = vmatmul.mubr.bf16.gmra.mrb[0].mxu0 %v2279
    %v2385 = vpop.f32.mrb[0].mxu0
    %v2386 = vadd.f32 0.0, %v2385
    %v2387 = vpop.f32.mrb[0].mxu0
    %v2388 = vadd.f32 0.0, %v2387
    %v2389 = vpop.f32.mrb[0].mxu0
    %v2390 = vadd.f32 0.0, %v2389
    %v2391 = vpop.f32.mrb[0].mxu0
    %v2392 = vadd.f32 0.0, %v2391
    %2393 = vmatprep.mubr.bf16.mxu0 %v2282
    %2394 = vmatmul.mubr.bf16.gmra.mrb[0].mxu0 %v2281
    %v2395 = vpop.f32.mrb[0].mxu0
    %v2396 = vadd.f32 0.0, %v2395
    %v2397 = vpop.f32.mrb[0].mxu0
    %v2398 = vadd.f32 0.0, %v2397
    %v2399 = vpop.f32.mrb[0].mxu0
    %v2400 = vadd.f32 0.0, %v2399
    %v2401 = vpop.f32.mrb[0].mxu0
    %v2402 = vadd.f32 0.0, %v2401
    %2403 = vmatprep.mubr.bf16.mxu0 %v2284
    %2404 = vmatmul.mubr.bf16.gmra.mrb[0].mxu0 %v2283
    %v2405 = vpop.f32.mrb[0].mxu0
    %v2406 = vadd.f32 0.0, %v2405
    %v2407 = vpop.f32.mrb[0].mxu0
    %v2408 = vadd.f32 0.0, %v2407
    %v2409 = vpop.f32.mrb[0].mxu0
    %v2410 = vadd.f32 0.0, %v2409
    %v2411 = vpop.f32.mrb[0].mxu0
    %v2412 = vadd.f32 0.0, %v2411
    %2413 = vmatprep.mubr.bf16.mxu0 %v2286
    %2414 = vmatmul.mubr.bf16.gmra.mrb[0].mxu0 %v2285
    %v2415 = vpop.f32.mrb[0].mxu0
    %v2416 = vadd.f32 0.0, %v2415
    %v2417 = vpop.f32.mrb[0].mxu0
    %v2418 = vadd.f32 0.0, %v2417
    %v2419 = vpop.f32.mrb[0].mxu0
    %v2420 = vadd.f32 0.0, %v2419
    %v2421 = vpop.f32.mrb[0].mxu0
    %v2422 = vadd.f32 0.0, %v2421
    %2423 = vmatprep.mubr.bf16.mxu0 %v2288
    %2424 = vmatmul.mubr.bf16.gmra.mrb[0].mxu0 %v2287
    %v2425 = vpop.f32.mrb[0].mxu0
    %v2426 = vadd.f32 0.0, %v2425
    %v2427 = vpop.f32.mrb[0].mxu0
    %v2428 = vadd.f32 0.0, %v2427
    %v2429 = vpop.f32.mrb[0].mxu0
    %v2430 = vadd.f32 0.0, %v2429
    %v2431 = vpop.f32.mrb[0].mxu0
    %v2432 = vadd.f32 0.0, %v2431
    %2433 = vmatprep.mubr.bf16.mxu0 %v2290
    %2434 = vmatmul.mubr.bf16.gmra.mrb[0].mxu0 %v2289
    %v2435 = vpop.f32.mrb[0].mxu0
    %v2436 = vadd.f32 0.0, %v2435
    %v2437 = vpop.f32.mrb[0].mxu0
    %v2438 = vadd.f32 0.0, %v2437
    %v2439 = vpop.f32.mrb[0].mxu0
    %v2440 = vadd.f32 0.0, %v2439
    %v2441 = vpop.f32.mrb[0].mxu0
    %v2442 = vadd.f32 0.0, %v2441
    %2443 = vmatprep.mubr.bf16.mxu0 %v2292
    %2444 = vmatmul.mubr.bf16.gmra.mrb[0].mxu0 %v2291
    %v2445 = vpop.f32.mrb[0].mxu0
    %v2446 = vadd.f32 0.0, %v2445
    %v2447 = vpop.f32.mrb[0].mxu0
    %v2448 = vadd.f32 0.0, %v2447
    %v2449 = vpop.f32.mrb[0].mxu0
    %v2450 = vadd.f32 0.0, %v2449
    %v2451 = vpop.f32.mrb[0].mxu0
    %v2452 = vadd.f32 0.0, %v2451
    %2453 = vmatprep.mubr.bf16.mxu0 %v2294
    %2454 = vmatmul.mubr.bf16.gmra.mrb[0].mxu0 %v2293
    %v2455 = vpop.f32.mrb[0].mxu0
    %v2456 = vadd.f32 0.0, %v2455
    %v2457 = vpop.f32.mrb[0].mxu0
    %v2458 = vadd.f32 0.0, %v2457
    %v2459 = vpop.f32.mrb[0].mxu0
    %v2460 = vadd.f32 0.0, %v2459
    %v2461 = vpop.f32.mrb[0].mxu0
    %v2462 = vadd.f32 0.0, %v2461
    %2463 = vmatprep.mubr.bf16.mxu0 %v2296
    %2464 = vmatmul.mubr.bf16.gmra.mrb[0].mxu0 %v2295
    %v2465 = vpop.f32.mrb[0].mxu0
    %v2466 = vadd.f32 0.0, %v2465
    %v2467 = vpop.f32.mrb[0].mxu0
    %v2468 = vadd.f32 0.0, %v2467
    %v2469 = vpop.f32.mrb[0].mxu0
    %v2470 = vadd.f32 0.0, %v2469
    %v2471 = vpop.f32.mrb[0].mxu0
    %v2472 = vadd.f32 0.0, %v2471
    %2473 = vmatprep.mubr.bf16.mxu0 %v2298
    %2474 = vmatmul.mubr.bf16.gmra.mrb[0].mxu0 %v2297
    %v2475 = vpop.f32.mrb[0].mxu0
    %v2476 = vadd.f32 0.0, %v2475
    %v2477 = vpop.f32.mrb[0].mxu0
    %v2478 = vadd.f32 0.0, %v2477
    %v2479 = vpop.f32.mrb[0].mxu0
    %v2480 = vadd.f32 0.0, %v2479
    %v2481 = vpop.f32.mrb[0].mxu0
    %v2482 = vadd.f32 0.0, %v2481
    %2483 = vmatprep.mubr.bf16.mxu0 %v2300
    %2484 = vmatmul.mubr.bf16.gmra.mrb[0].mxu0 %v2299
    %v2485 = vpop.f32.mrb[0].mxu0
    %v2486 = vadd.f32 0.0, %v2485
    %v2487 = vpop.f32.mrb[0].mxu0
    %v2488 = vadd.f32 0.0, %v2487
    %v2489 = vpop.f32.mrb[0].mxu0
    %v2490 = vadd.f32 0.0, %v2489
    %v2491 = vpop.f32.mrb[0].mxu0
    %v2492 = vadd.f32 0.0, %v2491
    %2493 = vmatprep.mubr.bf16.mxu0 %v2302
    %2494 = vmatmul.mubr.bf16.gmra.mrb[0].mxu0 %v2301
    %v2495 = vpop.f32.mrb[0].mxu0
    %v2496 = vadd.f32 0.0, %v2495
    %v2497 = vpop.f32.mrb[0].mxu0
    %v2498 = vadd.f32 0.0, %v2497
    %v2499 = vpop.f32.mrb[0].mxu0
    %v2500 = vadd.f32 0.0, %v2499
    %v2501 = vpop.f32.mrb[0].mxu0
    %v2502 = vadd.f32 0.0, %v2501
    %2503 = vmatprep.mubr.bf16.mxu0 %v2304
    %2504 = vmatmul.mubr.bf16.gmra.mrb[0].mxu0 %v2303
    %v2505 = vpop.f32.mrb[0].mxu0
    %v2506 = vadd.f32 0.0, %v2505
    %v2507 = vpop.f32.mrb[0].mxu0
    %v2508 = vadd.f32 0.0, %v2507
    %v2509 = vpop.f32.mrb[0].mxu0
    %v2510 = vadd.f32 0.0, %v2509
    %v2511 = vpop.f32.mrb[0].mxu0
    %v2512 = vadd.f32 0.0, %v2511
    %2513 = vmatprep.mubr.bf16.mxu0 %v2306
    %2514 = vmatmul.mubr.bf16.gmra.mrb[0].mxu0 %v2305
    %v2515 = vpop.f32.mrb[0].mxu0
    %v2516 = vadd.f32 0.0, %v2515
    %v2517 = vpop.f32.mrb[0].mxu0
    %v2518 = vadd.f32 0.0, %v2517
    %v2519 = vpop.f32.mrb[0].mxu0
    %v2520 = vadd.f32 0.0, %v2519
    %v2521 = vpop.f32.mrb[0].mxu0
    %v2522 = vadd.f32 0.0, %v2521
    %2523 = vmatprep.mubr.bf16.mxu0 %v2308
    %2524 = vmatmul.mubr.bf16.gmra.mrb[0].mxu0 %v2307
    %v2525 = vpop.f32.mrb[0].mxu0
    %v2526 = vadd.f32 0.0, %v2525
    %v2527 = vpop.f32.mrb[0].mxu0
    %v2528 = vadd.f32 0.0, %v2527
    %v2529 = vpop.f32.mrb[0].mxu0
    %v2530 = vadd.f32 0.0, %v2529
    %v2531 = vpop.f32.mrb[0].mxu0
    %v2532 = vadd.f32 0.0, %v2531
    %2533 = vdwg.mxu0
    %2534 = vmatprep.subr.bf16.mxu0 %v2024
    %2535 = vmatpush1.bf16.msra.mxu0 %v2023
    %2536 = vmatprep.subr.bf16.mxu0 %v2032
    %2537 = vmatpush1.bf16.msra.mxu0 %v2031
    %2538 = vmatprep.subr.bf16.mxu0 %v2040
    %2539 = vmatpush1.bf16.msra.mxu0 %v2039
    %2540 = vmatprep.subr.bf16.mxu0 %v2048
    %2541 = vmatpush1.bf16.msra.mxu0 %v2047
    %2542 = vmatprep.subr.bf16.mxu0 %v2056
    %2543 = vmatpush1.bf16.msra.mxu0 %v2055
    %2544 = vmatprep.subr.bf16.mxu0 %v2064
    %2545 = vmatpush1.bf16.msra.mxu0 %v2063
    %2546 = vmatprep.subr.bf16.mxu0 %v2072
    %2547 = vmatpush1.bf16.msra.mxu0 %v2071
    %2548 = vmatprep.subr.bf16.mxu0 %v2080
    %2549 = vmatpush1.bf16.msra.mxu0 %v2079
    %2550 = vmatprep.subr.bf16.mxu0 %v2088
    %2551 = vmatpush1.bf16.msra.mxu0 %v2087
    %2552 = vmatprep.subr.bf16.mxu0 %v2096
    %2553 = vmatpush1.bf16.msra.mxu0 %v2095
    %2554 = vmatprep.subr.bf16.mxu0 %v2104
    %2555 = vmatpush1.bf16.msra.mxu0 %v2103
    %2556 = vmatprep.subr.bf16.mxu0 %v2112
    %2557 = vmatpush1.bf16.msra.mxu0 %v2111
    %2558 = vmatprep.subr.bf16.mxu0 %v2120
    %2559 = vmatpush1.bf16.msra.mxu0 %v2119
    %2560 = vmatprep.subr.bf16.mxu0 %v2128
    %2561 = vmatpush1.bf16.msra.mxu0 %v2127
    %2562 = vmatprep.subr.bf16.mxu0 %v2136
    %2563 = vmatpush1.bf16.msra.mxu0 %v2135
    %2564 = vmatprep.subr.bf16.mxu0 %v2144
    %2565 = vmatpush1.bf16.msra.mxu0 %v2143
    %2566 = vmatprep.mubr.bf16.mxu0 %v2278
    %2567 = vmatmul.mubr.bf16.gmra.mrb[0].mxu0 %v2277
    %v2568 = vpop.f32.mrb[0].mxu0
    %v2569 = vadd.f32 0.0, %v2568
    %v2570 = vpop.f32.mrb[0].mxu0
    %v2571 = vadd.f32 0.0, %v2570
    %v2572 = vpop.f32.mrb[0].mxu0
    %v2573 = vadd.f32 0.0, %v2572
    %v2574 = vpop.f32.mrb[0].mxu0
    %v2575 = vadd.f32 0.0, %v2574
    %2576 = vmatprep.mubr.bf16.mxu0 %v2280
    %2577 = vmatmul.mubr.bf16.gmra.mrb[0].mxu0 %v2279
    %v2578 = vpop.f32.mrb[0].mxu0
    %v2579 = vadd.f32 0.0, %v2578
    %v2580 = vpop.f32.mrb[0].mxu0
    %v2581 = vadd.f32 0.0, %v2580
    %v2582 = vpop.f32.mrb[0].mxu0
    %v2583 = vadd.f32 0.0, %v2582
    %v2584 = vpop.f32.mrb[0].mxu0
    %v2585 = vadd.f32 0.0, %v2584
    %2586 = vmatprep.mubr.bf16.mxu0 %v2282
    %2587 = vmatmul.mubr.bf16.gmra.mrb[0].mxu0 %v2281
    %v2588 = vpop.f32.mrb[0].mxu0
    %v2589 = vadd.f32 0.0, %v2588
    %v2590 = vpop.f32.mrb[0].mxu0
    %v2591 = vadd.f32 0.0, %v2590
    %v2592 = vpop.f32.mrb[0].mxu0
    %v2593 = vadd.f32 0.0, %v2592
    %v2594 = vpop.f32.mrb[0].mxu0
    %v2595 = vadd.f32 0.0, %v2594
    %2596 = vmatprep.mubr.bf16.mxu0 %v2284
    %2597 = vmatmul.mubr.bf16.gmra.mrb[0].mxu0 %v2283
    %v2598 = vpop.f32.mrb[0].mxu0
    %v2599 = vadd.f32 0.0, %v2598
    %v2600 = vpop.f32.mrb[0].mxu0
    %v2601 = vadd.f32 0.0, %v2600
    %v2602 = vpop.f32.mrb[0].mxu0
    %v2603 = vadd.f32 0.0, %v2602
    %v2604 = vpop.f32.mrb[0].mxu0
    %v2605 = vadd.f32 0.0, %v2604
    %2606 = vmatprep.mubr.bf16.mxu0 %v2286
    %2607 = vmatmul.mubr.bf16.gmra.mrb[0].mxu0 %v2285
    %v2608 = vpop.f32.mrb[0].mxu0
    %v2609 = vadd.f32 0.0, %v2608
    %v2610 = vpop.f32.mrb[0].mxu0
    %v2611 = vadd.f32 0.0, %v2610
    %v2612 = vpop.f32.mrb[0].mxu0
    %v2613 = vadd.f32 0.0, %v2612
    %v2614 = vpop.f32.mrb[0].mxu0
    %v2615 = vadd.f32 0.0, %v2614
    %2616 = vmatprep.mubr.bf16.mxu0 %v2288
    %2617 = vmatmul.mubr.bf16.gmra.mrb[0].mxu0 %v2287
    %v2618 = vpop.f32.mrb[0].mxu0
    %v2619 = vadd.f32 0.0, %v2618
    %v2620 = vpop.f32.mrb[0].mxu0
    %v2621 = vadd.f32 0.0, %v2620
    %v2622 = vpop.f32.mrb[0].mxu0
    %v2623 = vadd.f32 0.0, %v2622
    %v2624 = vpop.f32.mrb[0].mxu0
    %v2625 = vadd.f32 0.0, %v2624
    %2626 = vmatprep.mubr.bf16.mxu0 %v2290
    %2627 = vmatmul.mubr.bf16.gmra.mrb[0].mxu0 %v2289
    %v2628 = vpop.f32.mrb[0].mxu0
    %v2629 = vadd.f32 0.0, %v2628
    %v2630 = vpop.f32.mrb[0].mxu0
    %v2631 = vadd.f32 0.0, %v2630
    %v2632 = vpop.f32.mrb[0].mxu0
    %v2633 = vadd.f32 0.0, %v2632
    %v2634 = vpop.f32.mrb[0].mxu0
    %v2635 = vadd.f32 0.0, %v2634
    %2636 = vmatprep.mubr.bf16.mxu0 %v2292
    %2637 = vmatmul.mubr.bf16.gmra.mrb[0].mxu0 %v2291
    %v2638 = vpop.f32.mrb[0].mxu0
    %v2639 = vadd.f32 0.0, %v2638
    %v2640 = vpop.f32.mrb[0].mxu0
    %v2641 = vadd.f32 0.0, %v2640
    %v2642 = vpop.f32.mrb[0].mxu0
    %v2643 = vadd.f32 0.0, %v2642
    %v2644 = vpop.f32.mrb[0].mxu0
    %v2645 = vadd.f32 0.0, %v2644
    %2646 = vmatprep.mubr.bf16.mxu0 %v2294
    %2647 = vmatmul.mubr.bf16.gmra.mrb[0].mxu0 %v2293
    %v2648 = vpop.f32.mrb[0].mxu0
    %v2649 = vadd.f32 0.0, %v2648
    %v2650 = vpop.f32.mrb[0].mxu0
    %v2651 = vadd.f32 0.0, %v2650
    %v2652 = vpop.f32.mrb[0].mxu0
    %v2653 = vadd.f32 0.0, %v2652
    %v2654 = vpop.f32.mrb[0].mxu0
    %v2655 = vadd.f32 0.0, %v2654
    %2656 = vmatprep.mubr.bf16.mxu0 %v2296
    %2657 = vmatmul.mubr.bf16.gmra.mrb[0].mxu0 %v2295
    %v2658 = vpop.f32.mrb[0].mxu0
    %v2659 = vadd.f32 0.0, %v2658
    %v2660 = vpop.f32.mrb[0].mxu0
    %v2661 = vadd.f32 0.0, %v2660
    %v2662 = vpop.f32.mrb[0].mxu0
    %v2663 = vadd.f32 0.0, %v2662
    %v2664 = vpop.f32.mrb[0].mxu0
    %v2665 = vadd.f32 0.0, %v2664
    %2666 = vmatprep.mubr.bf16.mxu0 %v2298
    %2667 = vmatmul.mubr.bf16.gmra.mrb[0].mxu0 %v2297
    %v2668 = vpop.f32.mrb[0].mxu0
    %v2669 = vadd.f32 0.0, %v2668
    %v2670 = vpop.f32.mrb[0].mxu0
    %v2671 = vadd.f32 0.0, %v2670
    %v2672 = vpop.f32.mrb[0].mxu0
    %v2673 = vadd.f32 0.0, %v2672
    %v2674 = vpop.f32.mrb[0].mxu0
    %v2675 = vadd.f32 0.0, %v2674
    %2676 = vmatprep.mubr.bf16.mxu0 %v2300
    %2677 = vmatmul.mubr.bf16.gmra.mrb[0].mxu0 %v2299
    %v2678 = vpop.f32.mrb[0].mxu0
    %v2679 = vadd.f32 0.0, %v2678
    %v2680 = vpop.f32.mrb[0].mxu0
    %v2681 = vadd.f32 0.0, %v2680
    %v2682 = vpop.f32.mrb[0].mxu0
    %v2683 = vadd.f32 0.0, %v2682
    %v2684 = vpop.f32.mrb[0].mxu0
    %v2685 = vadd.f32 0.0, %v2684
    %2686 = vmatprep.mubr.bf16.mxu0 %v2302
    %2687 = vmatmul.mubr.bf16.gmra.mrb[0].mxu0 %v2301
    %v2688 = vpop.f32.mrb[0].mxu0
    %v2689 = vadd.f32 0.0, %v2688
    %v2690 = vpop.f32.mrb[0].mxu0
    %v2691 = vadd.f32 0.0, %v2690
    %v2692 = vpop.f32.mrb[0].mxu0
    %v2693 = vadd.f32 0.0, %v2692
    %v2694 = vpop.f32.mrb[0].mxu0
    %v2695 = vadd.f32 0.0, %v2694
    %2696 = vmatprep.mubr.bf16.mxu0 %v2304
    %2697 = vmatmul.mubr.bf16.gmra.mrb[0].mxu0 %v2303
    %v2698 = vpop.f32.mrb[0].mxu0
    %v2699 = vadd.f32 0.0, %v2698
    %v2700 = vpop.f32.mrb[0].mxu0
    %v2701 = vadd.f32 0.0, %v2700
    %v2702 = vpop.f32.mrb[0].mxu0
    %v2703 = vadd.f32 0.0, %v2702
    %v2704 = vpop.f32.mrb[0].mxu0
    %v2705 = vadd.f32 0.0, %v2704
    %2706 = vmatprep.mubr.bf16.mxu0 %v2306
    %2707 = vmatmul.mubr.bf16.gmra.mrb[0].mxu0 %v2305
    %v2708 = vpop.f32.mrb[0].mxu0
    %v2709 = vadd.f32 0.0, %v2708
    %v2710 = vpop.f32.mrb[0].mxu0
    %v2711 = vadd.f32 0.0, %v2710
    %v2712 = vpop.f32.mrb[0].mxu0
    %v2713 = vadd.f32 0.0, %v2712
    %v2714 = vpop.f32.mrb[0].mxu0
    %v2715 = vadd.f32 0.0, %v2714
    %2716 = vmatprep.mubr.bf16.mxu0 %v2308
    %2717 = vmatmul.mubr.bf16.gmra.mrb[0].mxu0 %v2307
    %v2718 = vpop.f32.mrb[0].mxu0
    %v2719 = vadd.f32 0.0, %v2718
    %v2720 = vpop.f32.mrb[0].mxu0
    %v2721 = vadd.f32 0.0, %v2720
    %v2722 = vpop.f32.mrb[0].mxu0
    %v2723 = vadd.f32 0.0, %v2722
    %v2724 = vpop.f32.mrb[0].mxu0
    %v2725 = vadd.f32 0.0, %v2724
    %2726 = vdwg.mxu0
    %2727 = vmatprep.subr.bf16.mxu0 %v2026
    %2728 = vmatpush1.bf16.msra.mxu0 %v2025
    %2729 = vmatprep.subr.bf16.mxu0 %v2034
    %2730 = vmatpush1.bf16.msra.mxu0 %v2033
    %2731 = vmatprep.subr.bf16.mxu0 %v2042
    %2732 = vmatpush1.bf16.msra.mxu0 %v2041
    %2733 = vmatprep.subr.bf16.mxu0 %v2050
    %2734 = vmatpush1.bf16.msra.mxu0 %v2049
    %2735 = vmatprep.subr.bf16.mxu0 %v2058
    %2736 = vmatpush1.bf16.msra.mxu0 %v2057
    %2737 = vmatprep.subr.bf16.mxu0 %v2066
    %2738 = vmatpush1.bf16.msra.mxu0 %v2065
    %2739 = vmatprep.subr.bf16.mxu0 %v2074
    %2740 = vmatpush1.bf16.msra.mxu0 %v2073
    %2741 = vmatprep.subr.bf16.mxu0 %v2082
    %2742 = vmatpush1.bf16.msra.mxu0 %v2081
    %2743 = vmatprep.subr.bf16.mxu0 %v2090
    %2744 = vmatpush1.bf16.msra.mxu0 %v2089
    %2745 = vmatprep.subr.bf16.mxu0 %v2098
    %2746 = vmatpush1.bf16.msra.mxu0 %v2097
    %2747 = vmatprep.subr.bf16.mxu0 %v2106
    %2748 = vmatpush1.bf16.msra.mxu0 %v2105
    %2749 = vmatprep.subr.bf16.mxu0 %v2114
    %2750 = vmatpush1.bf16.msra.mxu0 %v2113
    %2751 = vmatprep.subr.bf16.mxu0 %v2122
    %2752 = vmatpush1.bf16.msra.mxu0 %v2121
    %2753 = vmatprep.subr.bf16.mxu0 %v2130
    %2754 = vmatpush1.bf16.msra.mxu0 %v2129
    %2755 = vmatprep.subr.bf16.mxu0 %v2138
    %2756 = vmatpush1.bf16.msra.mxu0 %v2137
    %2757 = vmatprep.subr.bf16.mxu0 %v2146
    %2758 = vmatpush1.bf16.msra.mxu0 %v2145
    %2759 = vmatprep.mubr.bf16.mxu0 %v2278
    %2760 = vmatmul.mubr.bf16.gmra.mrb[0].mxu0 %v2277
    %v2761 = vpop.f32.mrb[0].mxu0
    %v2762 = vadd.f32 0.0, %v2761
    %v2763 = vpop.f32.mrb[0].mxu0
    %v2764 = vadd.f32 0.0, %v2763
    %v2765 = vpop.f32.mrb[0].mxu0
    %v2766 = vadd.f32 0.0, %v2765
    %v2767 = vpop.f32.mrb[0].mxu0
    %v2768 = vadd.f32 0.0, %v2767
    %2769 = vmatprep.mubr.bf16.mxu0 %v2280
    %2770 = vmatmul.mubr.bf16.gmra.mrb[0].mxu0 %v2279
    %v2771 = vpop.f32.mrb[0].mxu0
    %v2772 = vadd.f32 0.0, %v2771
    %v2773 = vpop.f32.mrb[0].mxu0
    %v2774 = vadd.f32 0.0, %v2773
    %v2775 = vpop.f32.mrb[0].mxu0
    %v2776 = vadd.f32 0.0, %v2775
    %v2777 = vpop.f32.mrb[0].mxu0
    %v2778 = vadd.f32 0.0, %v2777
    %2779 = vmatprep.mubr.bf16.mxu0 %v2282
    %2780 = vmatmul.mubr.bf16.gmra.mrb[0].mxu0 %v2281
    %v2781 = vpop.f32.mrb[0].mxu0
    %v2782 = vadd.f32 0.0, %v2781
    %v2783 = vpop.f32.mrb[0].mxu0
    %v2784 = vadd.f32 0.0, %v2783
    %v2785 = vpop.f32.mrb[0].mxu0
    %v2786 = vadd.f32 0.0, %v2785
    %v2787 = vpop.f32.mrb[0].mxu0
    %v2788 = vadd.f32 0.0, %v2787
    %2789 = vmatprep.mubr.bf16.mxu0 %v2284
    %2790 = vmatmul.mubr.bf16.gmra.mrb[0].mxu0 %v2283
    %v2791 = vpop.f32.mrb[0].mxu0
    %v2792 = vadd.f32 0.0, %v2791
    %v2793 = vpop.f32.mrb[0].mxu0
    %v2794 = vadd.f32 0.0, %v2793
    %v2795 = vpop.f32.mrb[0].mxu0
    %v2796 = vadd.f32 0.0, %v2795
    %v2797 = vpop.f32.mrb[0].mxu0
    %v2798 = vadd.f32 0.0, %v2797
    %2799 = vmatprep.mubr.bf16.mxu0 %v2286
    %2800 = vmatmul.mubr.bf16.gmra.mrb[0].mxu0 %v2285
    %v2801 = vpop.f32.mrb[0].mxu0
    %v2802 = vadd.f32 0.0, %v2801
    %v2803 = vpop.f32.mrb[0].mxu0
    %v2804 = vadd.f32 0.0, %v2803
    %v2805 = vpop.f32.mrb[0].mxu0
    %v2806 = vadd.f32 0.0, %v2805
    %v2807 = vpop.f32.mrb[0].mxu0
    %v2808 = vadd.f32 0.0, %v2807
    %2809 = vmatprep.mubr.bf16.mxu0 %v2288
    %2810 = vmatmul.mubr.bf16.gmra.mrb[0].mxu0 %v2287
    %v2811 = vpop.f32.mrb[0].mxu0
    %v2812 = vadd.f32 0.0, %v2811
    %v2813 = vpop.f32.mrb[0].mxu0
    %v2814 = vadd.f32 0.0, %v2813
    %v2815 = vpop.f32.mrb[0].mxu0
    %v2816 = vadd.f32 0.0, %v2815
    %v2817 = vpop.f32.mrb[0].mxu0
    %v2818 = vadd.f32 0.0, %v2817
    %2819 = vmatprep.mubr.bf16.mxu0 %v2290
    %2820 = vmatmul.mubr.bf16.gmra.mrb[0].mxu0 %v2289
    %v2821 = vpop.f32.mrb[0].mxu0
    %v2822 = vadd.f32 0.0, %v2821
    %v2823 = vpop.f32.mrb[0].mxu0
    %v2824 = vadd.f32 0.0, %v2823
    %v2825 = vpop.f32.mrb[0].mxu0
    %v2826 = vadd.f32 0.0, %v2825
    %v2827 = vpop.f32.mrb[0].mxu0
    %v2828 = vadd.f32 0.0, %v2827
    %2829 = vmatprep.mubr.bf16.mxu0 %v2292
    %2830 = vmatmul.mubr.bf16.gmra.mrb[0].mxu0 %v2291
    %v2831 = vpop.f32.mrb[0].mxu0
    %v2832 = vadd.f32 0.0, %v2831
    %v2833 = vpop.f32.mrb[0].mxu0
    %v2834 = vadd.f32 0.0, %v2833
    %v2835 = vpop.f32.mrb[0].mxu0
    %v2836 = vadd.f32 0.0, %v2835
    %v2837 = vpop.f32.mrb[0].mxu0
    %v2838 = vadd.f32 0.0, %v2837
    %2839 = vmatprep.mubr.bf16.mxu0 %v2294
    %2840 = vmatmul.mubr.bf16.gmra.mrb[0].mxu0 %v2293
    %v2841 = vpop.f32.mrb[0].mxu0
    %v2842 = vadd.f32 0.0, %v2841
    %v2843 = vpop.f32.mrb[0].mxu0
    %v2844 = vadd.f32 0.0, %v2843
    %v2845 = vpop.f32.mrb[0].mxu0
    %v2846 = vadd.f32 0.0, %v2845
    %v2847 = vpop.f32.mrb[0].mxu0
    %v2848 = vadd.f32 0.0, %v2847
    %2849 = vmatprep.mubr.bf16.mxu0 %v2296
    %2850 = vmatmul.mubr.bf16.gmra.mrb[0].mxu0 %v2295
    %v2851 = vpop.f32.mrb[0].mxu0
    %v2852 = vadd.f32 0.0, %v2851
    %v2853 = vpop.f32.mrb[0].mxu0
    %v2854 = vadd.f32 0.0, %v2853
    %v2855 = vpop.f32.mrb[0].mxu0
    %v2856 = vadd.f32 0.0, %v2855
    %v2857 = vpop.f32.mrb[0].mxu0
    %v2858 = vadd.f32 0.0, %v2857
    %2859 = vmatprep.mubr.bf16.mxu0 %v2298
    %2860 = vmatmul.mubr.bf16.gmra.mrb[0].mxu0 %v2297
    %v2861 = vpop.f32.mrb[0].mxu0
    %v2862 = vadd.f32 0.0, %v2861
    %v2863 = vpop.f32.mrb[0].mxu0
    %v2864 = vadd.f32 0.0, %v2863
    %v2865 = vpop.f32.mrb[0].mxu0
    %v2866 = vadd.f32 0.0, %v2865
    %v2867 = vpop.f32.mrb[0].mxu0
    %v2868 = vadd.f32 0.0, %v2867
    %2869 = vmatprep.mubr.bf16.mxu0 %v2300
    %2870 = vmatmul.mubr.bf16.gmra.mrb[0].mxu0 %v2299
    %v2871 = vpop.f32.mrb[0].mxu0
    %v2872 = vadd.f32 0.0, %v2871
    %v2873 = vpop.f32.mrb[0].mxu0
    %v2874 = vadd.f32 0.0, %v2873
    %v2875 = vpop.f32.mrb[0].mxu0
    %v2876 = vadd.f32 0.0, %v2875
    %v2877 = vpop.f32.mrb[0].mxu0
    %v2878 = vadd.f32 0.0, %v2877
    %2879 = vmatprep.mubr.bf16.mxu0 %v2302
    %2880 = vmatmul.mubr.bf16.gmra.mrb[0].mxu0 %v2301
    %v2881 = vpop.f32.mrb[0].mxu0
    %v2882 = vadd.f32 0.0, %v2881
    %v2883 = vpop.f32.mrb[0].mxu0
    %v2884 = vadd.f32 0.0, %v2883
    %v2885 = vpop.f32.mrb[0].mxu0
    %v2886 = vadd.f32 0.0, %v2885
    %v2887 = vpop.f32.mrb[0].mxu0
    %v2888 = vadd.f32 0.0, %v2887
    %2889 = vmatprep.mubr.bf16.mxu0 %v2304
    %2890 = vmatmul.mubr.bf16.gmra.mrb[0].mxu0 %v2303
    %v2891 = vpop.f32.mrb[0].mxu0
    %v2892 = vadd.f32 0.0, %v2891
    %v2893 = vpop.f32.mrb[0].mxu0
    %v2894 = vadd.f32 0.0, %v2893
    %v2895 = vpop.f32.mrb[0].mxu0
    %v2896 = vadd.f32 0.0, %v2895
    %v2897 = vpop.f32.mrb[0].mxu0
    %v2898 = vadd.f32 0.0, %v2897
    %2899 = vmatprep.mubr.bf16.mxu0 %v2306
    %2900 = vmatmul.mubr.bf16.gmra.mrb[0].mxu0 %v2305
    %v2901 = vpop.f32.mrb[0].mxu0
    %v2902 = vadd.f32 0.0, %v2901
    %v2903 = vpop.f32.mrb[0].mxu0
    %v2904 = vadd.f32 0.0, %v2903
    %v2905 = vpop.f32.mrb[0].mxu0
    %v2906 = vadd.f32 0.0, %v2905
    %v2907 = vpop.f32.mrb[0].mxu0
    %v2908 = vadd.f32 0.0, %v2907
    %2909 = vmatprep.mubr.bf16.mxu0 %v2308
    %2910 = vmatmul.mubr.bf16.gmra.mrb[0].mxu0 %v2307
    %v2911 = vpop.f32.mrb[0].mxu0
    %v2912 = vadd.f32 0.0, %v2911
    %v2913 = vpop.f32.mrb[0].mxu0
    %v2914 = vadd.f32 0.0, %v2913
    %v2915 = vpop.f32.mrb[0].mxu0
    %v2916 = vadd.f32 0.0, %v2915
    %v2917 = vpop.f32.mrb[0].mxu0
    %v2918 = vadd.f32 0.0, %v2917
    %2919 = vdwg.mxu0
    %2920 = vmatprep.subr.bf16.mxu0 %v2028
    %2921 = vmatpush1.bf16.msra.mxu0 %v2027
    %2922 = vmatprep.subr.bf16.mxu0 %v2036
    %2923 = vmatpush1.bf16.msra.mxu0 %v2035
    %2924 = vmatprep.subr.bf16.mxu0 %v2044
    %2925 = vmatpush1.bf16.msra.mxu0 %v2043
    %2926 = vmatprep.subr.bf16.mxu0 %v2052
    %2927 = vmatpush1.bf16.msra.mxu0 %v2051
    %2928 = vmatprep.subr.bf16.mxu0 %v2060
    %2929 = vmatpush1.bf16.msra.mxu0 %v2059
    %2930 = vmatprep.subr.bf16.mxu0 %v2068
    %2931 = vmatpush1.bf16.msra.mxu0 %v2067
    %2932 = vmatprep.subr.bf16.mxu0 %v2076
    %2933 = vmatpush1.bf16.msra.mxu0 %v2075
    %2934 = vmatprep.subr.bf16.mxu0 %v2084
    %2935 = vmatpush1.bf16.msra.mxu0 %v2083
    %2936 = vmatprep.subr.bf16.mxu0 %v2092
    %2937 = vmatpush1.bf16.msra.mxu0 %v2091
    %2938 = vmatprep.subr.bf16.mxu0 %v2100
    %2939 = vmatpush1.bf16.msra.mxu0 %v2099
    %2940 = vmatprep.subr.bf16.mxu0 %v2108
    %2941 = vmatpush1.bf16.msra.mxu0 %v2107
    %2942 = vmatprep.subr.bf16.mxu0 %v2116
    %2943 = vmatpush1.bf16.msra.mxu0 %v2115
    %2944 = vmatprep.subr.bf16.mxu0 %v2124
    %2945 = vmatpush1.bf16.msra.mxu0 %v2123
    %2946 = vmatprep.subr.bf16.mxu0 %v2132
    %2947 = vmatpush1.bf16.msra.mxu0 %v2131
    %2948 = vmatprep.subr.bf16.mxu0 %v2140
    %2949 = vmatpush1.bf16.msra.mxu0 %v2139
    %2950 = vmatprep.subr.bf16.mxu0 %v2148
    %2951 = vmatpush1.bf16.msra.mxu0 %v2147
    %2952 = vmatprep.mubr.bf16.mxu0 %v2278
    %2953 = vmatmul.mubr.bf16.gmra.mrb[0].mxu0 %v2277
    %v2954 = vpop.f32.mrb[0].mxu0
    %v2955 = vadd.f32 0.0, %v2954
    %v2956 = vpop.f32.mrb[0].mxu0
    %v2957 = vadd.f32 0.0, %v2956
    %v2958 = vpop.f32.mrb[0].mxu0
    %v2959 = vadd.f32 0.0, %v2958
    %v2960 = vpop.f32.mrb[0].mxu0
    %v2961 = vadd.f32 0.0, %v2960
    %2962 = vmatprep.mubr.bf16.mxu0 %v2280
    %2963 = vmatmul.mubr.bf16.gmra.mrb[0].mxu0 %v2279
    %v2964 = vpop.f32.mrb[0].mxu0
    %v2965 = vadd.f32 0.0, %v2964
    %v2966 = vpop.f32.mrb[0].mxu0
    %v2967 = vadd.f32 0.0, %v2966
    %v2968 = vpop.f32.mrb[0].mxu0
    %v2969 = vadd.f32 0.0, %v2968
    %v2970 = vpop.f32.mrb[0].mxu0
    %v2971 = vadd.f32 0.0, %v2970
    %2972 = vmatprep.mubr.bf16.mxu0 %v2282
    %2973 = vmatmul.mubr.bf16.gmra.mrb[0].mxu0 %v2281
    %v2974 = vpop.f32.mrb[0].mxu0
    %v2975 = vadd.f32 0.0, %v2974
    %v2976 = vpop.f32.mrb[0].mxu0
    %v2977 = vadd.f32 0.0, %v2976
    %v2978 = vpop.f32.mrb[0].mxu0
    %v2979 = vadd.f32 0.0, %v2978
    %v2980 = vpop.f32.mrb[0].mxu0
    %v2981 = vadd.f32 0.0, %v2980
    %2982 = vmatprep.mubr.bf16.mxu0 %v2284
    %2983 = vmatmul.mubr.bf16.gmra.mrb[0].mxu0 %v2283
    %v2984 = vpop.f32.mrb[0].mxu0
    %v2985 = vadd.f32 0.0, %v2984
    %v2986 = vpop.f32.mrb[0].mxu0
    %v2987 = vadd.f32 0.0, %v2986
    %v2988 = vpop.f32.mrb[0].mxu0
    %v2989 = vadd.f32 0.0, %v2988
    %v2990 = vpop.f32.mrb[0].mxu0
    %v2991 = vadd.f32 0.0, %v2990
    %2992 = vmatprep.mubr.bf16.mxu0 %v2286
    %2993 = vmatmul.mubr.bf16.gmra.mrb[0].mxu0 %v2285
    %v2994 = vpop.f32.mrb[0].mxu0
    %v2995 = vadd.f32 0.0, %v2994
    %v2996 = vpop.f32.mrb[0].mxu0
    %v2997 = vadd.f32 0.0, %v2996
    %v2998 = vpop.f32.mrb[0].mxu0
    %v2999 = vadd.f32 0.0, %v2998
    %v3000 = vpop.f32.mrb[0].mxu0
    %v3001 = vadd.f32 0.0, %v3000
    %3002 = vmatprep.mubr.bf16.mxu0 %v2288
    %3003 = vmatmul.mubr.bf16.gmra.mrb[0].mxu0 %v2287
    %v3004 = vpop.f32.mrb[0].mxu0
    %v3005 = vadd.f32 0.0, %v3004
    %v3006 = vpop.f32.mrb[0].mxu0
    %v3007 = vadd.f32 0.0, %v3006
    %v3008 = vpop.f32.mrb[0].mxu0
    %v3009 = vadd.f32 0.0, %v3008
    %v3010 = vpop.f32.mrb[0].mxu0
    %v3011 = vadd.f32 0.0, %v3010
    %3012 = vmatprep.mubr.bf16.mxu0 %v2290
    %3013 = vmatmul.mubr.bf16.gmra.mrb[0].mxu0 %v2289
    %v3014 = vpop.f32.mrb[0].mxu0
    %v3015 = vadd.f32 0.0, %v3014
    %v3016 = vpop.f32.mrb[0].mxu0
    %v3017 = vadd.f32 0.0, %v3016
    %v3018 = vpop.f32.mrb[0].mxu0
    %v3019 = vadd.f32 0.0, %v3018
    %v3020 = vpop.f32.mrb[0].mxu0
    %v3021 = vadd.f32 0.0, %v3020
    %3022 = vmatprep.mubr.bf16.mxu0 %v2292
    %3023 = vmatmul.mubr.bf16.gmra.mrb[0].mxu0 %v2291
    %v3024 = vpop.f32.mrb[0].mxu0
    %v3025 = vadd.f32 0.0, %v3024
    %v3026 = vpop.f32.mrb[0].mxu0
    %v3027 = vadd.f32 0.0, %v3026
    %v3028 = vpop.f32.mrb[0].mxu0
    %v3029 = vadd.f32 0.0, %v3028
    %v3030 = vpop.f32.mrb[0].mxu0
    %v3031 = vadd.f32 0.0, %v3030
    %3032 = vmatprep.mubr.bf16.mxu0 %v2294
    %3033 = vmatmul.mubr.bf16.gmra.mrb[0].mxu0 %v2293
    %v3034 = vpop.f32.mrb[0].mxu0
    %v3035 = vadd.f32 0.0, %v3034
    %v3036 = vpop.f32.mrb[0].mxu0
    %v3037 = vadd.f32 0.0, %v3036
    %v3038 = vpop.f32.mrb[0].mxu0
    %v3039 = vadd.f32 0.0, %v3038
    %v3040 = vpop.f32.mrb[0].mxu0
    %v3041 = vadd.f32 0.0, %v3040
    %3042 = vmatprep.mubr.bf16.mxu0 %v2296
    %3043 = vmatmul.mubr.bf16.gmra.mrb[0].mxu0 %v2295
    %v3044 = vpop.f32.mrb[0].mxu0
    %v3045 = vadd.f32 0.0, %v3044
    %v3046 = vpop.f32.mrb[0].mxu0
    %v3047 = vadd.f32 0.0, %v3046
    %v3048 = vpop.f32.mrb[0].mxu0
    %v3049 = vadd.f32 0.0, %v3048
    %v3050 = vpop.f32.mrb[0].mxu0
    %v3051 = vadd.f32 0.0, %v3050
    %3052 = vmatprep.mubr.bf16.mxu0 %v2298
    %3053 = vmatmul.mubr.bf16.gmra.mrb[0].mxu0 %v2297
    %v3054 = vpop.f32.mrb[0].mxu0
    %v3055 = vadd.f32 0.0, %v3054
    %v3056 = vpop.f32.mrb[0].mxu0
    %v3057 = vadd.f32 0.0, %v3056
    %v3058 = vpop.f32.mrb[0].mxu0
    %v3059 = vadd.f32 0.0, %v3058
    %v3060 = vpop.f32.mrb[0].mxu0
    %v3061 = vadd.f32 0.0, %v3060
    %3062 = vmatprep.mubr.bf16.mxu0 %v2300
    %3063 = vmatmul.mubr.bf16.gmra.mrb[0].mxu0 %v2299
    %v3064 = vpop.f32.mrb[0].mxu0
    %v3065 = vadd.f32 0.0, %v3064
    %v3066 = vpop.f32.mrb[0].mxu0
    %v3067 = vadd.f32 0.0, %v3066
    %v3068 = vpop.f32.mrb[0].mxu0
    %v3069 = vadd.f32 0.0, %v3068
    %v3070 = vpop.f32.mrb[0].mxu0
    %v3071 = vadd.f32 0.0, %v3070
    %3072 = vmatprep.mubr.bf16.mxu0 %v2302
    %3073 = vmatmul.mubr.bf16.gmra.mrb[0].mxu0 %v2301
    %v3074 = vpop.f32.mrb[0].mxu0
    %v3075 = vadd.f32 0.0, %v3074
    %v3076 = vpop.f32.mrb[0].mxu0
    %v3077 = vadd.f32 0.0, %v3076
    %v3078 = vpop.f32.mrb[0].mxu0
    %v3079 = vadd.f32 0.0, %v3078
    %v3080 = vpop.f32.mrb[0].mxu0
    %v3081 = vadd.f32 0.0, %v3080
    %3082 = vmatprep.mubr.bf16.mxu0 %v2304
    %3083 = vmatmul.mubr.bf16.gmra.mrb[0].mxu0 %v2303
    %v3084 = vpop.f32.mrb[0].mxu0
    %v3085 = vadd.f32 0.0, %v3084
    %v3086 = vpop.f32.mrb[0].mxu0
    %v3087 = vadd.f32 0.0, %v3086
    %v3088 = vpop.f32.mrb[0].mxu0
    %v3089 = vadd.f32 0.0, %v3088
    %v3090 = vpop.f32.mrb[0].mxu0
    %v3091 = vadd.f32 0.0, %v3090
    %3092 = vmatprep.mubr.bf16.mxu0 %v2306
    %3093 = vmatmul.mubr.bf16.gmra.mrb[0].mxu0 %v2305
    %v3094 = vpop.f32.mrb[0].mxu0
    %v3095 = vadd.f32 0.0, %v3094
    %v3096 = vpop.f32.mrb[0].mxu0
    %v3097 = vadd.f32 0.0, %v3096
    %v3098 = vpop.f32.mrb[0].mxu0
    %v3099 = vadd.f32 0.0, %v3098
    %v3100 = vpop.f32.mrb[0].mxu0
    %v3101 = vadd.f32 0.0, %v3100
    %3102 = vmatprep.mubr.bf16.mxu0 %v2308
    %3103 = vmatmul.mubr.bf16.gmra.mrb[0].mxu0 %v2307
    %v3104 = vpop.f32.mrb[0].mxu0
    %v3105 = vadd.f32 0.0, %v3104
    %v3106 = vpop.f32.mrb[0].mxu0
    %v3107 = vadd.f32 0.0, %v3106
    %v3108 = vpop.f32.mrb[0].mxu0
    %v3109 = vadd.f32 0.0, %v3108
    %v3110 = vpop.f32.mrb[0].mxu0
    %v3111 = vadd.f32 0.0, %v3110
    %3112 = vdwg.mxu0
    %v3113 = vpack.c.bf16 %v2380, %v2376
    %v3114 = vpack.c.bf16 %v2382, %v2378
    %v3115 = vpack.c.bf16 %v2573, %v2569
    %v3116 = vpack.c.bf16 %v2575, %v2571
    %v3117 = vpack.c.bf16 %v2766, %v2762
    %v3118 = vpack.c.bf16 %v2768, %v2764
    %v3119 = vpack.c.bf16 %v2959, %v2955
    %v3120 = vpack.c.bf16 %v2961, %v2957
    %v3121 = vpack.c.bf16 %v2390, %v2386
    %v3122 = vpack.c.bf16 %v2392, %v2388
    %v3123 = vpack.c.bf16 %v2583, %v2579
    %v3124 = vpack.c.bf16 %v2585, %v2581
    %v3125 = vpack.c.bf16 %v2776, %v2772
    %v3126 = vpack.c.bf16 %v2778, %v2774
    %v3127 = vpack.c.bf16 %v2969, %v2965
    %v3128 = vpack.c.bf16 %v2971, %v2967
    %v3129 = vpack.c.bf16 %v2400, %v2396
    %v3130 = vpack.c.bf16 %v2402, %v2398
    %v3131 = vpack.c.bf16 %v2593, %v2589
    %v3132 = vpack.c.bf16 %v2595, %v2591
    %v3133 = vpack.c.bf16 %v2786, %v2782
    %v3134 = vpack.c.bf16 %v2788, %v2784
    %v3135 = vpack.c.bf16 %v2979, %v2975
    %v3136 = vpack.c.bf16 %v2981, %v2977
    %v3137 = vpack.c.bf16 %v2410, %v2406
    %v3138 = vpack.c.bf16 %v2412, %v2408
    %v3139 = vpack.c.bf16 %v2603, %v2599
    %v3140 = vpack.c.bf16 %v2605, %v2601
    %v3141 = vpack.c.bf16 %v2796, %v2792
    %v3142 = vpack.c.bf16 %v2798, %v2794
    %v3143 = vpack.c.bf16 %v2989, %v2985
    %v3144 = vpack.c.bf16 %v2991, %v2987
    %v3145 = vpack.c.bf16 %v2420, %v2416
    %v3146 = vpack.c.bf16 %v2422, %v2418
    %v3147 = vpack.c.bf16 %v2613, %v2609
    %v3148 = vpack.c.bf16 %v2615, %v2611
    %v3149 = vpack.c.bf16 %v2806, %v2802
    %v3150 = vpack.c.bf16 %v2808, %v2804
    %v3151 = vpack.c.bf16 %v2999, %v2995
    %v3152 = vpack.c.bf16 %v3001, %v2997
    %v3153 = vpack.c.bf16 %v2430, %v2426
    %v3154 = vpack.c.bf16 %v2432, %v2428
    %v3155 = vpack.c.bf16 %v2623, %v2619
    %v3156 = vpack.c.bf16 %v2625, %v2621
    %v3157 = vpack.c.bf16 %v2816, %v2812
    %v3158 = vpack.c.bf16 %v2818, %v2814
    %v3159 = vpack.c.bf16 %v3009, %v3005
    %v3160 = vpack.c.bf16 %v3011, %v3007
    %v3161 = vpack.c.bf16 %v2440, %v2436
    %v3162 = vpack.c.bf16 %v2442, %v2438
    %v3163 = vpack.c.bf16 %v2633, %v2629
    %v3164 = vpack.c.bf16 %v2635, %v2631
    %v3165 = vpack.c.bf16 %v2826, %v2822
    %v3166 = vpack.c.bf16 %v2828, %v2824
    %v3167 = vpack.c.bf16 %v3019, %v3015
    %v3168 = vpack.c.bf16 %v3021, %v3017
    %v3169 = vpack.c.bf16 %v2450, %v2446
    %v3170 = vpack.c.bf16 %v2452, %v2448
    %v3171 = vpack.c.bf16 %v2643, %v2639
    %v3172 = vpack.c.bf16 %v2645, %v2641
    %v3173 = vpack.c.bf16 %v2836, %v2832
    %v3174 = vpack.c.bf16 %v2838, %v2834
    %v3175 = vpack.c.bf16 %v3029, %v3025
    %v3176 = vpack.c.bf16 %v3031, %v3027
    %v3177 = vpack.c.bf16 %v2460, %v2456
    %v3178 = vpack.c.bf16 %v2462, %v2458
    %v3179 = vpack.c.bf16 %v2653, %v2649
    %v3180 = vpack.c.bf16 %v2655, %v2651
    %v3181 = vpack.c.bf16 %v2846, %v2842
    %v3182 = vpack.c.bf16 %v2848, %v2844
    %v3183 = vpack.c.bf16 %v3039, %v3035
    %v3184 = vpack.c.bf16 %v3041, %v3037
    %v3185 = vpack.c.bf16 %v2470, %v2466
    %v3186 = vpack.c.bf16 %v2472, %v2468
    %v3187 = vpack.c.bf16 %v2663, %v2659
    %v3188 = vpack.c.bf16 %v2665, %v2661
    %v3189 = vpack.c.bf16 %v2856, %v2852
    %v3190 = vpack.c.bf16 %v2858, %v2854
    %v3191 = vpack.c.bf16 %v3049, %v3045
    %v3192 = vpack.c.bf16 %v3051, %v3047
    %v3193 = vpack.c.bf16 %v2480, %v2476
    %v3194 = vpack.c.bf16 %v2482, %v2478
    %v3195 = vpack.c.bf16 %v2673, %v2669
    %v3196 = vpack.c.bf16 %v2675, %v2671
    %v3197 = vpack.c.bf16 %v2866, %v2862
    %v3198 = vpack.c.bf16 %v2868, %v2864
    %v3199 = vpack.c.bf16 %v3059, %v3055
    %v3200 = vpack.c.bf16 %v3061, %v3057
    %v3201 = vpack.c.bf16 %v2490, %v2486
    %v3202 = vpack.c.bf16 %v2492, %v2488
    %v3203 = vpack.c.bf16 %v2683, %v2679
    %v3204 = vpack.c.bf16 %v2685, %v2681
    %v3205 = vpack.c.bf16 %v2876, %v2872
    %v3206 = vpack.c.bf16 %v2878, %v2874
    %v3207 = vpack.c.bf16 %v3069, %v3065
    %v3208 = vpack.c.bf16 %v3071, %v3067
    %v3209 = vpack.c.bf16 %v2500, %v2496
    %v3210 = vpack.c.bf16 %v2502, %v2498
    %v3211 = vpack.c.bf16 %v2693, %v2689
    %v3212 = vpack.c.bf16 %v2695, %v2691
    %v3213 = vpack.c.bf16 %v2886, %v2882
    %v3214 = vpack.c.bf16 %v2888, %v2884
    %v3215 = vpack.c.bf16 %v3079, %v3075
    %v3216 = vpack.c.bf16 %v3081, %v3077
    %v3217 = vpack.c.bf16 %v2510, %v2506
    %v3218 = vpack.c.bf16 %v2512, %v2508
    %v3219 = vpack.c.bf16 %v2703, %v2699
    %v3220 = vpack.c.bf16 %v2705, %v2701
    %v3221 = vpack.c.bf16 %v2896, %v2892
    %v3222 = vpack.c.bf16 %v2898, %v2894
    %v3223 = vpack.c.bf16 %v3089, %v3085
    %v3224 = vpack.c.bf16 %v3091, %v3087
    %v3225 = vpack.c.bf16 %v2520, %v2516
    %v3226 = vpack.c.bf16 %v2522, %v2518
    %v3227 = vpack.c.bf16 %v2713, %v2709
    %v3228 = vpack.c.bf16 %v2715, %v2711
    %v3229 = vpack.c.bf16 %v2906, %v2902
    %v3230 = vpack.c.bf16 %v2908, %v2904
    %v3231 = vpack.c.bf16 %v3099, %v3095
    %v3232 = vpack.c.bf16 %v3101, %v3097
    %v3233 = vpack.c.bf16 %v2530, %v2526
    %v3234 = vpack.c.bf16 %v2532, %v2528
    %v3235 = vpack.c.bf16 %v2723, %v2719
    %v3236 = vpack.c.bf16 %v2725, %v2721
    %v3237 = vpack.c.bf16 %v2916, %v2912
    %v3238 = vpack.c.bf16 %v2918, %v2914
    %v3239 = vpack.c.bf16 %v3109, %v3105
    %v3240 = vpack.c.bf16 %v3111, %v3107
    %v3241 = vld [vmem:[#allocation11] sm:$0xf]
    %v3242 = vld [vmem:[#allocation11 + $0x4] sm:$0xf]
    %v3243 = vld [vmem:[#allocation11 + $0x8] sm:$0xf]
    %v3244 = vld [vmem:[#allocation11 + $0xc] sm:$0xf]
    %v3245 = vld [vmem:[#allocation11 + $0x10] sm:$0xf]
    %v3246 = vld [vmem:[#allocation11 + $0x14] sm:$0xf]
    %v3247 = vld [vmem:[#allocation11 + $0x18] sm:$0xf]
    %v3248 = vld [vmem:[#allocation11 + $0x1c] sm:$0xf]
    %v3249 = vld [vmem:[#allocation11 + $0x20] sm:$0xf]
    %v3250 = vld [vmem:[#allocation11 + $0x24] sm:$0xf]
    %v3251 = vld [vmem:[#allocation11 + $0x28] sm:$0xf]
    %v3252 = vld [vmem:[#allocation11 + $0x2c] sm:$0xf]
    %v3253 = vld [vmem:[#allocation11 + $0x30] sm:$0xf]
    %v3254 = vld [vmem:[#allocation11 + $0x34] sm:$0xf]
    %v3255 = vld [vmem:[#allocation11 + $0x38] sm:$0xf]
    %v3256 = vld [vmem:[#allocation11 + $0x3c] sm:$0xf]
    %v3257 = vld [vmem:[#allocation11 + $0x40] sm:$0xf]
    %v3258 = vld [vmem:[#allocation11 + $0x44] sm:$0xf]
    %v3259 = vld [vmem:[#allocation11 + $0x48] sm:$0xf]
    %v3260 = vld [vmem:[#allocation11 + $0x4c] sm:$0xf]
    %v3261 = vld [vmem:[#allocation11 + $0x50] sm:$0xf]
    %v3262 = vld [vmem:[#allocation11 + $0x54] sm:$0xf]
    %v3263 = vld [vmem:[#allocation11 + $0x58] sm:$0xf]
    %v3264 = vld [vmem:[#allocation11 + $0x5c] sm:$0xf]
    %v3265 = vld [vmem:[#allocation11 + $0x60] sm:$0xf]
    %v3266 = vld [vmem:[#allocation11 + $0x64] sm:$0xf]
    %v3267 = vld [vmem:[#allocation11 + $0x68] sm:$0xf]
    %v3268 = vld [vmem:[#allocation11 + $0x6c] sm:$0xf]
    %v3269 = vld [vmem:[#allocation11 + $0x70] sm:$0xf]
    %v3270 = vld [vmem:[#allocation11 + $0x74] sm:$0xf]
    %v3271 = vld [vmem:[#allocation11 + $0x78] sm:$0xf]
    %v3272 = vld [vmem:[#allocation11 + $0x7c] sm:$0xf]
    %3274 = vset.pattern.permute.xlu0 0
    %3275 = vperm.xlu0 %3274, %v3241
    %v3276 = vpop.permute.xlu0 %3275
    %v3279 = vunpack.c.l.s4 839922192
    %v3280 = vunpack.c.0.s8 %v3279
    %v3281 = vlaneseq
    %v3282 = vshrl.u32 %v3281, 7
    %v3283 = vsub.s32 %v3280, %v3282
    %v3284 = vrot.slane %v3276, %v3283
    %3286 = vset.pattern.permute.xlu0 0
    %3287 = vperm.xlu0 %3286, %v3242
    %v3288 = vpop.permute.xlu0 %3287
    %v3291 = vunpack.c.l.s4 839922192
    %v3292 = vunpack.c.0.s8 %v3291
    %v3293 = vlaneseq
    %v3294 = vshrl.u32 %v3293, 7
    %v3295 = vsub.s32 %v3292, %v3294
    %v3296 = vrot.slane %v3288, %v3295
    %3298 = vset.pattern.permute.xlu0 0
    %3299 = vperm.xlu0 %3298, %v3243
    %v3300 = vpop.permute.xlu0 %3299
    %v3303 = vunpack.c.l.s4 839922192
    %v3304 = vunpack.c.0.s8 %v3303
    %v3305 = vlaneseq
    %v3306 = vshrl.u32 %v3305, 7
    %v3307 = vsub.s32 %v3304, %v3306
    %v3308 = vrot.slane %v3300, %v3307
    %3310 = vset.pattern.permute.xlu0 0
    %3311 = vperm.xlu0 %3310, %v3244
    %v3312 = vpop.permute.xlu0 %3311
    %v3315 = vunpack.c.l.s4 839922192
    %v3316 = vunpack.c.0.s8 %v3315
    %v3317 = vlaneseq
    %v3318 = vshrl.u32 %v3317, 7
    %v3319 = vsub.s32 %v3316, %v3318
    %v3320 = vrot.slane %v3312, %v3319
    %3322 = vset.pattern.permute.xlu0 0
    %3323 = vperm.xlu0 %3322, %v3245
    %v3324 = vpop.permute.xlu0 %3323
    %v3327 = vunpack.c.l.s4 839922192
    %v3328 = vunpack.c.0.s8 %v3327
    %v3329 = vlaneseq
    %v3330 = vshrl.u32 %v3329, 7
    %v3331 = vsub.s32 %v3328, %v3330
    %v3332 = vrot.slane %v3324, %v3331
    %3334 = vset.pattern.permute.xlu0 0
    %3335 = vperm.xlu0 %3334, %v3246
    %v3336 = vpop.permute.xlu0 %3335
    %v3339 = vunpack.c.l.s4 839922192
    %v3340 = vunpack.c.0.s8 %v3339
    %v3341 = vlaneseq
    %v3342 = vshrl.u32 %v3341, 7
    %v3343 = vsub.s32 %v3340, %v3342
    %v3344 = vrot.slane %v3336, %v3343
    %3346 = vset.pattern.permute.xlu0 0
    %3347 = vperm.xlu0 %3346, %v3247
    %v3348 = vpop.permute.xlu0 %3347
    %v3351 = vunpack.c.l.s4 839922192
    %v3352 = vunpack.c.0.s8 %v3351
    %v3353 = vlaneseq
    %v3354 = vshrl.u32 %v3353, 7
    %v3355 = vsub.s32 %v3352, %v3354
    %v3356 = vrot.slane %v3348, %v3355
    %3358 = vset.pattern.permute.xlu0 0
    %3359 = vperm.xlu0 %3358, %v3248
    %v3360 = vpop.permute.xlu0 %3359
    %v3363 = vunpack.c.l.s4 839922192
    %v3364 = vunpack.c.0.s8 %v3363
    %v3365 = vlaneseq
    %v3366 = vshrl.u32 %v3365, 7
    %v3367 = vsub.s32 %v3364, %v3366
    %v3368 = vrot.slane %v3360, %v3367
    %3370 = vset.pattern.permute.xlu0 0
    %3371 = vperm.xlu0 %3370, %v3249
    %v3372 = vpop.permute.xlu0 %3371
    %v3375 = vunpack.c.l.s4 839922192
    %v3376 = vunpack.c.0.s8 %v3375
    %v3377 = vlaneseq
    %v3378 = vshrl.u32 %v3377, 7
    %v3379 = vsub.s32 %v3376, %v3378
    %v3380 = vrot.slane %v3372, %v3379
    %3382 = vset.pattern.permute.xlu0 0
    %3383 = vperm.xlu0 %3382, %v3250
    %v3384 = vpop.permute.xlu0 %3383
    %v3387 = vunpack.c.l.s4 839922192
    %v3388 = vunpack.c.0.s8 %v3387
    %v3389 = vlaneseq
    %v3390 = vshrl.u32 %v3389, 7
    %v3391 = vsub.s32 %v3388, %v3390
    %v3392 = vrot.slane %v3384, %v3391
    %3394 = vset.pattern.permute.xlu0 0
    %3395 = vperm.xlu0 %3394, %v3251
    %v3396 = vpop.permute.xlu0 %3395
    %v3399 = vunpack.c.l.s4 839922192
    %v3400 = vunpack.c.0.s8 %v3399
    %v3401 = vlaneseq
    %v3402 = vshrl.u32 %v3401, 7
    %v3403 = vsub.s32 %v3400, %v3402
    %v3404 = vrot.slane %v3396, %v3403
    %3406 = vset.pattern.permute.xlu0 0
    %3407 = vperm.xlu0 %3406, %v3252
    %v3408 = vpop.permute.xlu0 %3407
    %v3411 = vunpack.c.l.s4 839922192
    %v3412 = vunpack.c.0.s8 %v3411
    %v3413 = vlaneseq
    %v3414 = vshrl.u32 %v3413, 7
    %v3415 = vsub.s32 %v3412, %v3414
    %v3416 = vrot.slane %v3408, %v3415
    %3418 = vset.pattern.permute.xlu0 0
    %3419 = vperm.xlu0 %3418, %v3253
    %v3420 = vpop.permute.xlu0 %3419
    %v3423 = vunpack.c.l.s4 839922192
    %v3424 = vunpack.c.0.s8 %v3423
    %v3425 = vlaneseq
    %v3426 = vshrl.u32 %v3425, 7
    %v3427 = vsub.s32 %v3424, %v3426
    %v3428 = vrot.slane %v3420, %v3427
    %3430 = vset.pattern.permute.xlu0 0
    %3431 = vperm.xlu0 %3430, %v3254
    %v3432 = vpop.permute.xlu0 %3431
    %v3435 = vunpack.c.l.s4 839922192
    %v3436 = vunpack.c.0.s8 %v3435
    %v3437 = vlaneseq
    %v3438 = vshrl.u32 %v3437, 7
    %v3439 = vsub.s32 %v3436, %v3438
    %v3440 = vrot.slane %v3432, %v3439
    %3442 = vset.pattern.permute.xlu0 0
    %3443 = vperm.xlu0 %3442, %v3255
    %v3444 = vpop.permute.xlu0 %3443
    %v3447 = vunpack.c.l.s4 839922192
    %v3448 = vunpack.c.0.s8 %v3447
    %v3449 = vlaneseq
    %v3450 = vshrl.u32 %v3449, 7
    %v3451 = vsub.s32 %v3448, %v3450
    %v3452 = vrot.slane %v3444, %v3451
    %3454 = vset.pattern.permute.xlu0 0
    %3455 = vperm.xlu0 %3454, %v3256
    %v3456 = vpop.permute.xlu0 %3455
    %v3459 = vunpack.c.l.s4 839922192
    %v3460 = vunpack.c.0.s8 %v3459
    %v3461 = vlaneseq
    %v3462 = vshrl.u32 %v3461, 7
    %v3463 = vsub.s32 %v3460, %v3462
    %v3464 = vrot.slane %v3456, %v3463
    %3466 = vset.pattern.permute.xlu0 0
    %3467 = vperm.xlu0 %3466, %v3257
    %v3468 = vpop.permute.xlu0 %3467
    %v3471 = vunpack.c.l.s4 839922192
    %v3472 = vunpack.c.0.s8 %v3471
    %v3473 = vlaneseq
    %v3474 = vshrl.u32 %v3473, 7
    %v3475 = vsub.s32 %v3472, %v3474
    %v3476 = vrot.slane %v3468, %v3475
    %3478 = vset.pattern.permute.xlu0 0
    %3479 = vperm.xlu0 %3478, %v3258
    %v3480 = vpop.permute.xlu0 %3479
    %v3483 = vunpack.c.l.s4 839922192
    %v3484 = vunpack.c.0.s8 %v3483
    %v3485 = vlaneseq
    %v3486 = vshrl.u32 %v3485, 7
    %v3487 = vsub.s32 %v3484, %v3486
    %v3488 = vrot.slane %v3480, %v3487
    %3490 = vset.pattern.permute.xlu0 0
    %3491 = vperm.xlu0 %3490, %v3259
    %v3492 = vpop.permute.xlu0 %3491
    %v3495 = vunpack.c.l.s4 839922192
    %v3496 = vunpack.c.0.s8 %v3495
    %v3497 = vlaneseq
    %v3498 = vshrl.u32 %v3497, 7
    %v3499 = vsub.s32 %v3496, %v3498
    %v3500 = vrot.slane %v3492, %v3499
    %3502 = vset.pattern.permute.xlu0 0
    %3503 = vperm.xlu0 %3502, %v3260
    %v3504 = vpop.permute.xlu0 %3503
    %v3507 = vunpack.c.l.s4 839922192
    %v3508 = vunpack.c.0.s8 %v3507
    %v3509 = vlaneseq
    %v3510 = vshrl.u32 %v3509, 7
    %v3511 = vsub.s32 %v3508, %v3510
    %v3512 = vrot.slane %v3504, %v3511
    %3514 = vset.pattern.permute.xlu0 0
    %3515 = vperm.xlu0 %3514, %v3261
    %v3516 = vpop.permute.xlu0 %3515
    %v3519 = vunpack.c.l.s4 839922192
    %v3520 = vunpack.c.0.s8 %v3519
    %v3521 = vlaneseq
    %v3522 = vshrl.u32 %v3521, 7
    %v3523 = vsub.s32 %v3520, %v3522
    %v3524 = vrot.slane %v3516, %v3523
    %3526 = vset.pattern.permute.xlu0 0
    %3527 = vperm.xlu0 %3526, %v3262
    %v3528 = vpop.permute.xlu0 %3527
    %v3531 = vunpack.c.l.s4 839922192
    %v3532 = vunpack.c.0.s8 %v3531
    %v3533 = vlaneseq
    %v3534 = vshrl.u32 %v3533, 7
    %v3535 = vsub.s32 %v3532, %v3534
    %v3536 = vrot.slane %v3528, %v3535
    %3538 = vset.pattern.permute.xlu0 0
    %3539 = vperm.xlu0 %3538, %v3263
    %v3540 = vpop.permute.xlu0 %3539
    %v3543 = vunpack.c.l.s4 839922192
    %v3544 = vunpack.c.0.s8 %v3543
    %v3545 = vlaneseq
    %v3546 = vshrl.u32 %v3545, 7
    %v3547 = vsub.s32 %v3544, %v3546
    %v3548 = vrot.slane %v3540, %v3547
    %3550 = vset.pattern.permute.xlu0 0
    %3551 = vperm.xlu0 %3550, %v3264
    %v3552 = vpop.permute.xlu0 %3551
    %v3555 = vunpack.c.l.s4 839922192
    %v3556 = vunpack.c.0.s8 %v3555
    %v3557 = vlaneseq
    %v3558 = vshrl.u32 %v3557, 7
    %v3559 = vsub.s32 %v3556, %v3558
    %v3560 = vrot.slane %v3552, %v3559
    %3562 = vset.pattern.permute.xlu0 0
    %3563 = vperm.xlu0 %3562, %v3265
    %v3564 = vpop.permute.xlu0 %3563
    %v3567 = vunpack.c.l.s4 839922192
    %v3568 = vunpack.c.0.s8 %v3567
    %v3569 = vlaneseq
    %v3570 = vshrl.u32 %v3569, 7
    %v3571 = vsub.s32 %v3568, %v3570
    %v3572 = vrot.slane %v3564, %v3571
    %3574 = vset.pattern.permute.xlu0 0
    %3575 = vperm.xlu0 %3574, %v3266
    %v3576 = vpop.permute.xlu0 %3575
    %v3579 = vunpack.c.l.s4 839922192
    %v3580 = vunpack.c.0.s8 %v3579
    %v3581 = vlaneseq
    %v3582 = vshrl.u32 %v3581, 7
    %v3583 = vsub.s32 %v3580, %v3582
    %v3584 = vrot.slane %v3576, %v3583
    %3586 = vset.pattern.permute.xlu0 0
    %3587 = vperm.xlu0 %3586, %v3267
    %v3588 = vpop.permute.xlu0 %3587
    %v3591 = vunpack.c.l.s4 839922192
    %v3592 = vunpack.c.0.s8 %v3591
    %v3593 = vlaneseq
    %v3594 = vshrl.u32 %v3593, 7
    %v3595 = vsub.s32 %v3592, %v3594
    %v3596 = vrot.slane %v3588, %v3595
    %3598 = vset.pattern.permute.xlu0 0
    %3599 = vperm.xlu0 %3598, %v3268
    %v3600 = vpop.permute.xlu0 %3599
    %v3603 = vunpack.c.l.s4 839922192
    %v3604 = vunpack.c.0.s8 %v3603
    %v3605 = vlaneseq
    %v3606 = vshrl.u32 %v3605, 7
    %v3607 = vsub.s32 %v3604, %v3606
    %v3608 = vrot.slane %v3600, %v3607
    %3610 = vset.pattern.permute.xlu0 0
    %3611 = vperm.xlu0 %3610, %v3269
    %v3612 = vpop.permute.xlu0 %3611
    %v3615 = vunpack.c.l.s4 839922192
    %v3616 = vunpack.c.0.s8 %v3615
    %v3617 = vlaneseq
    %v3618 = vshrl.u32 %v3617, 7
    %v3619 = vsub.s32 %v3616, %v3618
    %v3620 = vrot.slane %v3612, %v3619
    %3622 = vset.pattern.permute.xlu0 0
    %3623 = vperm.xlu0 %3622, %v3270
    %v3624 = vpop.permute.xlu0 %3623
    %v3627 = vunpack.c.l.s4 839922192
    %v3628 = vunpack.c.0.s8 %v3627
    %v3629 = vlaneseq
    %v3630 = vshrl.u32 %v3629, 7
    %v3631 = vsub.s32 %v3628, %v3630
    %v3632 = vrot.slane %v3624, %v3631
    %3634 = vset.pattern.permute.xlu0 0
    %3635 = vperm.xlu0 %3634, %v3271
    %v3636 = vpop.permute.xlu0 %3635
    %v3639 = vunpack.c.l.s4 839922192
    %v3640 = vunpack.c.0.s8 %v3639
    %v3641 = vlaneseq
    %v3642 = vshrl.u32 %v3641, 7
    %v3643 = vsub.s32 %v3640, %v3642
    %v3644 = vrot.slane %v3636, %v3643
    %3646 = vset.pattern.permute.xlu0 0
    %3647 = vperm.xlu0 %3646, %v3272
    %v3648 = vpop.permute.xlu0 %3647
    %v3651 = vunpack.c.l.s4 839922192
    %v3652 = vunpack.c.0.s8 %v3651
    %v3653 = vlaneseq
    %v3654 = vshrl.u32 %v3653, 7
    %v3655 = vsub.s32 %v3652, %v3654
    %v3656 = vrot.slane %v3648, %v3655
    %v3689 = vunpack.c.l.b16 %v3284
    %v3690 = vunpack.c.l.b16 %v3296
    %v3691 = vunpack.c.l.b16 %v3308
    %v3692 = vunpack.c.l.b16 %v3320
    %v3693 = vunpack.c.l.b16 %v3332
    %v3694 = vunpack.c.l.b16 %v3344
    %v3695 = vunpack.c.l.b16 %v3356
    %v3696 = vunpack.c.l.b16 %v3368
    %v3697 = vunpack.c.l.b16 %v3380
    %v3698 = vunpack.c.l.b16 %v3392
    %v3699 = vunpack.c.l.b16 %v3404
    %v3700 = vunpack.c.l.b16 %v3416
    %v3701 = vunpack.c.l.b16 %v3428
    %v3702 = vunpack.c.l.b16 %v3440
    %v3703 = vunpack.c.l.b16 %v3452
    %v3704 = vunpack.c.l.b16 %v3464
    %v3705 = vunpack.c.l.b16 %v3476
    %v3706 = vunpack.c.l.b16 %v3488
    %v3707 = vunpack.c.l.b16 %v3500
    %v3708 = vunpack.c.l.b16 %v3512
    %v3709 = vunpack.c.l.b16 %v3524
    %v3710 = vunpack.c.l.b16 %v3536
    %v3711 = vunpack.c.l.b16 %v3548
    %v3712 = vunpack.c.l.b16 %v3560
    %v3713 = vunpack.c.l.b16 %v3572
    %v3714 = vunpack.c.l.b16 %v3584
    %v3715 = vunpack.c.l.b16 %v3596
    %v3716 = vunpack.c.l.b16 %v3608
    %v3717 = vunpack.c.l.b16 %v3620
    %v3718 = vunpack.c.l.b16 %v3632
    %v3719 = vunpack.c.l.b16 %v3644
    %v3720 = vunpack.c.l.b16 %v3656
    %v3721 = vpack.c.b16 %v3690, %v3689
    %v3722 = vpack.c.b16 %v3692, %v3691
    %v3723 = vpack.c.b16 %v3694, %v3693
    %v3724 = vpack.c.b16 %v3696, %v3695
    %v3725 = vpack.c.b16 %v3698, %v3697
    %v3726 = vpack.c.b16 %v3700, %v3699
    %v3727 = vpack.c.b16 %v3702, %v3701
    %v3728 = vpack.c.b16 %v3704, %v3703
    %v3729 = vpack.c.b16 %v3706, %v3705
    %v3730 = vpack.c.b16 %v3708, %v3707
    %v3731 = vpack.c.b16 %v3710, %v3709
    %v3732 = vpack.c.b16 %v3712, %v3711
    %v3733 = vpack.c.b16 %v3714, %v3713
    %v3734 = vpack.c.b16 %v3716, %v3715
    %v3735 = vpack.c.b16 %v3718, %v3717
    %v3736 = vpack.c.b16 %v3720, %v3719
    %v3753 = vadd.bf16 %v3113, %v3721
    %v3754 = vadd.bf16 %v3114, %v3721
    %v3755 = vadd.bf16 %v3115, %v3721
    %v3756 = vadd.bf16 %v3116, %v3721
    %v3757 = vadd.bf16 %v3117, %v3721
    %v3758 = vadd.bf16 %v3118, %v3721
    %v3759 = vadd.bf16 %v3119, %v3721
    %v3760 = vadd.bf16 %v3120, %v3721
    %v3761 = vadd.bf16 %v3121, %v3722
    %v3762 = vadd.bf16 %v3122, %v3722
    %v3763 = vadd.bf16 %v3123, %v3722
    %v3764 = vadd.bf16 %v3124, %v3722
    %v3765 = vadd.bf16 %v3125, %v3722
    %v3766 = vadd.bf16 %v3126, %v3722
    %v3767 = vadd.bf16 %v3127, %v3722
    %v3768 = vadd.bf16 %v3128, %v3722
    %v3769 = vadd.bf16 %v3129, %v3723
    %v3770 = vadd.bf16 %v3130, %v3723
    %v3771 = vadd.bf16 %v3131, %v3723
    %v3772 = vadd.bf16 %v3132, %v3723
    %v3773 = vadd.bf16 %v3133, %v3723
    %v3774 = vadd.bf16 %v3134, %v3723
    %v3775 = vadd.bf16 %v3135, %v3723
    %v3776 = vadd.bf16 %v3136, %v3723
    %v3777 = vadd.bf16 %v3137, %v3724
    %v3778 = vadd.bf16 %v3138, %v3724
    %v3779 = vadd.bf16 %v3139, %v3724
    %v3780 = vadd.bf16 %v3140, %v3724
    %v3781 = vadd.bf16 %v3141, %v3724
    %v3782 = vadd.bf16 %v3142, %v3724
    %v3783 = vadd.bf16 %v3143, %v3724
    %v3784 = vadd.bf16 %v3144, %v3724
    %v3785 = vadd.bf16 %v3145, %v3725
    %v3786 = vadd.bf16 %v3146, %v3725
    %v3787 = vadd.bf16 %v3147, %v3725
    %v3788 = vadd.bf16 %v3148, %v3725
    %v3789 = vadd.bf16 %v3149, %v3725
    %v3790 = vadd.bf16 %v3150, %v3725
    %v3791 = vadd.bf16 %v3151, %v3725
    %v3792 = vadd.bf16 %v3152, %v3725
    %v3793 = vadd.bf16 %v3153, %v3726
    %v3794 = vadd.bf16 %v3154, %v3726
    %v3795 = vadd.bf16 %v3155, %v3726
    %v3796 = vadd.bf16 %v3156, %v3726
    %v3797 = vadd.bf16 %v3157, %v3726
    %v3798 = vadd.bf16 %v3158, %v3726
    %v3799 = vadd.bf16 %v3159, %v3726
    %v3800 = vadd.bf16 %v3160, %v3726
    %v3801 = vadd.bf16 %v3161, %v3727
    %v3802 = vadd.bf16 %v3162, %v3727
    %v3803 = vadd.bf16 %v3163, %v3727
    %v3804 = vadd.bf16 %v3164, %v3727
    %v3805 = vadd.bf16 %v3165, %v3727
    %v3806 = vadd.bf16 %v3166, %v3727
    %v3807 = vadd.bf16 %v3167, %v3727
    %v3808 = vadd.bf16 %v3168, %v3727
    %v3809 = vadd.bf16 %v3169, %v3728
    %v3810 = vadd.bf16 %v3170, %v3728
    %v3811 = vadd.bf16 %v3171, %v3728
    %v3812 = vadd.bf16 %v3172, %v3728
    %v3813 = vadd.bf16 %v3173, %v3728
    %v3814 = vadd.bf16 %v3174, %v3728
    %v3815 = vadd.bf16 %v3175, %v3728
    %v3816 = vadd.bf16 %v3176, %v3728
    %v3817 = vadd.bf16 %v3177, %v3729
    %v3818 = vadd.bf16 %v3178, %v3729
    %v3819 = vadd.bf16 %v3179, %v3729
    %v3820 = vadd.bf16 %v3180, %v3729
    %v3821 = vadd.bf16 %v3181, %v3729
    %v3822 = vadd.bf16 %v3182, %v3729
    %v3823 = vadd.bf16 %v3183, %v3729
    %v3824 = vadd.bf16 %v3184, %v3729
    %v3825 = vadd.bf16 %v3185, %v3730
    %v3826 = vadd.bf16 %v3186, %v3730
    %v3827 = vadd.bf16 %v3187, %v3730
    %v3828 = vadd.bf16 %v3188, %v3730
    %v3829 = vadd.bf16 %v3189, %v3730
    %v3830 = vadd.bf16 %v3190, %v3730
    %v3831 = vadd.bf16 %v3191, %v3730
    %v3832 = vadd.bf16 %v3192, %v3730
    %v3833 = vadd.bf16 %v3193, %v3731
    %v3834 = vadd.bf16 %v3194, %v3731
    %v3835 = vadd.bf16 %v3195, %v3731
    %v3836 = vadd.bf16 %v3196, %v3731
    %v3837 = vadd.bf16 %v3197, %v3731
    %v3838 = vadd.bf16 %v3198, %v3731
    %v3839 = vadd.bf16 %v3199, %v3731
    %v3840 = vadd.bf16 %v3200, %v3731
    %v3841 = vadd.bf16 %v3201, %v3732
    %v3842 = vadd.bf16 %v3202, %v3732
    %v3843 = vadd.bf16 %v3203, %v3732
    %v3844 = vadd.bf16 %v3204, %v3732
    %v3845 = vadd.bf16 %v3205, %v3732
    %v3846 = vadd.bf16 %v3206, %v3732
    %v3847 = vadd.bf16 %v3207, %v3732
    %v3848 = vadd.bf16 %v3208, %v3732
    %v3849 = vadd.bf16 %v3209, %v3733
    %v3850 = vadd.bf16 %v3210, %v3733
    %v3851 = vadd.bf16 %v3211, %v3733
    %v3852 = vadd.bf16 %v3212, %v3733
    %v3853 = vadd.bf16 %v3213, %v3733
    %v3854 = vadd.bf16 %v3214, %v3733
    %v3855 = vadd.bf16 %v3215, %v3733
    %v3856 = vadd.bf16 %v3216, %v3733
    %v3857 = vadd.bf16 %v3217, %v3734
    %v3858 = vadd.bf16 %v3218, %v3734
    %v3859 = vadd.bf16 %v3219, %v3734
    %v3860 = vadd.bf16 %v3220, %v3734
    %v3861 = vadd.bf16 %v3221, %v3734
    %v3862 = vadd.bf16 %v3222, %v3734
    %v3863 = vadd.bf16 %v3223, %v3734
    %v3864 = vadd.bf16 %v3224, %v3734
    %v3865 = vadd.bf16 %v3225, %v3735
    %v3866 = vadd.bf16 %v3226, %v3735
    %v3867 = vadd.bf16 %v3227, %v3735
    %v3868 = vadd.bf16 %v3228, %v3735
    %v3869 = vadd.bf16 %v3229, %v3735
    %v3870 = vadd.bf16 %v3230, %v3735
    %v3871 = vadd.bf16 %v3231, %v3735
    %v3872 = vadd.bf16 %v3232, %v3735
    %v3873 = vadd.bf16 %v3233, %v3736
    %v3874 = vadd.bf16 %v3234, %v3736
    %v3875 = vadd.bf16 %v3235, %v3736
    %v3876 = vadd.bf16 %v3236, %v3736
    %v3877 = vadd.bf16 %v3237, %v3736
    %v3878 = vadd.bf16 %v3238, %v3736
    %v3879 = vadd.bf16 %v3239, %v3736
    %v3880 = vadd.bf16 %v3240, %v3736
    %v3881 = vmul.bf16 %v3753, 1009007652
    %v3882 = vmul.bf16 %v3754, 1009007652
    %v3883 = vmul.bf16 %v3755, 1009007652
    %v3884 = vmul.bf16 %v3756, 1009007652
    %v3885 = vmul.bf16 %v3757, 1009007652
    %v3886 = vmul.bf16 %v3758, 1009007652
    %v3887 = vmul.bf16 %v3759, 1009007652
    %v3888 = vmul.bf16 %v3760, 1009007652
    %v3889 = vmul.bf16 %v3761, 1009007652
    %v3890 = vmul.bf16 %v3762, 1009007652
    %v3891 = vmul.bf16 %v3763, 1009007652
    %v3892 = vmul.bf16 %v3764, 1009007652
    %v3893 = vmul.bf16 %v3765, 1009007652
    %v3894 = vmul.bf16 %v3766, 1009007652
    %v3895 = vmul.bf16 %v3767, 1009007652
    %v3896 = vmul.bf16 %v3768, 1009007652
    %v3897 = vmul.bf16 %v3769, 1009007652
    %v3898 = vmul.bf16 %v3770, 1009007652
    %v3899 = vmul.bf16 %v3771, 1009007652
    %v3900 = vmul.bf16 %v3772, 1009007652
    %v3901 = vmul.bf16 %v3773, 1009007652
    %v3902 = vmul.bf16 %v3774, 1009007652
    %v3903 = vmul.bf16 %v3775, 1009007652
    %v3904 = vmul.bf16 %v3776, 1009007652
    %v3905 = vmul.bf16 %v3777, 1009007652
    %v3906 = vmul.bf16 %v3778, 1009007652
    %v3907 = vmul.bf16 %v3779, 1009007652
    %v3908 = vmul.bf16 %v3780, 1009007652
    %v3909 = vmul.bf16 %v3781, 1009007652
    %v3910 = vmul.bf16 %v3782, 1009007652
    %v3911 = vmul.bf16 %v3783, 1009007652
    %v3912 = vmul.bf16 %v3784, 1009007652
    %v3913 = vmul.bf16 %v3785, 1009007652
    %v3914 = vmul.bf16 %v3786, 1009007652
    %v3915 = vmul.bf16 %v3787, 1009007652
    %v3916 = vmul.bf16 %v3788, 1009007652
    %v3917 = vmul.bf16 %v3789, 1009007652
    %v3918 = vmul.bf16 %v3790, 1009007652
    %v3919 = vmul.bf16 %v3791, 1009007652
    %v3920 = vmul.bf16 %v3792, 1009007652
    %v3921 = vmul.bf16 %v3793, 1009007652
    %v3922 = vmul.bf16 %v3794, 1009007652
    %v3923 = vmul.bf16 %v3795, 1009007652
    %v3924 = vmul.bf16 %v3796, 1009007652
    %v3925 = vmul.bf16 %v3797, 1009007652
    %v3926 = vmul.bf16 %v3798, 1009007652
    %v3927 = vmul.bf16 %v3799, 1009007652
    %v3928 = vmul.bf16 %v3800, 1009007652
    %v3929 = vmul.bf16 %v3801, 1009007652
    %v3930 = vmul.bf16 %v3802, 1009007652
    %v3931 = vmul.bf16 %v3803, 1009007652
    %v3932 = vmul.bf16 %v3804, 1009007652
    %v3933 = vmul.bf16 %v3805, 1009007652
    %v3934 = vmul.bf16 %v3806, 1009007652
    %v3935 = vmul.bf16 %v3807, 1009007652
    %v3936 = vmul.bf16 %v3808, 1009007652
    %v3937 = vmul.bf16 %v3809, 1009007652
    %v3938 = vmul.bf16 %v3810, 1009007652
    %v3939 = vmul.bf16 %v3811, 1009007652
    %v3940 = vmul.bf16 %v3812, 1009007652
    %v3941 = vmul.bf16 %v3813, 1009007652
    %v3942 = vmul.bf16 %v3814, 1009007652
    %v3943 = vmul.bf16 %v3815, 1009007652
    %v3944 = vmul.bf16 %v3816, 1009007652
    %v3945 = vmul.bf16 %v3817, 1009007652
    %v3946 = vmul.bf16 %v3818, 1009007652
    %v3947 = vmul.bf16 %v3819, 1009007652
    %v3948 = vmul.bf16 %v3820, 1009007652
    %v3949 = vmul.bf16 %v3821, 1009007652
    %v3950 = vmul.bf16 %v3822, 1009007652
    %v3951 = vmul.bf16 %v3823, 1009007652
    %v3952 = vmul.bf16 %v3824, 1009007652
    %v3953 = vmul.bf16 %v3825, 1009007652
    %v3954 = vmul.bf16 %v3826, 1009007652
    %v3955 = vmul.bf16 %v3827, 1009007652
    %v3956 = vmul.bf16 %v3828, 1009007652
    %v3957 = vmul.bf16 %v3829, 1009007652
    %v3958 = vmul.bf16 %v3830, 1009007652
    %v3959 = vmul.bf16 %v3831, 1009007652
    %v3960 = vmul.bf16 %v3832, 1009007652
    %v3961 = vmul.bf16 %v3833, 1009007652
    %v3962 = vmul.bf16 %v3834, 1009007652
    %v3963 = vmul.bf16 %v3835, 1009007652
    %v3964 = vmul.bf16 %v3836, 1009007652
    %v3965 = vmul.bf16 %v3837, 1009007652
    %v3966 = vmul.bf16 %v3838, 1009007652
    %v3967 = vmul.bf16 %v3839, 1009007652
    %v3968 = vmul.bf16 %v3840, 1009007652
    %v3969 = vmul.bf16 %v3841, 1009007652
    %v3970 = vmul.bf16 %v3842, 1009007652
    %v3971 = vmul.bf16 %v3843, 1009007652
    %v3972 = vmul.bf16 %v3844, 1009007652
    %v3973 = vmul.bf16 %v3845, 1009007652
    %v3974 = vmul.bf16 %v3846, 1009007652
    %v3975 = vmul.bf16 %v3847, 1009007652
    %v3976 = vmul.bf16 %v3848, 1009007652
    %v3977 = vmul.bf16 %v3849, 1009007652
    %v3978 = vmul.bf16 %v3850, 1009007652
    %v3979 = vmul.bf16 %v3851, 1009007652
    %v3980 = vmul.bf16 %v3852, 1009007652
    %v3981 = vmul.bf16 %v3853, 1009007652
    %v3982 = vmul.bf16 %v3854, 1009007652
    %v3983 = vmul.bf16 %v3855, 1009007652
    %v3984 = vmul.bf16 %v3856, 1009007652
    %v3985 = vmul.bf16 %v3857, 1009007652
    %v3986 = vmul.bf16 %v3858, 1009007652
    %v3987 = vmul.bf16 %v3859, 1009007652
    %v3988 = vmul.bf16 %v3860, 1009007652
    %v3989 = vmul.bf16 %v3861, 1009007652
    %v3990 = vmul.bf16 %v3862, 1009007652
    %v3991 = vmul.bf16 %v3863, 1009007652
    %v3992 = vmul.bf16 %v3864, 1009007652
    %v3993 = vmul.bf16 %v3865, 1009007652
    %v3994 = vmul.bf16 %v3866, 1009007652
    %v3995 = vmul.bf16 %v3867, 1009007652
    %v3996 = vmul.bf16 %v3868, 1009007652
    %v3997 = vmul.bf16 %v3869, 1009007652
    %v3998 = vmul.bf16 %v3870, 1009007652
    %v3999 = vmul.bf16 %v3871, 1009007652
    %v4000 = vmul.bf16 %v3872, 1009007652
    %v4001 = vmul.bf16 %v3873, 1009007652
    %v4002 = vmul.bf16 %v3874, 1009007652
    %v4003 = vmul.bf16 %v3875, 1009007652
    %v4004 = vmul.bf16 %v3876, 1009007652
    %v4005 = vmul.bf16 %v3877, 1009007652
    %v4006 = vmul.bf16 %v3878, 1009007652
    %v4007 = vmul.bf16 %v3879, 1009007652
    %v4008 = vmul.bf16 %v3880, 1009007652
    %v4009 = vmax.bf16 %v3753, %v3881
    %v4010 = vmax.bf16 %v3754, %v3882
    %v4011 = vmax.bf16 %v3755, %v3883
    %v4012 = vmax.bf16 %v3756, %v3884
    %v4013 = vmax.bf16 %v3757, %v3885
    %v4014 = vmax.bf16 %v3758, %v3886
    %v4015 = vmax.bf16 %v3759, %v3887
    %v4016 = vmax.bf16 %v3760, %v3888
    %v4017 = vmax.bf16 %v3761, %v3889
    %v4018 = vmax.bf16 %v3762, %v3890
    %v4019 = vmax.bf16 %v3763, %v3891
    %v4020 = vmax.bf16 %v3764, %v3892
    %v4021 = vmax.bf16 %v3765, %v3893
    %v4022 = vmax.bf16 %v3766, %v3894
    %v4023 = vmax.bf16 %v3767, %v3895
    %v4024 = vmax.bf16 %v3768, %v3896
    %v4025 = vmax.bf16 %v3769, %v3897
    %v4026 = vmax.bf16 %v3770, %v3898
    %v4027 = vmax.bf16 %v3771, %v3899
    %v4028 = vmax.bf16 %v3772, %v3900
    %v4029 = vmax.bf16 %v3773, %v3901
    %v4030 = vmax.bf16 %v3774, %v3902
    %v4031 = vmax.bf16 %v3775, %v3903
    %v4032 = vmax.bf16 %v3776, %v3904
    %v4033 = vmax.bf16 %v3777, %v3905
    %v4034 = vmax.bf16 %v3778, %v3906
    %v4035 = vmax.bf16 %v3779, %v3907
    %v4036 = vmax.bf16 %v3780, %v3908
    %v4037 = vmax.bf16 %v3781, %v3909
    %v4038 = vmax.bf16 %v3782, %v3910
    %v4039 = vmax.bf16 %v3783, %v3911
    %v4040 = vmax.bf16 %v3784, %v3912
    %v4041 = vmax.bf16 %v3785, %v3913
    %v4042 = vmax.bf16 %v3786, %v3914
    %v4043 = vmax.bf16 %v3787, %v3915
    %v4044 = vmax.bf16 %v3788, %v3916
    %v4045 = vmax.bf16 %v3789, %v3917
    %v4046 = vmax.bf16 %v3790, %v3918
    %v4047 = vmax.bf16 %v3791, %v3919
    %v4048 = vmax.bf16 %v3792, %v3920
    %v4049 = vmax.bf16 %v3793, %v3921
    %v4050 = vmax.bf16 %v3794, %v3922
    %v4051 = vmax.bf16 %v3795, %v3923
    %v4052 = vmax.bf16 %v3796, %v3924
    %v4053 = vmax.bf16 %v3797, %v3925
    %v4054 = vmax.bf16 %v3798, %v3926
    %v4055 = vmax.bf16 %v3799, %v3927
    %v4056 = vmax.bf16 %v3800, %v3928
    %v4057 = vmax.bf16 %v3801, %v3929
    %v4058 = vmax.bf16 %v3802, %v3930
    %v4059 = vmax.bf16 %v3803, %v3931
    %v4060 = vmax.bf16 %v3804, %v3932
    %v4061 = vmax.bf16 %v3805, %v3933
    %v4062 = vmax.bf16 %v3806, %v3934
    %v4063 = vmax.bf16 %v3807, %v3935
    %v4064 = vmax.bf16 %v3808, %v3936
    %v4065 = vmax.bf16 %v3809, %v3937
    %v4066 = vmax.bf16 %v3810, %v3938
    %v4067 = vmax.bf16 %v3811, %v3939
    %v4068 = vmax.bf16 %v3812, %v3940
    %v4069 = vmax.bf16 %v3813, %v3941
    %v4070 = vmax.bf16 %v3814, %v3942
    %v4071 = vmax.bf16 %v3815, %v3943
    %v4072 = vmax.bf16 %v3816, %v3944
    %v4073 = vmax.bf16 %v3817, %v3945
    %v4074 = vmax.bf16 %v3818, %v3946
    %v4075 = vmax.bf16 %v3819, %v3947
    %v4076 = vmax.bf16 %v3820, %v3948
    %v4077 = vmax.bf16 %v3821, %v3949
    %v4078 = vmax.bf16 %v3822, %v3950
    %v4079 = vmax.bf16 %v3823, %v3951
    %v4080 = vmax.bf16 %v3824, %v3952
    %v4081 = vmax.bf16 %v3825, %v3953
    %v4082 = vmax.bf16 %v3826, %v3954
    %v4083 = vmax.bf16 %v3827, %v3955
    %v4084 = vmax.bf16 %v3828, %v3956
    %v4085 = vmax.bf16 %v3829, %v3957
    %v4086 = vmax.bf16 %v3830, %v3958
    %v4087 = vmax.bf16 %v3831, %v3959
    %v4088 = vmax.bf16 %v3832, %v3960
    %v4089 = vmax.bf16 %v3833, %v3961
    %v4090 = vmax.bf16 %v3834, %v3962
    %v4091 = vmax.bf16 %v3835, %v3963
    %v4092 = vmax.bf16 %v3836, %v3964
    %v4093 = vmax.bf16 %v3837, %v3965
    %v4094 = vmax.bf16 %v3838, %v3966
    %v4095 = vmax.bf16 %v3839, %v3967
    %v4096 = vmax.bf16 %v3840, %v3968
    %v4097 = vmax.bf16 %v3841, %v3969
    %v4098 = vmax.bf16 %v3842, %v3970
    %v4099 = vmax.bf16 %v3843, %v3971
    %v4100 = vmax.bf16 %v3844, %v3972
    %v4101 = vmax.bf16 %v3845, %v3973
    %v4102 = vmax.bf16 %v3846, %v3974
    %v4103 = vmax.bf16 %v3847, %v3975
    %v4104 = vmax.bf16 %v3848, %v3976
    %v4105 = vmax.bf16 %v3849, %v3977
    %v4106 = vmax.bf16 %v3850, %v3978
    %v4107 = vmax.bf16 %v3851, %v3979
    %v4108 = vmax.bf16 %v3852, %v3980
    %v4109 = vmax.bf16 %v3853, %v3981
    %v4110 = vmax.bf16 %v3854, %v3982
    %v4111 = vmax.bf16 %v3855, %v3983
    %v4112 = vmax.bf16 %v3856, %v3984
    %v4113 = vmax.bf16 %v3857, %v3985
    %v4114 = vmax.bf16 %v3858, %v3986
    %v4115 = vmax.bf16 %v3859, %v3987
    %v4116 = vmax.bf16 %v3860, %v3988
    %v4117 = vmax.bf16 %v3861, %v3989
    %v4118 = vmax.bf16 %v3862, %v3990
    %v4119 = vmax.bf16 %v3863, %v3991
    %v4120 = vmax.bf16 %v3864, %v3992
    %v4121 = vmax.bf16 %v3865, %v3993
    %v4122 = vmax.bf16 %v3866, %v3994
    %v4123 = vmax.bf16 %v3867, %v3995
    %v4124 = vmax.bf16 %v3868, %v3996
    %v4125 = vmax.bf16 %v3869, %v3997
    %v4126 = vmax.bf16 %v3870, %v3998
    %v4127 = vmax.bf16 %v3871, %v3999
    %v4128 = vmax.bf16 %v3872, %v4000
    %v4129 = vmax.bf16 %v3873, %v4001
    %v4130 = vmax.bf16 %v3874, %v4002
    %v4131 = vmax.bf16 %v3875, %v4003
    %v4132 = vmax.bf16 %v3876, %v4004
    %v4133 = vmax.bf16 %v3877, %v4005
    %v4134 = vmax.bf16 %v3878, %v4006
    %v4135 = vmax.bf16 %v3879, %v4007
    %v4136 = vmax.bf16 %v3880, %v4008
    %v4137 = vld [vmem:[#allocation12] sm:$0xff]
    %v4138 = vld [vmem:[#allocation12 + $0x8] sm:$0xff]
    %v4139 = vld [vmem:[#allocation12 + $0x10] sm:$0xff]
    %v4140 = vld [vmem:[#allocation12 + $0x18] sm:$0xff]
    %v4141 = vld [vmem:[#allocation12 + $0x20] sm:$0xff]
    %v4142 = vld [vmem:[#allocation12 + $0x28] sm:$0xff]
    %v4143 = vld [vmem:[#allocation12 + $0x30] sm:$0xff]
    %v4144 = vld [vmem:[#allocation12 + $0x38] sm:$0xff]
    %v4145 = vld [vmem:[#allocation12 + $0x40] sm:$0xff]
    %v4146 = vld [vmem:[#allocation12 + $0x48] sm:$0xff]
    %v4147 = vld [vmem:[#allocation12 + $0x50] sm:$0xff]
    %v4148 = vld [vmem:[#allocation12 + $0x58] sm:$0xff]
    %v4149 = vld [vmem:[#allocation12 + $0x60] sm:$0xff]
    %v4150 = vld [vmem:[#allocation12 + $0x68] sm:$0xff]
    %v4151 = vld [vmem:[#allocation12 + $0x70] sm:$0xff]
    %v4152 = vld [vmem:[#allocation12 + $0x78] sm:$0xff]
    %v4153 = vld [vmem:[#allocation12 + $0x80] sm:$0xff]
    %v4154 = vld [vmem:[#allocation12 + $0x88] sm:$0xff]
    %v4155 = vld [vmem:[#allocation12 + $0x90] sm:$0xff]
    %v4156 = vld [vmem:[#allocation12 + $0x98] sm:$0xff]
    %v4157 = vld [vmem:[#allocation12 + $0xa0] sm:$0xff]
    %v4158 = vld [vmem:[#allocation12 + $0xa8] sm:$0xff]
    %v4159 = vld [vmem:[#allocation12 + $0xb0] sm:$0xff]
    %v4160 = vld [vmem:[#allocation12 + $0xb8] sm:$0xff]
    %v4161 = vld [vmem:[#allocation12 + $0xc0] sm:$0xff]
    %v4162 = vld [vmem:[#allocation12 + $0xc8] sm:$0xff]
    %v4163 = vld [vmem:[#allocation12 + $0xd0] sm:$0xff]
    %v4164 = vld [vmem:[#allocation12 + $0xd8] sm:$0xff]
    %v4165 = vld [vmem:[#allocation12 + $0xe0] sm:$0xff]
    %v4166 = vld [vmem:[#allocation12 + $0xe8] sm:$0xff]
    %v4167 = vld [vmem:[#allocation12 + $0xf0] sm:$0xff]
    %v4168 = vld [vmem:[#allocation12 + $0xf8] sm:$0xff]
    %v4201 = vunpack.c.l.b16 %v4137
    %v4202 = vunpack.c.h.b16 %v4137
    %v4203 = vunpack.c.l.b16 %v4138
    %v4204 = vunpack.c.h.b16 %v4138
    %v4205 = vunpack.c.l.b16 %v4139
    %v4206 = vunpack.c.h.b16 %v4139
    %v4207 = vunpack.c.l.b16 %v4140
    %v4208 = vunpack.c.h.b16 %v4140
    %v4209 = vunpack.c.l.b16 %v4141
    %v4210 = vunpack.c.h.b16 %v4141
    %v4211 = vunpack.c.l.b16 %v4142
    %v4212 = vunpack.c.h.b16 %v4142
    %v4213 = vunpack.c.l.b16 %v4143
    %v4214 = vunpack.c.h.b16 %v4143
    %v4215 = vunpack.c.l.b16 %v4144
    %v4216 = vunpack.c.h.b16 %v4144
    %v4217 = vunpack.c.l.b16 %v4145
    %v4218 = vunpack.c.h.b16 %v4145
    %v4219 = vunpack.c.l.b16 %v4146
    %v4220 = vunpack.c.h.b16 %v4146
    %v4221 = vunpack.c.l.b16 %v4147
    %v4222 = vunpack.c.h.b16 %v4147
    %v4223 = vunpack.c.l.b16 %v4148
    %v4224 = vunpack.c.h.b16 %v4148
    %v4225 = vunpack.c.l.b16 %v4149
    %v4226 = vunpack.c.h.b16 %v4149
    %v4227 = vunpack.c.l.b16 %v4150
    %v4228 = vunpack.c.h.b16 %v4150
    %v4229 = vunpack.c.l.b16 %v4151
    %v4230 = vunpack.c.h.b16 %v4151
    %v4231 = vunpack.c.l.b16 %v4152
    %v4232 = vunpack.c.h.b16 %v4152
    %v4233 = vunpack.c.l.b16 %v4153
    %v4234 = vunpack.c.h.b16 %v4153
    %v4235 = vunpack.c.l.b16 %v4154
    %v4236 = vunpack.c.h.b16 %v4154
    %v4237 = vunpack.c.l.b16 %v4155
    %v4238 = vunpack.c.h.b16 %v4155
    %v4239 = vunpack.c.l.b16 %v4156
    %v4240 = vunpack.c.h.b16 %v4156
    %v4241 = vunpack.c.l.b16 %v4157
    %v4242 = vunpack.c.h.b16 %v4157
    %v4243 = vunpack.c.l.b16 %v4158
    %v4244 = vunpack.c.h.b16 %v4158
    %v4245 = vunpack.c.l.b16 %v4159
    %v4246 = vunpack.c.h.b16 %v4159
    %v4247 = vunpack.c.l.b16 %v4160
    %v4248 = vunpack.c.h.b16 %v4160
    %v4249 = vunpack.c.l.b16 %v4161
    %v4250 = vunpack.c.h.b16 %v4161
    %v4251 = vunpack.c.l.b16 %v4162
    %v4252 = vunpack.c.h.b16 %v4162
    %v4253 = vunpack.c.l.b16 %v4163
    %v4254 = vunpack.c.h.b16 %v4163
    %v4255 = vunpack.c.l.b16 %v4164
    %v4256 = vunpack.c.h.b16 %v4164
    %v4257 = vunpack.c.l.b16 %v4165
    %v4258 = vunpack.c.h.b16 %v4165
    %v4259 = vunpack.c.l.b16 %v4166
    %v4260 = vunpack.c.h.b16 %v4166
    %v4261 = vunpack.c.l.b16 %v4167
    %v4262 = vunpack.c.h.b16 %v4167
    %v4263 = vunpack.c.l.b16 %v4168
    %v4264 = vunpack.c.h.b16 %v4168
    %v4265 = vpack.c.b16 %v4203, %v4201
    %v4266 = vpack.c.b16 %v4204, %v4202
    %v4267 = vpack.c.b16 %v4207, %v4205
    %v4268 = vpack.c.b16 %v4208, %v4206
    %v4269 = vpack.c.b16 %v4211, %v4209
    %v4270 = vpack.c.b16 %v4212, %v4210
    %v4271 = vpack.c.b16 %v4215, %v4213
    %v4272 = vpack.c.b16 %v4216, %v4214
    %v4273 = vpack.c.b16 %v4219, %v4217
    %v4274 = vpack.c.b16 %v4220, %v4218
    %v4275 = vpack.c.b16 %v4223, %v4221
    %v4276 = vpack.c.b16 %v4224, %v4222
    %v4277 = vpack.c.b16 %v4227, %v4225
    %v4278 = vpack.c.b16 %v4228, %v4226
    %v4279 = vpack.c.b16 %v4231, %v4229
    %v4280 = vpack.c.b16 %v4232, %v4230
    %v4281 = vpack.c.b16 %v4235, %v4233
    %v4282 = vpack.c.b16 %v4236, %v4234
    %v4283 = vpack.c.b16 %v4239, %v4237
    %v4284 = vpack.c.b16 %v4240, %v4238
    %v4285 = vpack.c.b16 %v4243, %v4241
    %v4286 = vpack.c.b16 %v4244, %v4242
    %v4287 = vpack.c.b16 %v4247, %v4245
    %v4288 = vpack.c.b16 %v4248, %v4246
    %v4289 = vpack.c.b16 %v4251, %v4249
    %v4290 = vpack.c.b16 %v4252, %v4250
    %v4291 = vpack.c.b16 %v4255, %v4253
    %v4292 = vpack.c.b16 %v4256, %v4254
    %v4293 = vpack.c.b16 %v4259, %v4257
    %v4294 = vpack.c.b16 %v4260, %v4258
    %v4295 = vpack.c.b16 %v4263, %v4261
    %v4296 = vpack.c.b16 %v4264, %v4262
    %4329 = vmatprep.subr.bf16.mxu0 %v4010
    %4330 = vmatpush1.bf16.msra.mxu0 %v4009
    %4331 = vmatprep.subr.bf16.mxu0 %v4018
    %4332 = vmatpush1.bf16.msra.mxu0 %v4017
    %4333 = vmatprep.subr.bf16.mxu0 %v4026
    %4334 = vmatpush1.bf16.msra.mxu0 %v4025
    %4335 = vmatprep.subr.bf16.mxu0 %v4034
    %4336 = vmatpush1.bf16.msra.mxu0 %v4033
    %4337 = vmatprep.subr.bf16.mxu0 %v4042
    %4338 = vmatpush1.bf16.msra.mxu0 %v4041
    %4339 = vmatprep.subr.bf16.mxu0 %v4050
    %4340 = vmatpush1.bf16.msra.mxu0 %v4049
    %4341 = vmatprep.subr.bf16.mxu0 %v4058
    %4342 = vmatpush1.bf16.msra.mxu0 %v4057
    %4343 = vmatprep.subr.bf16.mxu0 %v4066
    %4344 = vmatpush1.bf16.msra.mxu0 %v4065
    %4345 = vmatprep.subr.bf16.mxu0 %v4074
    %4346 = vmatpush1.bf16.msra.mxu0 %v4073
    %4347 = vmatprep.subr.bf16.mxu0 %v4082
    %4348 = vmatpush1.bf16.msra.mxu0 %v4081
    %4349 = vmatprep.subr.bf16.mxu0 %v4090
    %4350 = vmatpush1.bf16.msra.mxu0 %v4089
    %4351 = vmatprep.subr.bf16.mxu0 %v4098
    %4352 = vmatpush1.bf16.msra.mxu0 %v4097
    %4353 = vmatprep.subr.bf16.mxu0 %v4106
    %4354 = vmatpush1.bf16.msra.mxu0 %v4105
    %4355 = vmatprep.subr.bf16.mxu0 %v4114
    %4356 = vmatpush1.bf16.msra.mxu0 %v4113
    %4357 = vmatprep.subr.bf16.mxu0 %v4122
    %4358 = vmatpush1.bf16.msra.mxu0 %v4121
    %4359 = vmatprep.subr.bf16.mxu0 %v4130
    %4360 = vmatpush1.bf16.msra.mxu0 %v4129
    %4361 = vmatprep.mubr.bf16.mxu0 %v4266
    %4362 = vmatmul.mubr.bf16.gmra.mrb[0].mxu0 %v4265
    %v4363 = vpop.f32.mrb[0].mxu0
    %v4364 = vadd.f32 0.0, %v4363
    %v4365 = vpop.f32.mrb[0].mxu0
    %v4366 = vadd.f32 0.0, %v4365
    %v4367 = vpop.f32.mrb[0].mxu0
    %v4368 = vadd.f32 0.0, %v4367
    %v4369 = vpop.f32.mrb[0].mxu0
    %v4370 = vadd.f32 0.0, %v4369
    %4371 = vmatprep.mubr.bf16.mxu0 %v4268
    %4372 = vmatmul.mubr.bf16.gmra.mrb[0].mxu0 %v4267
    %v4373 = vpop.f32.mrb[0].mxu0
    %v4374 = vadd.f32 0.0, %v4373
    %v4375 = vpop.f32.mrb[0].mxu0
    %v4376 = vadd.f32 0.0, %v4375
    %v4377 = vpop.f32.mrb[0].mxu0
    %v4378 = vadd.f32 0.0, %v4377
    %v4379 = vpop.f32.mrb[0].mxu0
    %v4380 = vadd.f32 0.0, %v4379
    %4381 = vmatprep.mubr.bf16.mxu0 %v4270
    %4382 = vmatmul.mubr.bf16.gmra.mrb[0].mxu0 %v4269
    %v4383 = vpop.f32.mrb[0].mxu0
    %v4384 = vadd.f32 0.0, %v4383
    %v4385 = vpop.f32.mrb[0].mxu0
    %v4386 = vadd.f32 0.0, %v4385
    %v4387 = vpop.f32.mrb[0].mxu0
    %v4388 = vadd.f32 0.0, %v4387
    %v4389 = vpop.f32.mrb[0].mxu0
    %v4390 = vadd.f32 0.0, %v4389
    %4391 = vmatprep.mubr.bf16.mxu0 %v4272
    %4392 = vmatmul.mubr.bf16.gmra.mrb[0].mxu0 %v4271
    %v4393 = vpop.f32.mrb[0].mxu0
    %v4394 = vadd.f32 0.0, %v4393
    %v4395 = vpop.f32.mrb[0].mxu0
    %v4396 = vadd.f32 0.0, %v4395
    %v4397 = vpop.f32.mrb[0].mxu0
    %v4398 = vadd.f32 0.0, %v4397
    %v4399 = vpop.f32.mrb[0].mxu0
    %v4400 = vadd.f32 0.0, %v4399
    %4401 = vmatprep.mubr.bf16.mxu0 %v4274
    %4402 = vmatmul.mubr.bf16.gmra.mrb[0].mxu0 %v4273
    %v4403 = vpop.f32.mrb[0].mxu0
    %v4404 = vadd.f32 0.0, %v4403
    %v4405 = vpop.f32.mrb[0].mxu0
    %v4406 = vadd.f32 0.0, %v4405
    %v4407 = vpop.f32.mrb[0].mxu0
    %v4408 = vadd.f32 0.0, %v4407
    %v4409 = vpop.f32.mrb[0].mxu0
    %v4410 = vadd.f32 0.0, %v4409
    %4411 = vmatprep.mubr.bf16.mxu0 %v4276
    %4412 = vmatmul.mubr.bf16.gmra.mrb[0].mxu0 %v4275
    %v4413 = vpop.f32.mrb[0].mxu0
    %v4414 = vadd.f32 0.0, %v4413
    %v4415 = vpop.f32.mrb[0].mxu0
    %v4416 = vadd.f32 0.0, %v4415
    %v4417 = vpop.f32.mrb[0].mxu0
    %v4418 = vadd.f32 0.0, %v4417
    %v4419 = vpop.f32.mrb[0].mxu0
    %v4420 = vadd.f32 0.0, %v4419
    %4421 = vmatprep.mubr.bf16.mxu0 %v4278
    %4422 = vmatmul.mubr.bf16.gmra.mrb[0].mxu0 %v4277
    %v4423 = vpop.f32.mrb[0].mxu0
    %v4424 = vadd.f32 0.0, %v4423
    %v4425 = vpop.f32.mrb[0].mxu0
    %v4426 = vadd.f32 0.0, %v4425
    %v4427 = vpop.f32.mrb[0].mxu0
    %v4428 = vadd.f32 0.0, %v4427
    %v4429 = vpop.f32.mrb[0].mxu0
    %v4430 = vadd.f32 0.0, %v4429
    %4431 = vmatprep.mubr.bf16.mxu0 %v4280
    %4432 = vmatmul.mubr.bf16.gmra.mrb[0].mxu0 %v4279
    %v4433 = vpop.f32.mrb[0].mxu0
    %v4434 = vadd.f32 0.0, %v4433
    %v4435 = vpop.f32.mrb[0].mxu0
    %v4436 = vadd.f32 0.0, %v4435
    %v4437 = vpop.f32.mrb[0].mxu0
    %v4438 = vadd.f32 0.0, %v4437
    %v4439 = vpop.f32.mrb[0].mxu0
    %v4440 = vadd.f32 0.0, %v4439
    %4441 = vmatprep.mubr.bf16.mxu0 %v4282
    %4442 = vmatmul.mubr.bf16.gmra.mrb[0].mxu0 %v4281
    %v4443 = vpop.f32.mrb[0].mxu0
    %v4444 = vadd.f32 0.0, %v4443
    %v4445 = vpop.f32.mrb[0].mxu0
    %v4446 = vadd.f32 0.0, %v4445
    %v4447 = vpop.f32.mrb[0].mxu0
    %v4448 = vadd.f32 0.0, %v4447
    %v4449 = vpop.f32.mrb[0].mxu0
    %v4450 = vadd.f32 0.0, %v4449
    %4451 = vmatprep.mubr.bf16.mxu0 %v4284
    %4452 = vmatmul.mubr.bf16.gmra.mrb[0].mxu0 %v4283
    %v4453 = vpop.f32.mrb[0].mxu0
    %v4454 = vadd.f32 0.0, %v4453
    %v4455 = vpop.f32.mrb[0].mxu0
    %v4456 = vadd.f32 0.0, %v4455
    %v4457 = vpop.f32.mrb[0].mxu0
    %v4458 = vadd.f32 0.0, %v4457
    %v4459 = vpop.f32.mrb[0].mxu0
    %v4460 = vadd.f32 0.0, %v4459
    %4461 = vmatprep.mubr.bf16.mxu0 %v4286
    %4462 = vmatmul.mubr.bf16.gmra.mrb[0].mxu0 %v4285
    %v4463 = vpop.f32.mrb[0].mxu0
    %v4464 = vadd.f32 0.0, %v4463
    %v4465 = vpop.f32.mrb[0].mxu0
    %v4466 = vadd.f32 0.0, %v4465
    %v4467 = vpop.f32.mrb[0].mxu0
    %v4468 = vadd.f32 0.0, %v4467
    %v4469 = vpop.f32.mrb[0].mxu0
    %v4470 = vadd.f32 0.0, %v4469
    %4471 = vmatprep.mubr.bf16.mxu0 %v4288
    %4472 = vmatmul.mubr.bf16.gmra.mrb[0].mxu0 %v4287
    %v4473 = vpop.f32.mrb[0].mxu0
    %v4474 = vadd.f32 0.0, %v4473
    %v4475 = vpop.f32.mrb[0].mxu0
    %v4476 = vadd.f32 0.0, %v4475
    %v4477 = vpop.f32.mrb[0].mxu0
    %v4478 = vadd.f32 0.0, %v4477
    %v4479 = vpop.f32.mrb[0].mxu0
    %v4480 = vadd.f32 0.0, %v4479
    %4481 = vmatprep.mubr.bf16.mxu0 %v4290
    %4482 = vmatmul.mubr.bf16.gmra.mrb[0].mxu0 %v4289
    %v4483 = vpop.f32.mrb[0].mxu0
    %v4484 = vadd.f32 0.0, %v4483
    %v4485 = vpop.f32.mrb[0].mxu0
    %v4486 = vadd.f32 0.0, %v4485
    %v4487 = vpop.f32.mrb[0].mxu0
    %v4488 = vadd.f32 0.0, %v4487
    %v4489 = vpop.f32.mrb[0].mxu0
    %v4490 = vadd.f32 0.0, %v4489
    %4491 = vmatprep.mubr.bf16.mxu0 %v4292
    %4492 = vmatmul.mubr.bf16.gmra.mrb[0].mxu0 %v4291
    %v4493 = vpop.f32.mrb[0].mxu0
    %v4494 = vadd.f32 0.0, %v4493
    %v4495 = vpop.f32.mrb[0].mxu0
    %v4496 = vadd.f32 0.0, %v4495
    %v4497 = vpop.f32.mrb[0].mxu0
    %v4498 = vadd.f32 0.0, %v4497
    %v4499 = vpop.f32.mrb[0].mxu0
    %v4500 = vadd.f32 0.0, %v4499
    %4501 = vmatprep.mubr.bf16.mxu0 %v4294
    %4502 = vmatmul.mubr.bf16.gmra.mrb[0].mxu0 %v4293
    %v4503 = vpop.f32.mrb[0].mxu0
    %v4504 = vadd.f32 0.0, %v4503
    %v4505 = vpop.f32.mrb[0].mxu0
    %v4506 = vadd.f32 0.0, %v4505
    %v4507 = vpop.f32.mrb[0].mxu0
    %v4508 = vadd.f32 0.0, %v4507
    %v4509 = vpop.f32.mrb[0].mxu0
    %v4510 = vadd.f32 0.0, %v4509
    %4511 = vmatprep.mubr.bf16.mxu0 %v4296
    %4512 = vmatmul.mubr.bf16.gmra.mrb[0].mxu0 %v4295
    %v4513 = vpop.f32.mrb[0].mxu0
    %v4514 = vadd.f32 0.0, %v4513
    %v4515 = vpop.f32.mrb[0].mxu0
    %v4516 = vadd.f32 0.0, %v4515
    %v4517 = vpop.f32.mrb[0].mxu0
    %v4518 = vadd.f32 0.0, %v4517
    %v4519 = vpop.f32.mrb[0].mxu0
    %v4520 = vadd.f32 0.0, %v4519
    %4521 = vdwg.mxu0
    %4522 = vmatprep.subr.bf16.mxu0 %v4012
    %4523 = vmatpush1.bf16.msra.mxu0 %v4011
    %4524 = vmatprep.subr.bf16.mxu0 %v4020
    %4525 = vmatpush1.bf16.msra.mxu0 %v4019
    %4526 = vmatprep.subr.bf16.mxu0 %v4028
    %4527 = vmatpush1.bf16.msra.mxu0 %v4027
    %4528 = vmatprep.subr.bf16.mxu0 %v4036
    %4529 = vmatpush1.bf16.msra.mxu0 %v4035
    %4530 = vmatprep.subr.bf16.mxu0 %v4044
    %4531 = vmatpush1.bf16.msra.mxu0 %v4043
    %4532 = vmatprep.subr.bf16.mxu0 %v4052
    %4533 = vmatpush1.bf16.msra.mxu0 %v4051
    %4534 = vmatprep.subr.bf16.mxu0 %v4060
    %4535 = vmatpush1.bf16.msra.mxu0 %v4059
    %4536 = vmatprep.subr.bf16.mxu0 %v4068
    %4537 = vmatpush1.bf16.msra.mxu0 %v4067
    %4538 = vmatprep.subr.bf16.mxu0 %v4076
    %4539 = vmatpush1.bf16.msra.mxu0 %v4075
    %4540 = vmatprep.subr.bf16.mxu0 %v4084
    %4541 = vmatpush1.bf16.msra.mxu0 %v4083
    %4542 = vmatprep.subr.bf16.mxu0 %v4092
    %4543 = vmatpush1.bf16.msra.mxu0 %v4091
    %4544 = vmatprep.subr.bf16.mxu0 %v4100
    %4545 = vmatpush1.bf16.msra.mxu0 %v4099
    %4546 = vmatprep.subr.bf16.mxu0 %v4108
    %4547 = vmatpush1.bf16.msra.mxu0 %v4107
    %4548 = vmatprep.subr.bf16.mxu0 %v4116
    %4549 = vmatpush1.bf16.msra.mxu0 %v4115
    %4550 = vmatprep.subr.bf16.mxu0 %v4124
    %4551 = vmatpush1.bf16.msra.mxu0 %v4123
    %4552 = vmatprep.subr.bf16.mxu0 %v4132
    %4553 = vmatpush1.bf16.msra.mxu0 %v4131
    %4554 = vmatprep.mubr.bf16.mxu0 %v4266
    %4555 = vmatmul.mubr.bf16.gmra.mrb[0].mxu0 %v4265
    %v4556 = vpop.f32.mrb[0].mxu0
    %v4557 = vadd.f32 0.0, %v4556
    %v4558 = vpop.f32.mrb[0].mxu0
    %v4559 = vadd.f32 0.0, %v4558
    %v4560 = vpop.f32.mrb[0].mxu0
    %v4561 = vadd.f32 0.0, %v4560
    %v4562 = vpop.f32.mrb[0].mxu0
    %v4563 = vadd.f32 0.0, %v4562
    %4564 = vmatprep.mubr.bf16.mxu0 %v4268
    %4565 = vmatmul.mubr.bf16.gmra.mrb[0].mxu0 %v4267
    %v4566 = vpop.f32.mrb[0].mxu0
    %v4567 = vadd.f32 0.0, %v4566
    %v4568 = vpop.f32.mrb[0].mxu0
    %v4569 = vadd.f32 0.0, %v4568
    %v4570 = vpop.f32.mrb[0].mxu0
    %v4571 = vadd.f32 0.0, %v4570
    %v4572 = vpop.f32.mrb[0].mxu0
    %v4573 = vadd.f32 0.0, %v4572
    %4574 = vmatprep.mubr.bf16.mxu0 %v4270
    %4575 = vmatmul.mubr.bf16.gmra.mrb[0].mxu0 %v4269
    %v4576 = vpop.f32.mrb[0].mxu0
    %v4577 = vadd.f32 0.0, %v4576
    %v4578 = vpop.f32.mrb[0].mxu0
    %v4579 = vadd.f32 0.0, %v4578
    %v4580 = vpop.f32.mrb[0].mxu0
    %v4581 = vadd.f32 0.0, %v4580
    %v4582 = vpop.f32.mrb[0].mxu0
    %v4583 = vadd.f32 0.0, %v4582
    %4584 = vmatprep.mubr.bf16.mxu0 %v4272
    %4585 = vmatmul.mubr.bf16.gmra.mrb[0].mxu0 %v4271
    %v4586 = vpop.f32.mrb[0].mxu0
    %v4587 = vadd.f32 0.0, %v4586
    %v4588 = vpop.f32.mrb[0].mxu0
    %v4589 = vadd.f32 0.0, %v4588
    %v4590 = vpop.f32.mrb[0].mxu0
    %v4591 = vadd.f32 0.0, %v4590
    %v4592 = vpop.f32.mrb[0].mxu0
    %v4593 = vadd.f32 0.0, %v4592
    %4594 = vmatprep.mubr.bf16.mxu0 %v4274
    %4595 = vmatmul.mubr.bf16.gmra.mrb[0].mxu0 %v4273
    %v4596 = vpop.f32.mrb[0].mxu0
    %v4597 = vadd.f32 0.0, %v4596
    %v4598 = vpop.f32.mrb[0].mxu0
    %v4599 = vadd.f32 0.0, %v4598
    %v4600 = vpop.f32.mrb[0].mxu0
    %v4601 = vadd.f32 0.0, %v4600
    %v4602 = vpop.f32.mrb[0].mxu0
    %v4603 = vadd.f32 0.0, %v4602
    %4604 = vmatprep.mubr.bf16.mxu0 %v4276
    %4605 = vmatmul.mubr.bf16.gmra.mrb[0].mxu0 %v4275
    %v4606 = vpop.f32.mrb[0].mxu0
    %v4607 = vadd.f32 0.0, %v4606
    %v4608 = vpop.f32.mrb[0].mxu0
    %v4609 = vadd.f32 0.0, %v4608
    %v4610 = vpop.f32.mrb[0].mxu0
    %v4611 = vadd.f32 0.0, %v4610
    %v4612 = vpop.f32.mrb[0].mxu0
    %v4613 = vadd.f32 0.0, %v4612
    %4614 = vmatprep.mubr.bf16.mxu0 %v4278
    %4615 = vmatmul.mubr.bf16.gmra.mrb[0].mxu0 %v4277
    %v4616 = vpop.f32.mrb[0].mxu0
    %v4617 = vadd.f32 0.0, %v4616
    %v4618 = vpop.f32.mrb[0].mxu0
    %v4619 = vadd.f32 0.0, %v4618
    %v4620 = vpop.f32.mrb[0].mxu0
    %v4621 = vadd.f32 0.0, %v4620
    %v4622 = vpop.f32.mrb[0].mxu0
    %v4623 = vadd.f32 0.0, %v4622
    %4624 = vmatprep.mubr.bf16.mxu0 %v4280
    %4625 = vmatmul.mubr.bf16.gmra.mrb[0].mxu0 %v4279
    %v4626 = vpop.f32.mrb[0].mxu0
    %v4627 = vadd.f32 0.0, %v4626
    %v4628 = vpop.f32.mrb[0].mxu0
    %v4629 = vadd.f32 0.0, %v4628
    %v4630 = vpop.f32.mrb[0].mxu0
    %v4631 = vadd.f32 0.0, %v4630
    %v4632 = vpop.f32.mrb[0].mxu0
    %v4633 = vadd.f32 0.0, %v4632
    %4634 = vmatprep.mubr.bf16.mxu0 %v4282
    %4635 = vmatmul.mubr.bf16.gmra.mrb[0].mxu0 %v4281
    %v4636 = vpop.f32.mrb[0].mxu0
    %v4637 = vadd.f32 0.0, %v4636
    %v4638 = vpop.f32.mrb[0].mxu0
    %v4639 = vadd.f32 0.0, %v4638
    %v4640 = vpop.f32.mrb[0].mxu0
    %v4641 = vadd.f32 0.0, %v4640
    %v4642 = vpop.f32.mrb[0].mxu0
    %v4643 = vadd.f32 0.0, %v4642
    %4644 = vmatprep.mubr.bf16.mxu0 %v4284
    %4645 = vmatmul.mubr.bf16.gmra.mrb[0].mxu0 %v4283
    %v4646 = vpop.f32.mrb[0].mxu0
    %v4647 = vadd.f32 0.0, %v4646
    %v4648 = vpop.f32.mrb[0].mxu0
    %v4649 = vadd.f32 0.0, %v4648
    %v4650 = vpop.f32.mrb[0].mxu0
    %v4651 = vadd.f32 0.0, %v4650
    %v4652 = vpop.f32.mrb[0].mxu0
    %v4653 = vadd.f32 0.0, %v4652
    %4654 = vmatprep.mubr.bf16.mxu0 %v4286
    %4655 = vmatmul.mubr.bf16.gmra.mrb[0].mxu0 %v4285
    %v4656 = vpop.f32.mrb[0].mxu0
    %v4657 = vadd.f32 0.0, %v4656
    %v4658 = vpop.f32.mrb[0].mxu0
    %v4659 = vadd.f32 0.0, %v4658
    %v4660 = vpop.f32.mrb[0].mxu0
    %v4661 = vadd.f32 0.0, %v4660
    %v4662 = vpop.f32.mrb[0].mxu0
    %v4663 = vadd.f32 0.0, %v4662
    %4664 = vmatprep.mubr.bf16.mxu0 %v4288
    %4665 = vmatmul.mubr.bf16.gmra.mrb[0].mxu0 %v4287
    %v4666 = vpop.f32.mrb[0].mxu0
    %v4667 = vadd.f32 0.0, %v4666
    %v4668 = vpop.f32.mrb[0].mxu0
    %v4669 = vadd.f32 0.0, %v4668
    %v4670 = vpop.f32.mrb[0].mxu0
    %v4671 = vadd.f32 0.0, %v4670
    %v4672 = vpop.f32.mrb[0].mxu0
    %v4673 = vadd.f32 0.0, %v4672
    %4674 = vmatprep.mubr.bf16.mxu0 %v4290
    %4675 = vmatmul.mubr.bf16.gmra.mrb[0].mxu0 %v4289
    %v4676 = vpop.f32.mrb[0].mxu0
    %v4677 = vadd.f32 0.0, %v4676
    %v4678 = vpop.f32.mrb[0].mxu0
    %v4679 = vadd.f32 0.0, %v4678
    %v4680 = vpop.f32.mrb[0].mxu0
    %v4681 = vadd.f32 0.0, %v4680
    %v4682 = vpop.f32.mrb[0].mxu0
    %v4683 = vadd.f32 0.0, %v4682
    %4684 = vmatprep.mubr.bf16.mxu0 %v4292
    %4685 = vmatmul.mubr.bf16.gmra.mrb[0].mxu0 %v4291
    %v4686 = vpop.f32.mrb[0].mxu0
    %v4687 = vadd.f32 0.0, %v4686
    %v4688 = vpop.f32.mrb[0].mxu0
    %v4689 = vadd.f32 0.0, %v4688
    %v4690 = vpop.f32.mrb[0].mxu0
    %v4691 = vadd.f32 0.0, %v4690
    %v4692 = vpop.f32.mrb[0].mxu0
    %v4693 = vadd.f32 0.0, %v4692
    %4694 = vmatprep.mubr.bf16.mxu0 %v4294
    %4695 = vmatmul.mubr.bf16.gmra.mrb[0].mxu0 %v4293
    %v4696 = vpop.f32.mrb[0].mxu0
    %v4697 = vadd.f32 0.0, %v4696
    %v4698 = vpop.f32.mrb[0].mxu0
    %v4699 = vadd.f32 0.0, %v4698
    %v4700 = vpop.f32.mrb[0].mxu0
    %v4701 = vadd.f32 0.0, %v4700
    %v4702 = vpop.f32.mrb[0].mxu0
    %v4703 = vadd.f32 0.0, %v4702
    %4704 = vmatprep.mubr.bf16.mxu0 %v4296
    %4705 = vmatmul.mubr.bf16.gmra.mrb[0].mxu0 %v4295
    %v4706 = vpop.f32.mrb[0].mxu0
    %v4707 = vadd.f32 0.0, %v4706
    %v4708 = vpop.f32.mrb[0].mxu0
    %v4709 = vadd.f32 0.0, %v4708
    %v4710 = vpop.f32.mrb[0].mxu0
    %v4711 = vadd.f32 0.0, %v4710
    %v4712 = vpop.f32.mrb[0].mxu0
    %v4713 = vadd.f32 0.0, %v4712
    %4714 = vdwg.mxu0
    %4715 = vmatprep.subr.bf16.mxu0 %v4014
    %4716 = vmatpush1.bf16.msra.mxu0 %v4013
    %4717 = vmatprep.subr.bf16.mxu0 %v4022
    %4718 = vmatpush1.bf16.msra.mxu0 %v4021
    %4719 = vmatprep.subr.bf16.mxu0 %v4030
    %4720 = vmatpush1.bf16.msra.mxu0 %v4029
    %4721 = vmatprep.subr.bf16.mxu0 %v4038
    %4722 = vmatpush1.bf16.msra.mxu0 %v4037
    %4723 = vmatprep.subr.bf16.mxu0 %v4046
    %4724 = vmatpush1.bf16.msra.mxu0 %v4045
    %4725 = vmatprep.subr.bf16.mxu0 %v4054
    %4726 = vmatpush1.bf16.msra.mxu0 %v4053
    %4727 = vmatprep.subr.bf16.mxu0 %v4062
    %4728 = vmatpush1.bf16.msra.mxu0 %v4061
    %4729 = vmatprep.subr.bf16.mxu0 %v4070
    %4730 = vmatpush1.bf16.msra.mxu0 %v4069
    %4731 = vmatprep.subr.bf16.mxu0 %v4078
    %4732 = vmatpush1.bf16.msra.mxu0 %v4077
    %4733 = vmatprep.subr.bf16.mxu0 %v4086
    %4734 = vmatpush1.bf16.msra.mxu0 %v4085
    %4735 = vmatprep.subr.bf16.mxu0 %v4094
    %4736 = vmatpush1.bf16.msra.mxu0 %v4093
    %4737 = vmatprep.subr.bf16.mxu0 %v4102
    %4738 = vmatpush1.bf16.msra.mxu0 %v4101
    %4739 = vmatprep.subr.bf16.mxu0 %v4110
    %4740 = vmatpush1.bf16.msra.mxu0 %v4109
    %4741 = vmatprep.subr.bf16.mxu0 %v4118
    %4742 = vmatpush1.bf16.msra.mxu0 %v4117
    %4743 = vmatprep.subr.bf16.mxu0 %v4126
    %4744 = vmatpush1.bf16.msra.mxu0 %v4125
    %4745 = vmatprep.subr.bf16.mxu0 %v4134
    %4746 = vmatpush1.bf16.msra.mxu0 %v4133
    %4747 = vmatprep.mubr.bf16.mxu0 %v4266
    %4748 = vmatmul.mubr.bf16.gmra.mrb[0].mxu0 %v4265
    %v4749 = vpop.f32.mrb[0].mxu0
    %v4750 = vadd.f32 0.0, %v4749
    %v4751 = vpop.f32.mrb[0].mxu0
    %v4752 = vadd.f32 0.0, %v4751
    %v4753 = vpop.f32.mrb[0].mxu0
    %v4754 = vadd.f32 0.0, %v4753
    %v4755 = vpop.f32.mrb[0].mxu0
    %v4756 = vadd.f32 0.0, %v4755
    %4757 = vmatprep.mubr.bf16.mxu0 %v4268
    %4758 = vmatmul.mubr.bf16.gmra.mrb[0].mxu0 %v4267
    %v4759 = vpop.f32.mrb[0].mxu0
    %v4760 = vadd.f32 0.0, %v4759
    %v4761 = vpop.f32.mrb[0].mxu0
    %v4762 = vadd.f32 0.0, %v4761
    %v4763 = vpop.f32.mrb[0].mxu0
    %v4764 = vadd.f32 0.0, %v4763
    %v4765 = vpop.f32.mrb[0].mxu0
    %v4766 = vadd.f32 0.0, %v4765
    %4767 = vmatprep.mubr.bf16.mxu0 %v4270
    %4768 = vmatmul.mubr.bf16.gmra.mrb[0].mxu0 %v4269
    %v4769 = vpop.f32.mrb[0].mxu0
    %v4770 = vadd.f32 0.0, %v4769
    %v4771 = vpop.f32.mrb[0].mxu0
    %v4772 = vadd.f32 0.0, %v4771
    %v4773 = vpop.f32.mrb[0].mxu0
    %v4774 = vadd.f32 0.0, %v4773
    %v4775 = vpop.f32.mrb[0].mxu0
    %v4776 = vadd.f32 0.0, %v4775
    %4777 = vmatprep.mubr.bf16.mxu0 %v4272
    %4778 = vmatmul.mubr.bf16.gmra.mrb[0].mxu0 %v4271
    %v4779 = vpop.f32.mrb[0].mxu0
    %v4780 = vadd.f32 0.0, %v4779
    %v4781 = vpop.f32.mrb[0].mxu0
    %v4782 = vadd.f32 0.0, %v4781
    %v4783 = vpop.f32.mrb[0].mxu0
    %v4784 = vadd.f32 0.0, %v4783
    %v4785 = vpop.f32.mrb[0].mxu0
    %v4786 = vadd.f32 0.0, %v4785
    %4787 = vmatprep.mubr.bf16.mxu0 %v4274
    %4788 = vmatmul.mubr.bf16.gmra.mrb[0].mxu0 %v4273
    %v4789 = vpop.f32.mrb[0].mxu0
    %v4790 = vadd.f32 0.0, %v4789
    %v4791 = vpop.f32.mrb[0].mxu0
    %v4792 = vadd.f32 0.0, %v4791
    %v4793 = vpop.f32.mrb[0].mxu0
    %v4794 = vadd.f32 0.0, %v4793
    %v4795 = vpop.f32.mrb[0].mxu0
    %v4796 = vadd.f32 0.0, %v4795
    %4797 = vmatprep.mubr.bf16.mxu0 %v4276
    %4798 = vmatmul.mubr.bf16.gmra.mrb[0].mxu0 %v4275
    %v4799 = vpop.f32.mrb[0].mxu0
    %v4800 = vadd.f32 0.0, %v4799
    %v4801 = vpop.f32.mrb[0].mxu0
    %v4802 = vadd.f32 0.0, %v4801
    %v4803 = vpop.f32.mrb[0].mxu0
    %v4804 = vadd.f32 0.0, %v4803
    %v4805 = vpop.f32.mrb[0].mxu0
    %v4806 = vadd.f32 0.0, %v4805
    %4807 = vmatprep.mubr.bf16.mxu0 %v4278
    %4808 = vmatmul.mubr.bf16.gmra.mrb[0].mxu0 %v4277
    %v4809 = vpop.f32.mrb[0].mxu0
    %v4810 = vadd.f32 0.0, %v4809
    %v4811 = vpop.f32.mrb[0].mxu0
    %v4812 = vadd.f32 0.0, %v4811
    %v4813 = vpop.f32.mrb[0].mxu0
    %v4814 = vadd.f32 0.0, %v4813
    %v4815 = vpop.f32.mrb[0].mxu0
    %v4816 = vadd.f32 0.0, %v4815
    %4817 = vmatprep.mubr.bf16.mxu0 %v4280
    %4818 = vmatmul.mubr.bf16.gmra.mrb[0].mxu0 %v4279
    %v4819 = vpop.f32.mrb[0].mxu0
    %v4820 = vadd.f32 0.0, %v4819
    %v4821 = vpop.f32.mrb[0].mxu0
    %v4822 = vadd.f32 0.0, %v4821
    %v4823 = vpop.f32.mrb[0].mxu0
    %v4824 = vadd.f32 0.0, %v4823
    %v4825 = vpop.f32.mrb[0].mxu0
    %v4826 = vadd.f32 0.0, %v4825
    %4827 = vmatprep.mubr.bf16.mxu0 %v4282
    %4828 = vmatmul.mubr.bf16.gmra.mrb[0].mxu0 %v4281
    %v4829 = vpop.f32.mrb[0].mxu0
    %v4830 = vadd.f32 0.0, %v4829
    %v4831 = vpop.f32.mrb[0].mxu0
    %v4832 = vadd.f32 0.0, %v4831
    %v4833 = vpop.f32.mrb[0].mxu0
    %v4834 = vadd.f32 0.0, %v4833
    %v4835 = vpop.f32.mrb[0].mxu0
    %v4836 = vadd.f32 0.0, %v4835
    %4837 = vmatprep.mubr.bf16.mxu0 %v4284
    %4838 = vmatmul.mubr.bf16.gmra.mrb[0].mxu0 %v4283
    %v4839 = vpop.f32.mrb[0].mxu0
    %v4840 = vadd.f32 0.0, %v4839
    %v4841 = vpop.f32.mrb[0].mxu0
    %v4842 = vadd.f32 0.0, %v4841
    %v4843 = vpop.f32.mrb[0].mxu0
    %v4844 = vadd.f32 0.0, %v4843
    %v4845 = vpop.f32.mrb[0].mxu0
    %v4846 = vadd.f32 0.0, %v4845
    %4847 = vmatprep.mubr.bf16.mxu0 %v4286
    %4848 = vmatmul.mubr.bf16.gmra.mrb[0].mxu0 %v4285
    %v4849 = vpop.f32.mrb[0].mxu0
    %v4850 = vadd.f32 0.0, %v4849
    %v4851 = vpop.f32.mrb[0].mxu0
    %v4852 = vadd.f32 0.0, %v4851
    %v4853 = vpop.f32.mrb[0].mxu0
    %v4854 = vadd.f32 0.0, %v4853
    %v4855 = vpop.f32.mrb[0].mxu0
    %v4856 = vadd.f32 0.0, %v4855
    %4857 = vmatprep.mubr.bf16.mxu0 %v4288
    %4858 = vmatmul.mubr.bf16.gmra.mrb[0].mxu0 %v4287
    %v4859 = vpop.f32.mrb[0].mxu0
    %v4860 = vadd.f32 0.0, %v4859
    %v4861 = vpop.f32.mrb[0].mxu0
    %v4862 = vadd.f32 0.0, %v4861
    %v4863 = vpop.f32.mrb[0].mxu0
    %v4864 = vadd.f32 0.0, %v4863
    %v4865 = vpop.f32.mrb[0].mxu0
    %v4866 = vadd.f32 0.0, %v4865
    %4867 = vmatprep.mubr.bf16.mxu0 %v4290
    %4868 = vmatmul.mubr.bf16.gmra.mrb[0].mxu0 %v4289
    %v4869 = vpop.f32.mrb[0].mxu0
    %v4870 = vadd.f32 0.0, %v4869
    %v4871 = vpop.f32.mrb[0].mxu0
    %v4872 = vadd.f32 0.0, %v4871
    %v4873 = vpop.f32.mrb[0].mxu0
    %v4874 = vadd.f32 0.0, %v4873
    %v4875 = vpop.f32.mrb[0].mxu0
    %v4876 = vadd.f32 0.0, %v4875
    %4877 = vmatprep.mubr.bf16.mxu0 %v4292
    %4878 = vmatmul.mubr.bf16.gmra.mrb[0].mxu0 %v4291
    %v4879 = vpop.f32.mrb[0].mxu0
    %v4880 = vadd.f32 0.0, %v4879
    %v4881 = vpop.f32.mrb[0].mxu0
    %v4882 = vadd.f32 0.0, %v4881
    %v4883 = vpop.f32.mrb[0].mxu0
    %v4884 = vadd.f32 0.0, %v4883
    %v4885 = vpop.f32.mrb[0].mxu0
    %v4886 = vadd.f32 0.0, %v4885
    %4887 = vmatprep.mubr.bf16.mxu0 %v4294
    %4888 = vmatmul.mubr.bf16.gmra.mrb[0].mxu0 %v4293
    %v4889 = vpop.f32.mrb[0].mxu0
    %v4890 = vadd.f32 0.0, %v4889
    %v4891 = vpop.f32.mrb[0].mxu0
    %v4892 = vadd.f32 0.0, %v4891
    %v4893 = vpop.f32.mrb[0].mxu0
    %v4894 = vadd.f32 0.0, %v4893
    %v4895 = vpop.f32.mrb[0].mxu0
    %v4896 = vadd.f32 0.0, %v4895
    %4897 = vmatprep.mubr.bf16.mxu0 %v4296
    %4898 = vmatmul.mubr.bf16.gmra.mrb[0].mxu0 %v4295
    %v4899 = vpop.f32.mrb[0].mxu0
    %v4900 = vadd.f32 0.0, %v4899
    %v4901 = vpop.f32.mrb[0].mxu0
    %v4902 = vadd.f32 0.0, %v4901
    %v4903 = vpop.f32.mrb[0].mxu0
    %v4904 = vadd.f32 0.0, %v4903
    %v4905 = vpop.f32.mrb[0].mxu0
    %v4906 = vadd.f32 0.0, %v4905
    %4907 = vdwg.mxu0
    %4908 = vmatprep.subr.bf16.mxu0 %v4016
    %4909 = vmatpush1.bf16.msra.mxu0 %v4015
    %4910 = vmatprep.subr.bf16.mxu0 %v4024
    %4911 = vmatpush1.bf16.msra.mxu0 %v4023
    %4912 = vmatprep.subr.bf16.mxu0 %v4032
    %4913 = vmatpush1.bf16.msra.mxu0 %v4031
    %4914 = vmatprep.subr.bf16.mxu0 %v4040
    %4915 = vmatpush1.bf16.msra.mxu0 %v4039
    %4916 = vmatprep.subr.bf16.mxu0 %v4048
    %4917 = vmatpush1.bf16.msra.mxu0 %v4047
    %4918 = vmatprep.subr.bf16.mxu0 %v4056
    %4919 = vmatpush1.bf16.msra.mxu0 %v4055
    %4920 = vmatprep.subr.bf16.mxu0 %v4064
    %4921 = vmatpush1.bf16.msra.mxu0 %v4063
    %4922 = vmatprep.subr.bf16.mxu0 %v4072
    %4923 = vmatpush1.bf16.msra.mxu0 %v4071
    %4924 = vmatprep.subr.bf16.mxu0 %v4080
    %4925 = vmatpush1.bf16.msra.mxu0 %v4079
    %4926 = vmatprep.subr.bf16.mxu0 %v4088
    %4927 = vmatpush1.bf16.msra.mxu0 %v4087
    %4928 = vmatprep.subr.bf16.mxu0 %v4096
    %4929 = vmatpush1.bf16.msra.mxu0 %v4095
    %4930 = vmatprep.subr.bf16.mxu0 %v4104
    %4931 = vmatpush1.bf16.msra.mxu0 %v4103
    %4932 = vmatprep.subr.bf16.mxu0 %v4112
    %4933 = vmatpush1.bf16.msra.mxu0 %v4111
    %4934 = vmatprep.subr.bf16.mxu0 %v4120
    %4935 = vmatpush1.bf16.msra.mxu0 %v4119
    %4936 = vmatprep.subr.bf16.mxu0 %v4128
    %4937 = vmatpush1.bf16.msra.mxu0 %v4127
    %4938 = vmatprep.subr.bf16.mxu0 %v4136
    %4939 = vmatpush1.bf16.msra.mxu0 %v4135
    %4940 = vmatprep.mubr.bf16.mxu0 %v4266
    %4941 = vmatmul.mubr.bf16.gmra.mrb[0].mxu0 %v4265
    %v4942 = vpop.f32.mrb[0].mxu0
    %v4943 = vadd.f32 0.0, %v4942
    %v4944 = vpop.f32.mrb[0].mxu0
    %v4945 = vadd.f32 0.0, %v4944
    %v4946 = vpop.f32.mrb[0].mxu0
    %v4947 = vadd.f32 0.0, %v4946
    %v4948 = vpop.f32.mrb[0].mxu0
    %v4949 = vadd.f32 0.0, %v4948
    %4950 = vmatprep.mubr.bf16.mxu0 %v4268
    %4951 = vmatmul.mubr.bf16.gmra.mrb[0].mxu0 %v4267
    %v4952 = vpop.f32.mrb[0].mxu0
    %v4953 = vadd.f32 0.0, %v4952
    %v4954 = vpop.f32.mrb[0].mxu0
    %v4955 = vadd.f32 0.0, %v4954
    %v4956 = vpop.f32.mrb[0].mxu0
    %v4957 = vadd.f32 0.0, %v4956
    %v4958 = vpop.f32.mrb[0].mxu0
    %v4959 = vadd.f32 0.0, %v4958
    %4960 = vmatprep.mubr.bf16.mxu0 %v4270
    %4961 = vmatmul.mubr.bf16.gmra.mrb[0].mxu0 %v4269
    %v4962 = vpop.f32.mrb[0].mxu0
    %v4963 = vadd.f32 0.0, %v4962
    %v4964 = vpop.f32.mrb[0].mxu0
    %v4965 = vadd.f32 0.0, %v4964
    %v4966 = vpop.f32.mrb[0].mxu0
    %v4967 = vadd.f32 0.0, %v4966
    %v4968 = vpop.f32.mrb[0].mxu0
    %v4969 = vadd.f32 0.0, %v4968
    %4970 = vmatprep.mubr.bf16.mxu0 %v4272
    %4971 = vmatmul.mubr.bf16.gmra.mrb[0].mxu0 %v4271
    %v4972 = vpop.f32.mrb[0].mxu0
    %v4973 = vadd.f32 0.0, %v4972
    %v4974 = vpop.f32.mrb[0].mxu0
    %v4975 = vadd.f32 0.0, %v4974
    %v4976 = vpop.f32.mrb[0].mxu0
    %v4977 = vadd.f32 0.0, %v4976
    %v4978 = vpop.f32.mrb[0].mxu0
    %v4979 = vadd.f32 0.0, %v4978
    %4980 = vmatprep.mubr.bf16.mxu0 %v4274
    %4981 = vmatmul.mubr.bf16.gmra.mrb[0].mxu0 %v4273
    %v4982 = vpop.f32.mrb[0].mxu0
    %v4983 = vadd.f32 0.0, %v4982
    %v4984 = vpop.f32.mrb[0].mxu0
    %v4985 = vadd.f32 0.0, %v4984
    %v4986 = vpop.f32.mrb[0].mxu0
    %v4987 = vadd.f32 0.0, %v4986
    %v4988 = vpop.f32.mrb[0].mxu0
    %v4989 = vadd.f32 0.0, %v4988
    %4990 = vmatprep.mubr.bf16.mxu0 %v4276
    %4991 = vmatmul.mubr.bf16.gmra.mrb[0].mxu0 %v4275
    %v4992 = vpop.f32.mrb[0].mxu0
    %v4993 = vadd.f32 0.0, %v4992
    %v4994 = vpop.f32.mrb[0].mxu0
    %v4995 = vadd.f32 0.0, %v4994
    %v4996 = vpop.f32.mrb[0].mxu0
    %v4997 = vadd.f32 0.0, %v4996
    %v4998 = vpop.f32.mrb[0].mxu0
    %v4999 = vadd.f32 0.0, %v4998
    %5000 = vmatprep.mubr.bf16.mxu0 %v4278
    %5001 = vmatmul.mubr.bf16.gmra.mrb[0].mxu0 %v4277
    %v5002 = vpop.f32.mrb[0].mxu0
    %v5003 = vadd.f32 0.0, %v5002
    %v5004 = vpop.f32.mrb[0].mxu0
    %v5005 = vadd.f32 0.0, %v5004
    %v5006 = vpop.f32.mrb[0].mxu0
    %v5007 = vadd.f32 0.0, %v5006
    %v5008 = vpop.f32.mrb[0].mxu0
    %v5009 = vadd.f32 0.0, %v5008
    %5010 = vmatprep.mubr.bf16.mxu0 %v4280
    %5011 = vmatmul.mubr.bf16.gmra.mrb[0].mxu0 %v4279
    %v5012 = vpop.f32.mrb[0].mxu0
    %v5013 = vadd.f32 0.0, %v5012
    %v5014 = vpop.f32.mrb[0].mxu0
    %v5015 = vadd.f32 0.0, %v5014
    %v5016 = vpop.f32.mrb[0].mxu0
    %v5017 = vadd.f32 0.0, %v5016
    %v5018 = vpop.f32.mrb[0].mxu0
    %v5019 = vadd.f32 0.0, %v5018
    %5020 = vmatprep.mubr.bf16.mxu0 %v4282
    %5021 = vmatmul.mubr.bf16.gmra.mrb[0].mxu0 %v4281
    %v5022 = vpop.f32.mrb[0].mxu0
    %v5023 = vadd.f32 0.0, %v5022
    %v5024 = vpop.f32.mrb[0].mxu0
    %v5025 = vadd.f32 0.0, %v5024
    %v5026 = vpop.f32.mrb[0].mxu0
    %v5027 = vadd.f32 0.0, %v5026
    %v5028 = vpop.f32.mrb[0].mxu0
    %v5029 = vadd.f32 0.0, %v5028
    %5030 = vmatprep.mubr.bf16.mxu0 %v4284
    %5031 = vmatmul.mubr.bf16.gmra.mrb[0].mxu0 %v4283
    %v5032 = vpop.f32.mrb[0].mxu0
    %v5033 = vadd.f32 0.0, %v5032
    %v5034 = vpop.f32.mrb[0].mxu0
    %v5035 = vadd.f32 0.0, %v5034
    %v5036 = vpop.f32.mrb[0].mxu0
    %v5037 = vadd.f32 0.0, %v5036
    %v5038 = vpop.f32.mrb[0].mxu0
    %v5039 = vadd.f32 0.0, %v5038
    %5040 = vmatprep.mubr.bf16.mxu0 %v4286
    %5041 = vmatmul.mubr.bf16.gmra.mrb[0].mxu0 %v4285
    %v5042 = vpop.f32.mrb[0].mxu0
    %v5043 = vadd.f32 0.0, %v5042
    %v5044 = vpop.f32.mrb[0].mxu0
    %v5045 = vadd.f32 0.0, %v5044
    %v5046 = vpop.f32.mrb[0].mxu0
    %v5047 = vadd.f32 0.0, %v5046
    %v5048 = vpop.f32.mrb[0].mxu0
    %v5049 = vadd.f32 0.0, %v5048
    %5050 = vmatprep.mubr.bf16.mxu0 %v4288
    %5051 = vmatmul.mubr.bf16.gmra.mrb[0].mxu0 %v4287
    %v5052 = vpop.f32.mrb[0].mxu0
    %v5053 = vadd.f32 0.0, %v5052
    %v5054 = vpop.f32.mrb[0].mxu0
    %v5055 = vadd.f32 0.0, %v5054
    %v5056 = vpop.f32.mrb[0].mxu0
    %v5057 = vadd.f32 0.0, %v5056
    %v5058 = vpop.f32.mrb[0].mxu0
    %v5059 = vadd.f32 0.0, %v5058
    %5060 = vmatprep.mubr.bf16.mxu0 %v4290
    %5061 = vmatmul.mubr.bf16.gmra.mrb[0].mxu0 %v4289
    %v5062 = vpop.f32.mrb[0].mxu0
    %v5063 = vadd.f32 0.0, %v5062
    %v5064 = vpop.f32.mrb[0].mxu0
    %v5065 = vadd.f32 0.0, %v5064
    %v5066 = vpop.f32.mrb[0].mxu0
    %v5067 = vadd.f32 0.0, %v5066
    %v5068 = vpop.f32.mrb[0].mxu0
    %v5069 = vadd.f32 0.0, %v5068
    %5070 = vmatprep.mubr.bf16.mxu0 %v4292
    %5071 = vmatmul.mubr.bf16.gmra.mrb[0].mxu0 %v4291
    %v5072 = vpop.f32.mrb[0].mxu0
    %v5073 = vadd.f32 0.0, %v5072
    %v5074 = vpop.f32.mrb[0].mxu0
    %v5075 = vadd.f32 0.0, %v5074
    %v5076 = vpop.f32.mrb[0].mxu0
    %v5077 = vadd.f32 0.0, %v5076
    %v5078 = vpop.f32.mrb[0].mxu0
    %v5079 = vadd.f32 0.0, %v5078
    %5080 = vmatprep.mubr.bf16.mxu0 %v4294
    %5081 = vmatmul.mubr.bf16.gmra.mrb[0].mxu0 %v4293
    %v5082 = vpop.f32.mrb[0].mxu0
    %v5083 = vadd.f32 0.0, %v5082
    %v5084 = vpop.f32.mrb[0].mxu0
    %v5085 = vadd.f32 0.0, %v5084
    %v5086 = vpop.f32.mrb[0].mxu0
    %v5087 = vadd.f32 0.0, %v5086
    %v5088 = vpop.f32.mrb[0].mxu0
    %v5089 = vadd.f32 0.0, %v5088
    %5090 = vmatprep.mubr.bf16.mxu0 %v4296
    %5091 = vmatmul.mubr.bf16.gmra.mrb[0].mxu0 %v4295
    %v5092 = vpop.f32.mrb[0].mxu0
    %v5093 = vadd.f32 0.0, %v5092
    %v5094 = vpop.f32.mrb[0].mxu0
    %v5095 = vadd.f32 0.0, %v5094
    %v5096 = vpop.f32.mrb[0].mxu0
    %v5097 = vadd.f32 0.0, %v5096
    %v5098 = vpop.f32.mrb[0].mxu0
    %v5099 = vadd.f32 0.0, %v5098
    %5100 = vdwg.mxu0
    %v5101 = vpack.c.bf16 %v4368, %v4364
    %v5102 = vpack.c.bf16 %v4370, %v4366
    %v5103 = vpack.c.bf16 %v4561, %v4557
    %v5104 = vpack.c.bf16 %v4563, %v4559
    %v5105 = vpack.c.bf16 %v4754, %v4750
    %v5106 = vpack.c.bf16 %v4756, %v4752
    %v5107 = vpack.c.bf16 %v4947, %v4943
    %v5108 = vpack.c.bf16 %v4949, %v4945
    %v5109 = vpack.c.bf16 %v4378, %v4374
    %v5110 = vpack.c.bf16 %v4380, %v4376
    %v5111 = vpack.c.bf16 %v4571, %v4567
    %v5112 = vpack.c.bf16 %v4573, %v4569
    %v5113 = vpack.c.bf16 %v4764, %v4760
    %v5114 = vpack.c.bf16 %v4766, %v4762
    %v5115 = vpack.c.bf16 %v4957, %v4953
    %v5116 = vpack.c.bf16 %v4959, %v4955
    %v5117 = vpack.c.bf16 %v4388, %v4384
    %v5118 = vpack.c.bf16 %v4390, %v4386
    %v5119 = vpack.c.bf16 %v4581, %v4577
    %v5120 = vpack.c.bf16 %v4583, %v4579
    %v5121 = vpack.c.bf16 %v4774, %v4770
    %v5122 = vpack.c.bf16 %v4776, %v4772
    %v5123 = vpack.c.bf16 %v4967, %v4963
    %v5124 = vpack.c.bf16 %v4969, %v4965
    %v5125 = vpack.c.bf16 %v4398, %v4394
    %v5126 = vpack.c.bf16 %v4400, %v4396
    %v5127 = vpack.c.bf16 %v4591, %v4587
    %v5128 = vpack.c.bf16 %v4593, %v4589
    %v5129 = vpack.c.bf16 %v4784, %v4780
    %v5130 = vpack.c.bf16 %v4786, %v4782
    %v5131 = vpack.c.bf16 %v4977, %v4973
    %v5132 = vpack.c.bf16 %v4979, %v4975
    %v5133 = vpack.c.bf16 %v4408, %v4404
    %v5134 = vpack.c.bf16 %v4410, %v4406
    %v5135 = vpack.c.bf16 %v4601, %v4597
    %v5136 = vpack.c.bf16 %v4603, %v4599
    %v5137 = vpack.c.bf16 %v4794, %v4790
    %v5138 = vpack.c.bf16 %v4796, %v4792
    %v5139 = vpack.c.bf16 %v4987, %v4983
    %v5140 = vpack.c.bf16 %v4989, %v4985
    %v5141 = vpack.c.bf16 %v4418, %v4414
    %v5142 = vpack.c.bf16 %v4420, %v4416
    %v5143 = vpack.c.bf16 %v4611, %v4607
    %v5144 = vpack.c.bf16 %v4613, %v4609
    %v5145 = vpack.c.bf16 %v4804, %v4800
    %v5146 = vpack.c.bf16 %v4806, %v4802
    %v5147 = vpack.c.bf16 %v4997, %v4993
    %v5148 = vpack.c.bf16 %v4999, %v4995
    %v5149 = vpack.c.bf16 %v4428, %v4424
    %v5150 = vpack.c.bf16 %v4430, %v4426
    %v5151 = vpack.c.bf16 %v4621, %v4617
    %v5152 = vpack.c.bf16 %v4623, %v4619
    %v5153 = vpack.c.bf16 %v4814, %v4810
    %v5154 = vpack.c.bf16 %v4816, %v4812
    %v5155 = vpack.c.bf16 %v5007, %v5003
    %v5156 = vpack.c.bf16 %v5009, %v5005
    %v5157 = vpack.c.bf16 %v4438, %v4434
    %v5158 = vpack.c.bf16 %v4440, %v4436
    %v5159 = vpack.c.bf16 %v4631, %v4627
    %v5160 = vpack.c.bf16 %v4633, %v4629
    %v5161 = vpack.c.bf16 %v4824, %v4820
    %v5162 = vpack.c.bf16 %v4826, %v4822
    %v5163 = vpack.c.bf16 %v5017, %v5013
    %v5164 = vpack.c.bf16 %v5019, %v5015
    %v5165 = vpack.c.bf16 %v4448, %v4444
    %v5166 = vpack.c.bf16 %v4450, %v4446
    %v5167 = vpack.c.bf16 %v4641, %v4637
    %v5168 = vpack.c.bf16 %v4643, %v4639
    %v5169 = vpack.c.bf16 %v4834, %v4830
    %v5170 = vpack.c.bf16 %v4836, %v4832
    %v5171 = vpack.c.bf16 %v5027, %v5023
    %v5172 = vpack.c.bf16 %v5029, %v5025
    %v5173 = vpack.c.bf16 %v4458, %v4454
    %v5174 = vpack.c.bf16 %v4460, %v4456
    %v5175 = vpack.c.bf16 %v4651, %v4647
    %v5176 = vpack.c.bf16 %v4653, %v4649
    %v5177 = vpack.c.bf16 %v4844, %v4840
    %v5178 = vpack.c.bf16 %v4846, %v4842
    %v5179 = vpack.c.bf16 %v5037, %v5033
    %v5180 = vpack.c.bf16 %v5039, %v5035
    %v5181 = vpack.c.bf16 %v4468, %v4464
    %v5182 = vpack.c.bf16 %v4470, %v4466
    %v5183 = vpack.c.bf16 %v4661, %v4657
    %v5184 = vpack.c.bf16 %v4663, %v4659
    %v5185 = vpack.c.bf16 %v4854, %v4850
    %v5186 = vpack.c.bf16 %v4856, %v4852
    %v5187 = vpack.c.bf16 %v5047, %v5043
    %v5188 = vpack.c.bf16 %v5049, %v5045
    %v5189 = vpack.c.bf16 %v4478, %v4474
    %v5190 = vpack.c.bf16 %v4480, %v4476
    %v5191 = vpack.c.bf16 %v4671, %v4667
    %v5192 = vpack.c.bf16 %v4673, %v4669
    %v5193 = vpack.c.bf16 %v4864, %v4860
    %v5194 = vpack.c.bf16 %v4866, %v4862
    %v5195 = vpack.c.bf16 %v5057, %v5053
    %v5196 = vpack.c.bf16 %v5059, %v5055
    %v5197 = vpack.c.bf16 %v4488, %v4484
    %v5198 = vpack.c.bf16 %v4490, %v4486
    %v5199 = vpack.c.bf16 %v4681, %v4677
    %v5200 = vpack.c.bf16 %v4683, %v4679
    %v5201 = vpack.c.bf16 %v4874, %v4870
    %v5202 = vpack.c.bf16 %v4876, %v4872
    %v5203 = vpack.c.bf16 %v5067, %v5063
    %v5204 = vpack.c.bf16 %v5069, %v5065
    %v5205 = vpack.c.bf16 %v4498, %v4494
    %v5206 = vpack.c.bf16 %v4500, %v4496
    %v5207 = vpack.c.bf16 %v4691, %v4687
    %v5208 = vpack.c.bf16 %v4693, %v4689
    %v5209 = vpack.c.bf16 %v4884, %v4880
    %v5210 = vpack.c.bf16 %v4886, %v4882
    %v5211 = vpack.c.bf16 %v5077, %v5073
    %v5212 = vpack.c.bf16 %v5079, %v5075
    %v5213 = vpack.c.bf16 %v4508, %v4504
    %v5214 = vpack.c.bf16 %v4510, %v4506
    %v5215 = vpack.c.bf16 %v4701, %v4697
    %v5216 = vpack.c.bf16 %v4703, %v4699
    %v5217 = vpack.c.bf16 %v4894, %v4890
    %v5218 = vpack.c.bf16 %v4896, %v4892
    %v5219 = vpack.c.bf16 %v5087, %v5083
    %v5220 = vpack.c.bf16 %v5089, %v5085
    %v5221 = vpack.c.bf16 %v4518, %v4514
    %v5222 = vpack.c.bf16 %v4520, %v4516
    %v5223 = vpack.c.bf16 %v4711, %v4707
    %v5224 = vpack.c.bf16 %v4713, %v4709
    %v5225 = vpack.c.bf16 %v4904, %v4900
    %v5226 = vpack.c.bf16 %v4906, %v4902
    %v5227 = vpack.c.bf16 %v5097, %v5093
    %v5228 = vpack.c.bf16 %v5099, %v5095
    %v5229 = vld [vmem:[#allocation14] sm:$0xf]
    %v5230 = vld [vmem:[#allocation14 + $0x4] sm:$0xf]
    %v5231 = vld [vmem:[#allocation14 + $0x8] sm:$0xf]
    %v5232 = vld [vmem:[#allocation14 + $0xc] sm:$0xf]
    %v5233 = vld [vmem:[#allocation14 + $0x10] sm:$0xf]
    %v5234 = vld [vmem:[#allocation14 + $0x14] sm:$0xf]
    %v5235 = vld [vmem:[#allocation14 + $0x18] sm:$0xf]
    %v5236 = vld [vmem:[#allocation14 + $0x1c] sm:$0xf]
    %v5237 = vld [vmem:[#allocation14 + $0x20] sm:$0xf]
    %v5238 = vld [vmem:[#allocation14 + $0x24] sm:$0xf]
    %v5239 = vld [vmem:[#allocation14 + $0x28] sm:$0xf]
    %v5240 = vld [vmem:[#allocation14 + $0x2c] sm:$0xf]
    %v5241 = vld [vmem:[#allocation14 + $0x30] sm:$0xf]
    %v5242 = vld [vmem:[#allocation14 + $0x34] sm:$0xf]
    %v5243 = vld [vmem:[#allocation14 + $0x38] sm:$0xf]
    %v5244 = vld [vmem:[#allocation14 + $0x3c] sm:$0xf]
    %v5245 = vld [vmem:[#allocation14 + $0x40] sm:$0xf]
    %v5246 = vld [vmem:[#allocation14 + $0x44] sm:$0xf]
    %v5247 = vld [vmem:[#allocation14 + $0x48] sm:$0xf]
    %v5248 = vld [vmem:[#allocation14 + $0x4c] sm:$0xf]
    %v5249 = vld [vmem:[#allocation14 + $0x50] sm:$0xf]
    %v5250 = vld [vmem:[#allocation14 + $0x54] sm:$0xf]
    %v5251 = vld [vmem:[#allocation14 + $0x58] sm:$0xf]
    %v5252 = vld [vmem:[#allocation14 + $0x5c] sm:$0xf]
    %v5253 = vld [vmem:[#allocation14 + $0x60] sm:$0xf]
    %v5254 = vld [vmem:[#allocation14 + $0x64] sm:$0xf]
    %v5255 = vld [vmem:[#allocation14 + $0x68] sm:$0xf]
    %v5256 = vld [vmem:[#allocation14 + $0x6c] sm:$0xf]
    %v5257 = vld [vmem:[#allocation14 + $0x70] sm:$0xf]
    %v5258 = vld [vmem:[#allocation14 + $0x74] sm:$0xf]
    %v5259 = vld [vmem:[#allocation14 + $0x78] sm:$0xf]
    %v5260 = vld [vmem:[#allocation14 + $0x7c] sm:$0xf]
    %5262 = vset.pattern.permute.xlu0 0
    %5263 = vperm.xlu0 %5262, %v5229
    %v5264 = vpop.permute.xlu0 %5263
    %v5267 = vunpack.c.l.s4 839922192
    %v5268 = vunpack.c.0.s8 %v5267
    %v5269 = vlaneseq
    %v5270 = vshrl.u32 %v5269, 7
    %v5271 = vsub.s32 %v5268, %v5270
    %v5272 = vrot.slane %v5264, %v5271
    %5274 = vset.pattern.permute.xlu0 0
    %5275 = vperm.xlu0 %5274, %v5230
    %v5276 = vpop.permute.xlu0 %5275
    %v5279 = vunpack.c.l.s4 839922192
    %v5280 = vunpack.c.0.s8 %v5279
    %v5281 = vlaneseq
    %v5282 = vshrl.u32 %v5281, 7
    %v5283 = vsub.s32 %v5280, %v5282
    %v5284 = vrot.slane %v5276, %v5283
    %5286 = vset.pattern.permute.xlu0 0
    %5287 = vperm.xlu0 %5286, %v5231
    %v5288 = vpop.permute.xlu0 %5287
    %v5291 = vunpack.c.l.s4 839922192
    %v5292 = vunpack.c.0.s8 %v5291
    %v5293 = vlaneseq
    %v5294 = vshrl.u32 %v5293, 7
    %v5295 = vsub.s32 %v5292, %v5294
    %v5296 = vrot.slane %v5288, %v5295
    %5298 = vset.pattern.permute.xlu0 0
    %5299 = vperm.xlu0 %5298, %v5232
    %v5300 = vpop.permute.xlu0 %5299
    %v5303 = vunpack.c.l.s4 839922192
    %v5304 = vunpack.c.0.s8 %v5303
    %v5305 = vlaneseq
    %v5306 = vshrl.u32 %v5305, 7
    %v5307 = vsub.s32 %v5304, %v5306
    %v5308 = vrot.slane %v5300, %v5307
    %5310 = vset.pattern.permute.xlu0 0
    %5311 = vperm.xlu0 %5310, %v5233
    %v5312 = vpop.permute.xlu0 %5311
    %v5315 = vunpack.c.l.s4 839922192
    %v5316 = vunpack.c.0.s8 %v5315
    %v5317 = vlaneseq
    %v5318 = vshrl.u32 %v5317, 7
    %v5319 = vsub.s32 %v5316, %v5318
    %v5320 = vrot.slane %v5312, %v5319
    %5322 = vset.pattern.permute.xlu0 0
    %5323 = vperm.xlu0 %5322, %v5234
    %v5324 = vpop.permute.xlu0 %5323
    %v5327 = vunpack.c.l.s4 839922192
    %v5328 = vunpack.c.0.s8 %v5327
    %v5329 = vlaneseq
    %v5330 = vshrl.u32 %v5329, 7
    %v5331 = vsub.s32 %v5328, %v5330
    %v5332 = vrot.slane %v5324, %v5331
    %5334 = vset.pattern.permute.xlu0 0
    %5335 = vperm.xlu0 %5334, %v5235
    %v5336 = vpop.permute.xlu0 %5335
    %v5339 = vunpack.c.l.s4 839922192
    %v5340 = vunpack.c.0.s8 %v5339
    %v5341 = vlaneseq
    %v5342 = vshrl.u32 %v5341, 7
    %v5343 = vsub.s32 %v5340, %v5342
    %v5344 = vrot.slane %v5336, %v5343
    %5346 = vset.pattern.permute.xlu0 0
    %5347 = vperm.xlu0 %5346, %v5236
    %v5348 = vpop.permute.xlu0 %5347
    %v5351 = vunpack.c.l.s4 839922192
    %v5352 = vunpack.c.0.s8 %v5351
    %v5353 = vlaneseq
    %v5354 = vshrl.u32 %v5353, 7
    %v5355 = vsub.s32 %v5352, %v5354
    %v5356 = vrot.slane %v5348, %v5355
    %5358 = vset.pattern.permute.xlu0 0
    %5359 = vperm.xlu0 %5358, %v5237
    %v5360 = vpop.permute.xlu0 %5359
    %v5363 = vunpack.c.l.s4 839922192
    %v5364 = vunpack.c.0.s8 %v5363
    %v5365 = vlaneseq
    %v5366 = vshrl.u32 %v5365, 7
    %v5367 = vsub.s32 %v5364, %v5366
    %v5368 = vrot.slane %v5360, %v5367
    %5370 = vset.pattern.permute.xlu0 0
    %5371 = vperm.xlu0 %5370, %v5238
    %v5372 = vpop.permute.xlu0 %5371
    %v5375 = vunpack.c.l.s4 839922192
    %v5376 = vunpack.c.0.s8 %v5375
    %v5377 = vlaneseq
    %v5378 = vshrl.u32 %v5377, 7
    %v5379 = vsub.s32 %v5376, %v5378
    %v5380 = vrot.slane %v5372, %v5379
    %5382 = vset.pattern.permute.xlu0 0
    %5383 = vperm.xlu0 %5382, %v5239
    %v5384 = vpop.permute.xlu0 %5383
    %v5387 = vunpack.c.l.s4 839922192
    %v5388 = vunpack.c.0.s8 %v5387
    %v5389 = vlaneseq
    %v5390 = vshrl.u32 %v5389, 7
    %v5391 = vsub.s32 %v5388, %v5390
    %v5392 = vrot.slane %v5384, %v5391
    %5394 = vset.pattern.permute.xlu0 0
    %5395 = vperm.xlu0 %5394, %v5240
    %v5396 = vpop.permute.xlu0 %5395
    %v5399 = vunpack.c.l.s4 839922192
    %v5400 = vunpack.c.0.s8 %v5399
    %v5401 = vlaneseq
    %v5402 = vshrl.u32 %v5401, 7
    %v5403 = vsub.s32 %v5400, %v5402
    %v5404 = vrot.slane %v5396, %v5403
    %5406 = vset.pattern.permute.xlu0 0
    %5407 = vperm.xlu0 %5406, %v5241
    %v5408 = vpop.permute.xlu0 %5407
    %v5411 = vunpack.c.l.s4 839922192
    %v5412 = vunpack.c.0.s8 %v5411
    %v5413 = vlaneseq
    %v5414 = vshrl.u32 %v5413, 7
    %v5415 = vsub.s32 %v5412, %v5414
    %v5416 = vrot.slane %v5408, %v5415
    %5418 = vset.pattern.permute.xlu0 0
    %5419 = vperm.xlu0 %5418, %v5242
    %v5420 = vpop.permute.xlu0 %5419
    %v5423 = vunpack.c.l.s4 839922192
    %v5424 = vunpack.c.0.s8 %v5423
    %v5425 = vlaneseq
    %v5426 = vshrl.u32 %v5425, 7
    %v5427 = vsub.s32 %v5424, %v5426
    %v5428 = vrot.slane %v5420, %v5427
    %5430 = vset.pattern.permute.xlu0 0
    %5431 = vperm.xlu0 %5430, %v5243
    %v5432 = vpop.permute.xlu0 %5431
    %v5435 = vunpack.c.l.s4 839922192
    %v5436 = vunpack.c.0.s8 %v5435
    %v5437 = vlaneseq
    %v5438 = vshrl.u32 %v5437, 7
    %v5439 = vsub.s32 %v5436, %v5438
    %v5440 = vrot.slane %v5432, %v5439
    %5442 = vset.pattern.permute.xlu0 0
    %5443 = vperm.xlu0 %5442, %v5244
    %v5444 = vpop.permute.xlu0 %5443
    %v5447 = vunpack.c.l.s4 839922192
    %v5448 = vunpack.c.0.s8 %v5447
    %v5449 = vlaneseq
    %v5450 = vshrl.u32 %v5449, 7
    %v5451 = vsub.s32 %v5448, %v5450
    %v5452 = vrot.slane %v5444, %v5451
    %5454 = vset.pattern.permute.xlu0 0
    %5455 = vperm.xlu0 %5454, %v5245
    %v5456 = vpop.permute.xlu0 %5455
    %v5459 = vunpack.c.l.s4 839922192
    %v5460 = vunpack.c.0.s8 %v5459
    %v5461 = vlaneseq
    %v5462 = vshrl.u32 %v5461, 7
    %v5463 = vsub.s32 %v5460, %v5462
    %v5464 = vrot.slane %v5456, %v5463
    %5466 = vset.pattern.permute.xlu0 0
    %5467 = vperm.xlu0 %5466, %v5246
    %v5468 = vpop.permute.xlu0 %5467
    %v5471 = vunpack.c.l.s4 839922192
    %v5472 = vunpack.c.0.s8 %v5471
    %v5473 = vlaneseq
    %v5474 = vshrl.u32 %v5473, 7
    %v5475 = vsub.s32 %v5472, %v5474
    %v5476 = vrot.slane %v5468, %v5475
    %5478 = vset.pattern.permute.xlu0 0
    %5479 = vperm.xlu0 %5478, %v5247
    %v5480 = vpop.permute.xlu0 %5479
    %v5483 = vunpack.c.l.s4 839922192
    %v5484 = vunpack.c.0.s8 %v5483
    %v5485 = vlaneseq
    %v5486 = vshrl.u32 %v5485, 7
    %v5487 = vsub.s32 %v5484, %v5486
    %v5488 = vrot.slane %v5480, %v5487
    %5490 = vset.pattern.permute.xlu0 0
    %5491 = vperm.xlu0 %5490, %v5248
    %v5492 = vpop.permute.xlu0 %5491
    %v5495 = vunpack.c.l.s4 839922192
    %v5496 = vunpack.c.0.s8 %v5495
    %v5497 = vlaneseq
    %v5498 = vshrl.u32 %v5497, 7
    %v5499 = vsub.s32 %v5496, %v5498
    %v5500 = vrot.slane %v5492, %v5499
    %5502 = vset.pattern.permute.xlu0 0
    %5503 = vperm.xlu0 %5502, %v5249
    %v5504 = vpop.permute.xlu0 %5503
    %v5507 = vunpack.c.l.s4 839922192
    %v5508 = vunpack.c.0.s8 %v5507
    %v5509 = vlaneseq
    %v5510 = vshrl.u32 %v5509, 7
    %v5511 = vsub.s32 %v5508, %v5510
    %v5512 = vrot.slane %v5504, %v5511
    %5514 = vset.pattern.permute.xlu0 0
    %5515 = vperm.xlu0 %5514, %v5250
    %v5516 = vpop.permute.xlu0 %5515
    %v5519 = vunpack.c.l.s4 839922192
    %v5520 = vunpack.c.0.s8 %v5519
    %v5521 = vlaneseq
    %v5522 = vshrl.u32 %v5521, 7
    %v5523 = vsub.s32 %v5520, %v5522
    %v5524 = vrot.slane %v5516, %v5523
    %5526 = vset.pattern.permute.xlu0 0
    %5527 = vperm.xlu0 %5526, %v5251
    %v5528 = vpop.permute.xlu0 %5527
    %v5531 = vunpack.c.l.s4 839922192
    %v5532 = vunpack.c.0.s8 %v5531
    %v5533 = vlaneseq
    %v5534 = vshrl.u32 %v5533, 7
    %v5535 = vsub.s32 %v5532, %v5534
    %v5536 = vrot.slane %v5528, %v5535
    %5538 = vset.pattern.permute.xlu0 0
    %5539 = vperm.xlu0 %5538, %v5252
    %v5540 = vpop.permute.xlu0 %5539
    %v5543 = vunpack.c.l.s4 839922192
    %v5544 = vunpack.c.0.s8 %v5543
    %v5545 = vlaneseq
    %v5546 = vshrl.u32 %v5545, 7
    %v5547 = vsub.s32 %v5544, %v5546
    %v5548 = vrot.slane %v5540, %v5547
    %5550 = vset.pattern.permute.xlu0 0
    %5551 = vperm.xlu0 %5550, %v5253
    %v5552 = vpop.permute.xlu0 %5551
    %v5555 = vunpack.c.l.s4 839922192
    %v5556 = vunpack.c.0.s8 %v5555
    %v5557 = vlaneseq
    %v5558 = vshrl.u32 %v5557, 7
    %v5559 = vsub.s32 %v5556, %v5558
    %v5560 = vrot.slane %v5552, %v5559
    %5562 = vset.pattern.permute.xlu0 0
    %5563 = vperm.xlu0 %5562, %v5254
    %v5564 = vpop.permute.xlu0 %5563
    %v5567 = vunpack.c.l.s4 839922192
    %v5568 = vunpack.c.0.s8 %v5567
    %v5569 = vlaneseq
    %v5570 = vshrl.u32 %v5569, 7
    %v5571 = vsub.s32 %v5568, %v5570
    %v5572 = vrot.slane %v5564, %v5571
    %5574 = vset.pattern.permute.xlu0 0
    %5575 = vperm.xlu0 %5574, %v5255
    %v5576 = vpop.permute.xlu0 %5575
    %v5579 = vunpack.c.l.s4 839922192
    %v5580 = vunpack.c.0.s8 %v5579
    %v5581 = vlaneseq
    %v5582 = vshrl.u32 %v5581, 7
    %v5583 = vsub.s32 %v5580, %v5582
    %v5584 = vrot.slane %v5576, %v5583
    %5586 = vset.pattern.permute.xlu0 0
    %5587 = vperm.xlu0 %5586, %v5256
    %v5588 = vpop.permute.xlu0 %5587
    %v5591 = vunpack.c.l.s4 839922192
    %v5592 = vunpack.c.0.s8 %v5591
    %v5593 = vlaneseq
    %v5594 = vshrl.u32 %v5593, 7
    %v5595 = vsub.s32 %v5592, %v5594
    %v5596 = vrot.slane %v5588, %v5595
    %5598 = vset.pattern.permute.xlu0 0
    %5599 = vperm.xlu0 %5598, %v5257
    %v5600 = vpop.permute.xlu0 %5599
    %v5603 = vunpack.c.l.s4 839922192
    %v5604 = vunpack.c.0.s8 %v5603
    %v5605 = vlaneseq
    %v5606 = vshrl.u32 %v5605, 7
    %v5607 = vsub.s32 %v5604, %v5606
    %v5608 = vrot.slane %v5600, %v5607
    %5610 = vset.pattern.permute.xlu0 0
    %5611 = vperm.xlu0 %5610, %v5258
    %v5612 = vpop.permute.xlu0 %5611
    %v5615 = vunpack.c.l.s4 839922192
    %v5616 = vunpack.c.0.s8 %v5615
    %v5617 = vlaneseq
    %v5618 = vshrl.u32 %v5617, 7
    %v5619 = vsub.s32 %v5616, %v5618
    %v5620 = vrot.slane %v5612, %v5619
    %5622 = vset.pattern.permute.xlu0 0
    %5623 = vperm.xlu0 %5622, %v5259
    %v5624 = vpop.permute.xlu0 %5623
    %v5627 = vunpack.c.l.s4 839922192
    %v5628 = vunpack.c.0.s8 %v5627
    %v5629 = vlaneseq
    %v5630 = vshrl.u32 %v5629, 7
    %v5631 = vsub.s32 %v5628, %v5630
    %v5632 = vrot.slane %v5624, %v5631
    %5634 = vset.pattern.permute.xlu0 0
    %5635 = vperm.xlu0 %5634, %v5260
    %v5636 = vpop.permute.xlu0 %5635
    %v5639 = vunpack.c.l.s4 839922192
    %v5640 = vunpack.c.0.s8 %v5639
    %v5641 = vlaneseq
    %v5642 = vshrl.u32 %v5641, 7
    %v5643 = vsub.s32 %v5640, %v5642
    %v5644 = vrot.slane %v5636, %v5643
    %v5677 = vunpack.c.l.b16 %v5272
    %v5678 = vunpack.c.l.b16 %v5284
    %v5679 = vunpack.c.l.b16 %v5296
    %v5680 = vunpack.c.l.b16 %v5308
    %v5681 = vunpack.c.l.b16 %v5320
    %v5682 = vunpack.c.l.b16 %v5332
    %v5683 = vunpack.c.l.b16 %v5344
    %v5684 = vunpack.c.l.b16 %v5356
    %v5685 = vunpack.c.l.b16 %v5368
    %v5686 = vunpack.c.l.b16 %v5380
    %v5687 = vunpack.c.l.b16 %v5392
    %v5688 = vunpack.c.l.b16 %v5404
    %v5689 = vunpack.c.l.b16 %v5416
    %v5690 = vunpack.c.l.b16 %v5428
    %v5691 = vunpack.c.l.b16 %v5440
    %v5692 = vunpack.c.l.b16 %v5452
    %v5693 = vunpack.c.l.b16 %v5464
    %v5694 = vunpack.c.l.b16 %v5476
    %v5695 = vunpack.c.l.b16 %v5488
    %v5696 = vunpack.c.l.b16 %v5500
    %v5697 = vunpack.c.l.b16 %v5512
    %v5698 = vunpack.c.l.b16 %v5524
    %v5699 = vunpack.c.l.b16 %v5536
    %v5700 = vunpack.c.l.b16 %v5548
    %v5701 = vunpack.c.l.b16 %v5560
    %v5702 = vunpack.c.l.b16 %v5572
    %v5703 = vunpack.c.l.b16 %v5584
    %v5704 = vunpack.c.l.b16 %v5596
    %v5705 = vunpack.c.l.b16 %v5608
    %v5706 = vunpack.c.l.b16 %v5620
    %v5707 = vunpack.c.l.b16 %v5632
    %v5708 = vunpack.c.l.b16 %v5644
    %v5709 = vpack.c.b16 %v5678, %v5677
    %v5710 = vpack.c.b16 %v5680, %v5679
    %v5711 = vpack.c.b16 %v5682, %v5681
    %v5712 = vpack.c.b16 %v5684, %v5683
    %v5713 = vpack.c.b16 %v5686, %v5685
    %v5714 = vpack.c.b16 %v5688, %v5687
    %v5715 = vpack.c.b16 %v5690, %v5689
    %v5716 = vpack.c.b16 %v5692, %v5691
    %v5717 = vpack.c.b16 %v5694, %v5693
    %v5718 = vpack.c.b16 %v5696, %v5695
    %v5719 = vpack.c.b16 %v5698, %v5697
    %v5720 = vpack.c.b16 %v5700, %v5699
    %v5721 = vpack.c.b16 %v5702, %v5701
    %v5722 = vpack.c.b16 %v5704, %v5703
    %v5723 = vpack.c.b16 %v5706, %v5705
    %v5724 = vpack.c.b16 %v5708, %v5707
    %v5741 = vadd.bf16 %v5101, %v5709
    %v5742 = vadd.bf16 %v5102, %v5709
    %v5743 = vadd.bf16 %v5103, %v5709
    %v5744 = vadd.bf16 %v5104, %v5709
    %v5745 = vadd.bf16 %v5105, %v5709
    %v5746 = vadd.bf16 %v5106, %v5709
    %v5747 = vadd.bf16 %v5107, %v5709
    %v5748 = vadd.bf16 %v5108, %v5709
    %v5749 = vadd.bf16 %v5109, %v5710
    %v5750 = vadd.bf16 %v5110, %v5710
    %v5751 = vadd.bf16 %v5111, %v5710
    %v5752 = vadd.bf16 %v5112, %v5710
    %v5753 = vadd.bf16 %v5113, %v5710
    %v5754 = vadd.bf16 %v5114, %v5710
    %v5755 = vadd.bf16 %v5115, %v5710
    %v5756 = vadd.bf16 %v5116, %v5710
    %v5757 = vadd.bf16 %v5117, %v5711
    %v5758 = vadd.bf16 %v5118, %v5711
    %v5759 = vadd.bf16 %v5119, %v5711
    %v5760 = vadd.bf16 %v5120, %v5711
    %v5761 = vadd.bf16 %v5121, %v5711
    %v5762 = vadd.bf16 %v5122, %v5711
    %v5763 = vadd.bf16 %v5123, %v5711
    %v5764 = vadd.bf16 %v5124, %v5711
    %v5765 = vadd.bf16 %v5125, %v5712
    %v5766 = vadd.bf16 %v5126, %v5712
    %v5767 = vadd.bf16 %v5127, %v5712
    %v5768 = vadd.bf16 %v5128, %v5712
    %v5769 = vadd.bf16 %v5129, %v5712
    %v5770 = vadd.bf16 %v5130, %v5712
    %v5771 = vadd.bf16 %v5131, %v5712
    %v5772 = vadd.bf16 %v5132, %v5712
    %v5773 = vadd.bf16 %v5133, %v5713
    %v5774 = vadd.bf16 %v5134, %v5713
    %v5775 = vadd.bf16 %v5135, %v5713
    %v5776 = vadd.bf16 %v5136, %v5713
    %v5777 = vadd.bf16 %v5137, %v5713
    %v5778 = vadd.bf16 %v5138, %v5713
    %v5779 = vadd.bf16 %v5139, %v5713
    %v5780 = vadd.bf16 %v5140, %v5713
    %v5781 = vadd.bf16 %v5141, %v5714
    %v5782 = vadd.bf16 %v5142, %v5714
    %v5783 = vadd.bf16 %v5143, %v5714
    %v5784 = vadd.bf16 %v5144, %v5714
    %v5785 = vadd.bf16 %v5145, %v5714
    %v5786 = vadd.bf16 %v5146, %v5714
    %v5787 = vadd.bf16 %v5147, %v5714
    %v5788 = vadd.bf16 %v5148, %v5714
    %v5789 = vadd.bf16 %v5149, %v5715
    %v5790 = vadd.bf16 %v5150, %v5715
    %v5791 = vadd.bf16 %v5151, %v5715
    %v5792 = vadd.bf16 %v5152, %v5715
    %v5793 = vadd.bf16 %v5153, %v5715
    %v5794 = vadd.bf16 %v5154, %v5715
    %v5795 = vadd.bf16 %v5155, %v5715
    %v5796 = vadd.bf16 %v5156, %v5715
    %v5797 = vadd.bf16 %v5157, %v5716
    %v5798 = vadd.bf16 %v5158, %v5716
    %v5799 = vadd.bf16 %v5159, %v5716
    %v5800 = vadd.bf16 %v5160, %v5716
    %v5801 = vadd.bf16 %v5161, %v5716
    %v5802 = vadd.bf16 %v5162, %v5716
    %v5803 = vadd.bf16 %v5163, %v5716
    %v5804 = vadd.bf16 %v5164, %v5716
    %v5805 = vadd.bf16 %v5165, %v5717
    %v5806 = vadd.bf16 %v5166, %v5717
    %v5807 = vadd.bf16 %v5167, %v5717
    %v5808 = vadd.bf16 %v5168, %v5717
    %v5809 = vadd.bf16 %v5169, %v5717
    %v5810 = vadd.bf16 %v5170, %v5717
    %v5811 = vadd.bf16 %v5171, %v5717
    %v5812 = vadd.bf16 %v5172, %v5717
    %v5813 = vadd.bf16 %v5173, %v5718
    %v5814 = vadd.bf16 %v5174, %v5718
    %v5815 = vadd.bf16 %v5175, %v5718
    %v5816 = vadd.bf16 %v5176, %v5718
    %v5817 = vadd.bf16 %v5177, %v5718
    %v5818 = vadd.bf16 %v5178, %v5718
    %v5819 = vadd.bf16 %v5179, %v5718
    %v5820 = vadd.bf16 %v5180, %v5718
    %v5821 = vadd.bf16 %v5181, %v5719
    %v5822 = vadd.bf16 %v5182, %v5719
    %v5823 = vadd.bf16 %v5183, %v5719
    %v5824 = vadd.bf16 %v5184, %v5719
    %v5825 = vadd.bf16 %v5185, %v5719
    %v5826 = vadd.bf16 %v5186, %v5719
    %v5827 = vadd.bf16 %v5187, %v5719
    %v5828 = vadd.bf16 %v5188, %v5719
    %v5829 = vadd.bf16 %v5189, %v5720
    %v5830 = vadd.bf16 %v5190, %v5720
    %v5831 = vadd.bf16 %v5191, %v5720
    %v5832 = vadd.bf16 %v5192, %v5720
    %v5833 = vadd.bf16 %v5193, %v5720
    %v5834 = vadd.bf16 %v5194, %v5720
    %v5835 = vadd.bf16 %v5195, %v5720
    %v5836 = vadd.bf16 %v5196, %v5720
    %v5837 = vadd.bf16 %v5197, %v5721
    %v5838 = vadd.bf16 %v5198, %v5721
    %v5839 = vadd.bf16 %v5199, %v5721
    %v5840 = vadd.bf16 %v5200, %v5721
    %v5841 = vadd.bf16 %v5201, %v5721
    %v5842 = vadd.bf16 %v5202, %v5721
    %v5843 = vadd.bf16 %v5203, %v5721
    %v5844 = vadd.bf16 %v5204, %v5721
    %v5845 = vadd.bf16 %v5205, %v5722
    %v5846 = vadd.bf16 %v5206, %v5722
    %v5847 = vadd.bf16 %v5207, %v5722
    %v5848 = vadd.bf16 %v5208, %v5722
    %v5849 = vadd.bf16 %v5209, %v5722
    %v5850 = vadd.bf16 %v5210, %v5722
    %v5851 = vadd.bf16 %v5211, %v5722
    %v5852 = vadd.bf16 %v5212, %v5722
    %v5853 = vadd.bf16 %v5213, %v5723
    %v5854 = vadd.bf16 %v5214, %v5723
    %v5855 = vadd.bf16 %v5215, %v5723
    %v5856 = vadd.bf16 %v5216, %v5723
    %v5857 = vadd.bf16 %v5217, %v5723
    %v5858 = vadd.bf16 %v5218, %v5723
    %v5859 = vadd.bf16 %v5219, %v5723
    %v5860 = vadd.bf16 %v5220, %v5723
    %v5861 = vadd.bf16 %v5221, %v5724
    %v5862 = vadd.bf16 %v5222, %v5724
    %v5863 = vadd.bf16 %v5223, %v5724
    %v5864 = vadd.bf16 %v5224, %v5724
    %v5865 = vadd.bf16 %v5225, %v5724
    %v5866 = vadd.bf16 %v5226, %v5724
    %v5867 = vadd.bf16 %v5227, %v5724
    %v5868 = vadd.bf16 %v5228, %v5724
    %v5869 = vmul.bf16 %v5741, 1009007652
    %v5870 = vmul.bf16 %v5742, 1009007652
    %v5871 = vmul.bf16 %v5743, 1009007652
    %v5872 = vmul.bf16 %v5744, 1009007652
    %v5873 = vmul.bf16 %v5745, 1009007652
    %v5874 = vmul.bf16 %v5746, 1009007652
    %v5875 = vmul.bf16 %v5747, 1009007652
    %v5876 = vmul.bf16 %v5748, 1009007652
    %v5877 = vmul.bf16 %v5749, 1009007652
    %v5878 = vmul.bf16 %v5750, 1009007652
    %v5879 = vmul.bf16 %v5751, 1009007652
    %v5880 = vmul.bf16 %v5752, 1009007652
    %v5881 = vmul.bf16 %v5753, 1009007652
    %v5882 = vmul.bf16 %v5754, 1009007652
    %v5883 = vmul.bf16 %v5755, 1009007652
    %v5884 = vmul.bf16 %v5756, 1009007652
    %v5885 = vmul.bf16 %v5757, 1009007652
    %v5886 = vmul.bf16 %v5758, 1009007652
    %v5887 = vmul.bf16 %v5759, 1009007652
    %v5888 = vmul.bf16 %v5760, 1009007652
    %v5889 = vmul.bf16 %v5761, 1009007652
    %v5890 = vmul.bf16 %v5762, 1009007652
    %v5891 = vmul.bf16 %v5763, 1009007652
    %v5892 = vmul.bf16 %v5764, 1009007652
    %v5893 = vmul.bf16 %v5765, 1009007652
    %v5894 = vmul.bf16 %v5766, 1009007652
    %v5895 = vmul.bf16 %v5767, 1009007652
    %v5896 = vmul.bf16 %v5768, 1009007652
    %v5897 = vmul.bf16 %v5769, 1009007652
    %v5898 = vmul.bf16 %v5770, 1009007652
    %v5899 = vmul.bf16 %v5771, 1009007652
    %v5900 = vmul.bf16 %v5772, 1009007652
    %v5901 = vmul.bf16 %v5773, 1009007652
    %v5902 = vmul.bf16 %v5774, 1009007652
    %v5903 = vmul.bf16 %v5775, 1009007652
    %v5904 = vmul.bf16 %v5776, 1009007652
    %v5905 = vmul.bf16 %v5777, 1009007652
    %v5906 = vmul.bf16 %v5778, 1009007652
    %v5907 = vmul.bf16 %v5779, 1009007652
    %v5908 = vmul.bf16 %v5780, 1009007652
    %v5909 = vmul.bf16 %v5781, 1009007652
    %v5910 = vmul.bf16 %v5782, 1009007652
    %v5911 = vmul.bf16 %v5783, 1009007652
    %v5912 = vmul.bf16 %v5784, 1009007652
    %v5913 = vmul.bf16 %v5785, 1009007652
    %v5914 = vmul.bf16 %v5786, 1009007652
    %v5915 = vmul.bf16 %v5787, 1009007652
    %v5916 = vmul.bf16 %v5788, 1009007652
    %v5917 = vmul.bf16 %v5789, 1009007652
    %v5918 = vmul.bf16 %v5790, 1009007652
    %v5919 = vmul.bf16 %v5791, 1009007652
    %v5920 = vmul.bf16 %v5792, 1009007652
    %v5921 = vmul.bf16 %v5793, 1009007652
    %v5922 = vmul.bf16 %v5794, 1009007652
    %v5923 = vmul.bf16 %v5795, 1009007652
    %v5924 = vmul.bf16 %v5796, 1009007652
    %v5925 = vmul.bf16 %v5797, 1009007652
    %v5926 = vmul.bf16 %v5798, 1009007652
    %v5927 = vmul.bf16 %v5799, 1009007652
    %v5928 = vmul.bf16 %v5800, 1009007652
    %v5929 = vmul.bf16 %v5801, 1009007652
    %v5930 = vmul.bf16 %v5802, 1009007652
    %v5931 = vmul.bf16 %v5803, 1009007652
    %v5932 = vmul.bf16 %v5804, 1009007652
    %v5933 = vmul.bf16 %v5805, 1009007652
    %v5934 = vmul.bf16 %v5806, 1009007652
    %v5935 = vmul.bf16 %v5807, 1009007652
    %v5936 = vmul.bf16 %v5808, 1009007652
    %v5937 = vmul.bf16 %v5809, 1009007652
    %v5938 = vmul.bf16 %v5810, 1009007652
    %v5939 = vmul.bf16 %v5811, 1009007652
    %v5940 = vmul.bf16 %v5812, 1009007652
    %v5941 = vmul.bf16 %v5813, 1009007652
    %v5942 = vmul.bf16 %v5814, 1009007652
    %v5943 = vmul.bf16 %v5815, 1009007652
    %v5944 = vmul.bf16 %v5816, 1009007652
    %v5945 = vmul.bf16 %v5817, 1009007652
    %v5946 = vmul.bf16 %v5818, 1009007652
    %v5947 = vmul.bf16 %v5819, 1009007652
    %v5948 = vmul.bf16 %v5820, 1009007652
    %v5949 = vmul.bf16 %v5821, 1009007652
    %v5950 = vmul.bf16 %v5822, 1009007652
    %v5951 = vmul.bf16 %v5823, 1009007652
    %v5952 = vmul.bf16 %v5824, 1009007652
    %v5953 = vmul.bf16 %v5825, 1009007652
    %v5954 = vmul.bf16 %v5826, 1009007652
    %v5955 = vmul.bf16 %v5827, 1009007652
    %v5956 = vmul.bf16 %v5828, 1009007652
    %v5957 = vmul.bf16 %v5829, 1009007652
    %v5958 = vmul.bf16 %v5830, 1009007652
    %v5959 = vmul.bf16 %v5831, 1009007652
    %v5960 = vmul.bf16 %v5832, 1009007652
    %v5961 = vmul.bf16 %v5833, 1009007652
    %v5962 = vmul.bf16 %v5834, 1009007652
    %v5963 = vmul.bf16 %v5835, 1009007652
    %v5964 = vmul.bf16 %v5836, 1009007652
    %v5965 = vmul.bf16 %v5837, 1009007652
    %v5966 = vmul.bf16 %v5838, 1009007652
    %v5967 = vmul.bf16 %v5839, 1009007652
    %v5968 = vmul.bf16 %v5840, 1009007652
    %v5969 = vmul.bf16 %v5841, 1009007652
    %v5970 = vmul.bf16 %v5842, 1009007652
    %v5971 = vmul.bf16 %v5843, 1009007652
    %v5972 = vmul.bf16 %v5844, 1009007652
    %v5973 = vmul.bf16 %v5845, 1009007652
    %v5974 = vmul.bf16 %v5846, 1009007652
    %v5975 = vmul.bf16 %v5847, 1009007652
    %v5976 = vmul.bf16 %v5848, 1009007652
    %v5977 = vmul.bf16 %v5849, 1009007652
    %v5978 = vmul.bf16 %v5850, 1009007652
    %v5979 = vmul.bf16 %v5851, 1009007652
    %v5980 = vmul.bf16 %v5852, 1009007652
    %v5981 = vmul.bf16 %v5853, 1009007652
    %v5982 = vmul.bf16 %v5854, 1009007652
    %v5983 = vmul.bf16 %v5855, 1009007652
    %v5984 = vmul.bf16 %v5856, 1009007652
    %v5985 = vmul.bf16 %v5857, 1009007652
    %v5986 = vmul.bf16 %v5858, 1009007652
    %v5987 = vmul.bf16 %v5859, 1009007652
    %v5988 = vmul.bf16 %v5860, 1009007652
    %v5989 = vmul.bf16 %v5861, 1009007652
    %v5990 = vmul.bf16 %v5862, 1009007652
    %v5991 = vmul.bf16 %v5863, 1009007652
    %v5992 = vmul.bf16 %v5864, 1009007652
    %v5993 = vmul.bf16 %v5865, 1009007652
    %v5994 = vmul.bf16 %v5866, 1009007652
    %v5995 = vmul.bf16 %v5867, 1009007652
    %v5996 = vmul.bf16 %v5868, 1009007652
    %v5997 = vmax.bf16 %v5741, %v5869
    %v5998 = vmax.bf16 %v5742, %v5870
    %v5999 = vmax.bf16 %v5743, %v5871
    %v6000 = vmax.bf16 %v5744, %v5872
    %v6001 = vmax.bf16 %v5745, %v5873
    %v6002 = vmax.bf16 %v5746, %v5874
    %v6003 = vmax.bf16 %v5747, %v5875
    %v6004 = vmax.bf16 %v5748, %v5876
    %v6005 = vmax.bf16 %v5749, %v5877
    %v6006 = vmax.bf16 %v5750, %v5878
    %v6007 = vmax.bf16 %v5751, %v5879
    %v6008 = vmax.bf16 %v5752, %v5880
    %v6009 = vmax.bf16 %v5753, %v5881
    %v6010 = vmax.bf16 %v5754, %v5882
    %v6011 = vmax.bf16 %v5755, %v5883
    %v6012 = vmax.bf16 %v5756, %v5884
    %v6013 = vmax.bf16 %v5757, %v5885
    %v6014 = vmax.bf16 %v5758, %v5886
    %v6015 = vmax.bf16 %v5759, %v5887
    %v6016 = vmax.bf16 %v5760, %v5888
    %v6017 = vmax.bf16 %v5761, %v5889
    %v6018 = vmax.bf16 %v5762, %v5890
    %v6019 = vmax.bf16 %v5763, %v5891
    %v6020 = vmax.bf16 %v5764, %v5892
    %v6021 = vmax.bf16 %v5765, %v5893
    %v6022 = vmax.bf16 %v5766, %v5894
    %v6023 = vmax.bf16 %v5767, %v5895
    %v6024 = vmax.bf16 %v5768, %v5896
    %v6025 = vmax.bf16 %v5769, %v5897
    %v6026 = vmax.bf16 %v5770, %v5898
    %v6027 = vmax.bf16 %v5771, %v5899
    %v6028 = vmax.bf16 %v5772, %v5900
    %v6029 = vmax.bf16 %v5773, %v5901
    %v6030 = vmax.bf16 %v5774, %v5902
    %v6031 = vmax.bf16 %v5775, %v5903
    %v6032 = vmax.bf16 %v5776, %v5904
    %v6033 = vmax.bf16 %v5777, %v5905
    %v6034 = vmax.bf16 %v5778, %v5906
    %v6035 = vmax.bf16 %v5779, %v5907
    %v6036 = vmax.bf16 %v5780, %v5908
    %v6037 = vmax.bf16 %v5781, %v5909
    %v6038 = vmax.bf16 %v5782, %v5910
    %v6039 = vmax.bf16 %v5783, %v5911
    %v6040 = vmax.bf16 %v5784, %v5912
    %v6041 = vmax.bf16 %v5785, %v5913
    %v6042 = vmax.bf16 %v5786, %v5914
    %v6043 = vmax.bf16 %v5787, %v5915
    %v6044 = vmax.bf16 %v5788, %v5916
    %v6045 = vmax.bf16 %v5789, %v5917
    %v6046 = vmax.bf16 %v5790, %v5918
    %v6047 = vmax.bf16 %v5791, %v5919
    %v6048 = vmax.bf16 %v5792, %v5920
    %v6049 = vmax.bf16 %v5793, %v5921
    %v6050 = vmax.bf16 %v5794, %v5922
    %v6051 = vmax.bf16 %v5795, %v5923
    %v6052 = vmax.bf16 %v5796, %v5924
    %v6053 = vmax.bf16 %v5797, %v5925
    %v6054 = vmax.bf16 %v5798, %v5926
    %v6055 = vmax.bf16 %v5799, %v5927
    %v6056 = vmax.bf16 %v5800, %v5928
    %v6057 = vmax.bf16 %v5801, %v5929
    %v6058 = vmax.bf16 %v5802, %v5930
    %v6059 = vmax.bf16 %v5803, %v5931
    %v6060 = vmax.bf16 %v5804, %v5932
    %v6061 = vmax.bf16 %v5805, %v5933
    %v6062 = vmax.bf16 %v5806, %v5934
    %v6063 = vmax.bf16 %v5807, %v5935
    %v6064 = vmax.bf16 %v5808, %v5936
    %v6065 = vmax.bf16 %v5809, %v5937
    %v6066 = vmax.bf16 %v5810, %v5938
    %v6067 = vmax.bf16 %v5811, %v5939
    %v6068 = vmax.bf16 %v5812, %v5940
    %v6069 = vmax.bf16 %v5813, %v5941
    %v6070 = vmax.bf16 %v5814, %v5942
    %v6071 = vmax.bf16 %v5815, %v5943
    %v6072 = vmax.bf16 %v5816, %v5944
    %v6073 = vmax.bf16 %v5817, %v5945
    %v6074 = vmax.bf16 %v5818, %v5946
    %v6075 = vmax.bf16 %v5819, %v5947
    %v6076 = vmax.bf16 %v5820, %v5948
    %v6077 = vmax.bf16 %v5821, %v5949
    %v6078 = vmax.bf16 %v5822, %v5950
    %v6079 = vmax.bf16 %v5823, %v5951
    %v6080 = vmax.bf16 %v5824, %v5952
    %v6081 = vmax.bf16 %v5825, %v5953
    %v6082 = vmax.bf16 %v5826, %v5954
    %v6083 = vmax.bf16 %v5827, %v5955
    %v6084 = vmax.bf16 %v5828, %v5956
    %v6085 = vmax.bf16 %v5829, %v5957
    %v6086 = vmax.bf16 %v5830, %v5958
    %v6087 = vmax.bf16 %v5831, %v5959
    %v6088 = vmax.bf16 %v5832, %v5960
    %v6089 = vmax.bf16 %v5833, %v5961
    %v6090 = vmax.bf16 %v5834, %v5962
    %v6091 = vmax.bf16 %v5835, %v5963
    %v6092 = vmax.bf16 %v5836, %v5964
    %v6093 = vmax.bf16 %v5837, %v5965
    %v6094 = vmax.bf16 %v5838, %v5966
    %v6095 = vmax.bf16 %v5839, %v5967
    %v6096 = vmax.bf16 %v5840, %v5968
    %v6097 = vmax.bf16 %v5841, %v5969
    %v6098 = vmax.bf16 %v5842, %v5970
    %v6099 = vmax.bf16 %v5843, %v5971
    %v6100 = vmax.bf16 %v5844, %v5972
    %v6101 = vmax.bf16 %v5845, %v5973
    %v6102 = vmax.bf16 %v5846, %v5974
    %v6103 = vmax.bf16 %v5847, %v5975
    %v6104 = vmax.bf16 %v5848, %v5976
    %v6105 = vmax.bf16 %v5849, %v5977
    %v6106 = vmax.bf16 %v5850, %v5978
    %v6107 = vmax.bf16 %v5851, %v5979
    %v6108 = vmax.bf16 %v5852, %v5980
    %v6109 = vmax.bf16 %v5853, %v5981
    %v6110 = vmax.bf16 %v5854, %v5982
    %v6111 = vmax.bf16 %v5855, %v5983
    %v6112 = vmax.bf16 %v5856, %v5984
    %v6113 = vmax.bf16 %v5857, %v5985
    %v6114 = vmax.bf16 %v5858, %v5986
    %v6115 = vmax.bf16 %v5859, %v5987
    %v6116 = vmax.bf16 %v5860, %v5988
    %v6117 = vmax.bf16 %v5861, %v5989
    %v6118 = vmax.bf16 %v5862, %v5990
    %v6119 = vmax.bf16 %v5863, %v5991
    %v6120 = vmax.bf16 %v5864, %v5992
    %v6121 = vmax.bf16 %v5865, %v5993
    %v6122 = vmax.bf16 %v5866, %v5994
    %v6123 = vmax.bf16 %v5867, %v5995
    %v6124 = vmax.bf16 %v5868, %v5996
    %v6125 = vld [vmem:[#allocation15] sm:$0x3]
    %v6126 = vld [vmem:[#allocation2] sm:$0x1]
    %6128 = vset.pattern.permute.xlu0 0
    %6129 = vperm.xlu0 %6128, %v6126
    %v6130 = vpop.permute.xlu0 %6129
    %v6132 = vlaneseq
    %v6133 = vshrl.u32 %v6132, 7
    %v6134 = vsub.s32 0, %v6133
    %v6135 = vrot.slane %v6130, %v6134
    %v6138 = vunpack.c.l.s4 1966171168
    %v6139 = vunpack.c.0.s8 %v6138
    %v6140 = vlaneseq
    %v6141 = vshrl.u32 %v6140, 7
    %v6142 = vsub.s32 %v6139, %v6141
    %v6143 = vrot.slane %v6125, %v6142
    %v6144 = vcombine.high %v6143, %v6143
    %v6146 = vunpack.c.l.s4 1966171168
    %v6147 = vunpack.c.0.s8 %v6146
    %v6148 = vlaneseq
    %v6149 = vshrl.u32 %v6148, 7
    %v6150 = vsub.s32 %v6147, %v6149
    %v6151 = vrot.slane %v6143, %v6150
    %v6153 = vunpack.c.l.s4 1966171168
    %v6154 = vunpack.c.0.s8 %v6153
    %v6155 = vlaneseq
    %v6156 = vshrl.u32 %v6155, 7
    %v6157 = vsub.s32 %v6154, %v6156
    %v6158 = vrot.slane %v6144, %v6157
    %6161 = vmatprep.subr.bf16.mxu0 %v5998
    %6162 = vmatpush1.bf16.msra.mxu0 %v5997
    %6163 = vmatprep.subr.bf16.mxu0 %v6006
    %6164 = vmatpush1.bf16.msra.mxu0 %v6005
    %6165 = vmatprep.subr.bf16.mxu0 %v6014
    %6166 = vmatpush1.bf16.msra.mxu0 %v6013
    %6167 = vmatprep.subr.bf16.mxu0 %v6022
    %6168 = vmatpush1.bf16.msra.mxu0 %v6021
    %6169 = vmatprep.subr.bf16.mxu0 %v6030
    %6170 = vmatpush1.bf16.msra.mxu0 %v6029
    %6171 = vmatprep.subr.bf16.mxu0 %v6038
    %6172 = vmatpush1.bf16.msra.mxu0 %v6037
    %6173 = vmatprep.subr.bf16.mxu0 %v6046
    %6174 = vmatpush1.bf16.msra.mxu0 %v6045
    %6175 = vmatprep.subr.bf16.mxu0 %v6054
    %6176 = vmatpush1.bf16.msra.mxu0 %v6053
    %6177 = vmatprep.subr.bf16.mxu0 %v6062
    %6178 = vmatpush1.bf16.msra.mxu0 %v6061
    %6179 = vmatprep.subr.bf16.mxu0 %v6070
    %6180 = vmatpush1.bf16.msra.mxu0 %v6069
    %6181 = vmatprep.subr.bf16.mxu0 %v6078
    %6182 = vmatpush1.bf16.msra.mxu0 %v6077
    %6183 = vmatprep.subr.bf16.mxu0 %v6086
    %6184 = vmatpush1.bf16.msra.mxu0 %v6085
    %6185 = vmatprep.subr.bf16.mxu0 %v6094
    %6186 = vmatpush1.bf16.msra.mxu0 %v6093
    %6187 = vmatprep.subr.bf16.mxu0 %v6102
    %6188 = vmatpush1.bf16.msra.mxu0 %v6101
    %6189 = vmatprep.subr.bf16.mxu0 %v6110
    %6190 = vmatpush1.bf16.msra.mxu0 %v6109
    %6191 = vmatprep.subr.bf16.mxu0 %v6118
    %6192 = vmatpush1.bf16.msra.mxu0 %v6117
    %6193 = vmatprep.mubr.bf16.mxu0 %v6158
    %6194 = vmatmul.mubr.bf16.gmra.mrb[0].mxu0 %v6151
    %v6195 = vpop.f32.mrb[0].mxu0
    %v6196 = vadd.f32 %v6135, %v6195
    %v6197 = vpop.f32.mrb[0].mxu0
    %v6198 = vadd.f32 %v6135, %v6197
    %v6199 = vpop.f32.mrb[0].mxu0
    %v6200 = vpop.f32.mrb[0].mxu0
    %6201 = vdwg.mxu0
    %6202 = vmatprep.subr.bf16.mxu0 %v6000
    %6203 = vmatpush1.bf16.msra.mxu0 %v5999
    %6204 = vmatprep.subr.bf16.mxu0 %v6008
    %6205 = vmatpush1.bf16.msra.mxu0 %v6007
    %6206 = vmatprep.subr.bf16.mxu0 %v6016
    %6207 = vmatpush1.bf16.msra.mxu0 %v6015
    %6208 = vmatprep.subr.bf16.mxu0 %v6024
    %6209 = vmatpush1.bf16.msra.mxu0 %v6023
    %6210 = vmatprep.subr.bf16.mxu0 %v6032
    %6211 = vmatpush1.bf16.msra.mxu0 %v6031
    %6212 = vmatprep.subr.bf16.mxu0 %v6040
    %6213 = vmatpush1.bf16.msra.mxu0 %v6039
    %6214 = vmatprep.subr.bf16.mxu0 %v6048
    %6215 = vmatpush1.bf16.msra.mxu0 %v6047
    %6216 = vmatprep.subr.bf16.mxu0 %v6056
    %6217 = vmatpush1.bf16.msra.mxu0 %v6055
    %6218 = vmatprep.subr.bf16.mxu0 %v6064
    %6219 = vmatpush1.bf16.msra.mxu0 %v6063
    %6220 = vmatprep.subr.bf16.mxu0 %v6072
    %6221 = vmatpush1.bf16.msra.mxu0 %v6071
    %6222 = vmatprep.subr.bf16.mxu0 %v6080
    %6223 = vmatpush1.bf16.msra.mxu0 %v6079
    %6224 = vmatprep.subr.bf16.mxu0 %v6088
    %6225 = vmatpush1.bf16.msra.mxu0 %v6087
    %6226 = vmatprep.subr.bf16.mxu0 %v6096
    %6227 = vmatpush1.bf16.msra.mxu0 %v6095
    %6228 = vmatprep.subr.bf16.mxu0 %v6104
    %6229 = vmatpush1.bf16.msra.mxu0 %v6103
    %6230 = vmatprep.subr.bf16.mxu0 %v6112
    %6231 = vmatpush1.bf16.msra.mxu0 %v6111
    %6232 = vmatprep.subr.bf16.mxu0 %v6120
    %6233 = vmatpush1.bf16.msra.mxu0 %v6119
    %6234 = vmatprep.mubr.bf16.mxu0 %v6158
    %6235 = vmatmul.mubr.bf16.gmra.mrb[0].mxu0 %v6151
    %v6236 = vpop.f32.mrb[0].mxu0
    %v6237 = vadd.f32 %v6135, %v6236
    %v6238 = vpop.f32.mrb[0].mxu0
    %v6239 = vadd.f32 %v6135, %v6238
    %v6240 = vpop.f32.mrb[0].mxu0
    %v6241 = vpop.f32.mrb[0].mxu0
    %6242 = vdwg.mxu0
    %6243 = vmatprep.subr.bf16.mxu0 %v6002
    %6244 = vmatpush1.bf16.msra.mxu0 %v6001
    %6245 = vmatprep.subr.bf16.mxu0 %v6010
    %6246 = vmatpush1.bf16.msra.mxu0 %v6009
    %6247 = vmatprep.subr.bf16.mxu0 %v6018
    %6248 = vmatpush1.bf16.msra.mxu0 %v6017
    %6249 = vmatprep.subr.bf16.mxu0 %v6026
    %6250 = vmatpush1.bf16.msra.mxu0 %v6025
    %6251 = vmatprep.subr.bf16.mxu0 %v6034
    %6252 = vmatpush1.bf16.msra.mxu0 %v6033
    %6253 = vmatprep.subr.bf16.mxu0 %v6042
    %6254 = vmatpush1.bf16.msra.mxu0 %v6041
    %6255 = vmatprep.subr.bf16.mxu0 %v6050
    %6256 = vmatpush1.bf16.msra.mxu0 %v6049
    %6257 = vmatprep.subr.bf16.mxu0 %v6058
    %6258 = vmatpush1.bf16.msra.mxu0 %v6057
    %6259 = vmatprep.subr.bf16.mxu0 %v6066
    %6260 = vmatpush1.bf16.msra.mxu0 %v6065
    %6261 = vmatprep.subr.bf16.mxu0 %v6074
    %6262 = vmatpush1.bf16.msra.mxu0 %v6073
    %6263 = vmatprep.subr.bf16.mxu0 %v6082
    %6264 = vmatpush1.bf16.msra.mxu0 %v6081
    %6265 = vmatprep.subr.bf16.mxu0 %v6090
    %6266 = vmatpush1.bf16.msra.mxu0 %v6089
    %6267 = vmatprep.subr.bf16.mxu0 %v6098
    %6268 = vmatpush1.bf16.msra.mxu0 %v6097
    %6269 = vmatprep.subr.bf16.mxu0 %v6106
    %6270 = vmatpush1.bf16.msra.mxu0 %v6105
    %6271 = vmatprep.subr.bf16.mxu0 %v6114
    %6272 = vmatpush1.bf16.msra.mxu0 %v6113
    %6273 = vmatprep.subr.bf16.mxu0 %v6122
    %6274 = vmatpush1.bf16.msra.mxu0 %v6121
    %6275 = vmatprep.mubr.bf16.mxu0 %v6158
    %6276 = vmatmul.mubr.bf16.gmra.mrb[0].mxu0 %v6151
    %v6277 = vpop.f32.mrb[0].mxu0
    %v6278 = vadd.f32 %v6135, %v6277
    %v6279 = vpop.f32.mrb[0].mxu0
    %v6280 = vadd.f32 %v6135, %v6279
    %v6281 = vpop.f32.mrb[0].mxu0
    %v6282 = vpop.f32.mrb[0].mxu0
    %6283 = vdwg.mxu0
    %6284 = vmatprep.subr.bf16.mxu0 %v6004
    %6285 = vmatpush1.bf16.msra.mxu0 %v6003
    %6286 = vmatprep.subr.bf16.mxu0 %v6012
    %6287 = vmatpush1.bf16.msra.mxu0 %v6011
    %6288 = vmatprep.subr.bf16.mxu0 %v6020
    %6289 = vmatpush1.bf16.msra.mxu0 %v6019
    %6290 = vmatprep.subr.bf16.mxu0 %v6028
    %6291 = vmatpush1.bf16.msra.mxu0 %v6027
    %6292 = vmatprep.subr.bf16.mxu0 %v6036
    %6293 = vmatpush1.bf16.msra.mxu0 %v6035
    %6294 = vmatprep.subr.bf16.mxu0 %v6044
    %6295 = vmatpush1.bf16.msra.mxu0 %v6043
    %6296 = vmatprep.subr.bf16.mxu0 %v6052
    %6297 = vmatpush1.bf16.msra.mxu0 %v6051
    %6298 = vmatprep.subr.bf16.mxu0 %v6060
    %6299 = vmatpush1.bf16.msra.mxu0 %v6059
    %6300 = vmatprep.subr.bf16.mxu0 %v6068
    %6301 = vmatpush1.bf16.msra.mxu0 %v6067
    %6302 = vmatprep.subr.bf16.mxu0 %v6076
    %6303 = vmatpush1.bf16.msra.mxu0 %v6075
    %6304 = vmatprep.subr.bf16.mxu0 %v6084
    %6305 = vmatpush1.bf16.msra.mxu0 %v6083
    %6306 = vmatprep.subr.bf16.mxu0 %v6092
    %6307 = vmatpush1.bf16.msra.mxu0 %v6091
    %6308 = vmatprep.subr.bf16.mxu0 %v6100
    %6309 = vmatpush1.bf16.msra.mxu0 %v6099
    %6310 = vmatprep.subr.bf16.mxu0 %v6108
    %6311 = vmatpush1.bf16.msra.mxu0 %v6107
    %6312 = vmatprep.subr.bf16.mxu0 %v6116
    %6313 = vmatpush1.bf16.msra.mxu0 %v6115
    %6314 = vmatprep.subr.bf16.mxu0 %v6124
    %6315 = vmatpush1.bf16.msra.mxu0 %v6123
    %6316 = vmatprep.mubr.bf16.mxu0 %v6158
    %6317 = vmatmul.mubr.bf16.gmra.mrb[0].mxu0 %v6151
    %v6318 = vpop.f32.mrb[0].mxu0
    %v6319 = vadd.f32 %v6135, %v6318
    %v6320 = vpop.f32.mrb[0].mxu0
    %v6321 = vadd.f32 %v6135, %v6320
    %v6322 = vpop.f32.mrb[0].mxu0
    %v6323 = vpop.f32.mrb[0].mxu0
    %6324 = vdwg.mxu0
    %v6325 = vsub.f32 0.0, %v6196
    %v6326 = vsub.f32 0.0, %v6198
    %v6327 = vsub.f32 0.0, %v6237
    %v6328 = vsub.f32 0.0, %v6239
    %v6329 = vsub.f32 0.0, %v6278
    %v6330 = vsub.f32 0.0, %v6280
    %v6331 = vsub.f32 0.0, %v6319
    %v6332 = vsub.f32 0.0, %v6321
    %v6333 = vmul.f32 %v6325, 1.442695
    %v6334 = vpow.pop %v6333
    %v6335 = vmul.f32 %v6326, 1.442695
    %v6336 = vpow.pop %v6335
    %v6337 = vmul.f32 %v6327, 1.442695
    %v6338 = vpow.pop %v6337
    %v6339 = vmul.f32 %v6328, 1.442695
    %v6340 = vpow.pop %v6339
    %v6341 = vmul.f32 %v6329, 1.442695
    %v6342 = vpow.pop %v6341
    %v6343 = vmul.f32 %v6330, 1.442695
    %v6344 = vpow.pop %v6343
    %v6345 = vmul.f32 %v6331, 1.442695
    %v6346 = vpow.pop %v6345
    %v6347 = vmul.f32 %v6332, 1.442695
    %v6348 = vpow.pop %v6347
    %v6349 = vadd.f32 %v6334, 1.0
    %v6350 = vadd.f32 %v6336, 1.0
    %v6351 = vadd.f32 %v6338, 1.0
    %v6352 = vadd.f32 %v6340, 1.0
    %v6353 = vadd.f32 %v6342, 1.0
    %v6354 = vadd.f32 %v6344, 1.0
    %v6355 = vadd.f32 %v6346, 1.0
    %v6356 = vadd.f32 %v6348, 1.0
    %v6357 = vrcp.pop %v6349
    %v6358 = vrcp.pop %v6350
    %v6359 = vrcp.pop %v6351
    %v6360 = vrcp.pop %v6352
    %v6361 = vrcp.pop %v6353
    %v6362 = vrcp.pop %v6354
    %v6363 = vrcp.pop %v6355
    %v6364 = vrcp.pop %v6356
    %v6373 = vcombine.low %v6357, %v6358
    %v6374 = vcombine.low %v6359, %v6360
    %v6375 = vcombine.low %v6361, %v6362
    %v6376 = vcombine.low %v6363, %v6364
    %v6378 = vunpack.c.l.s4 1966171168
    %v6379 = vunpack.c.0.s8 %v6378
    %v6380 = vlaneseq
    %v6381 = vshrl.u32 %v6380, 7
    %v6382 = vsub.s32 %v6379, %v6381
    %v6383 = vrot.slane %v6373, %v6382
    %v6385 = vunpack.c.l.s4 1966171168
    %v6386 = vunpack.c.0.s8 %v6385
    %v6387 = vlaneseq
    %v6388 = vshrl.u32 %v6387, 7
    %v6389 = vsub.s32 %v6386, %v6388
    %v6390 = vrot.slane %v6374, %v6389
    %v6392 = vunpack.c.l.s4 1966171168
    %v6393 = vunpack.c.0.s8 %v6392
    %v6394 = vlaneseq
    %v6395 = vshrl.u32 %v6394, 7
    %v6396 = vsub.s32 %v6393, %v6395
    %v6397 = vrot.slane %v6375, %v6396
    %v6399 = vunpack.c.l.s4 1966171168
    %v6400 = vunpack.c.0.s8 %v6399
    %v6401 = vlaneseq
    %v6402 = vshrl.u32 %v6401, 7
    %v6403 = vsub.s32 %v6400, %v6402
    %v6404 = vrot.slane %v6376, %v6403
    %v6405 = vcombine.low %v6383, %v6390
    %v6406 = vcombine.low %v6397, %v6404
    %v6408 = vunpack.c.l.s4 1966171168
    %v6409 = vunpack.c.0.s8 %v6408
    %v6410 = vlaneseq
    %v6411 = vshrl.u32 %v6410, 7
    %v6412 = vsub.s32 %v6409, %v6411
    %v6413 = vrot.slane %v6405, %v6412
    %v6415 = vunpack.c.l.s4 1966171168
    %v6416 = vunpack.c.0.s8 %v6415
    %v6417 = vlaneseq
    %v6418 = vshrl.u32 %v6417, 7
    %v6419 = vsub.s32 %v6416, %v6418
    %v6420 = vrot.slane %v6406, %v6419
    %v6421 = vcombine.low %v6413, %v6420
    %6423 = vst [vmem:[#allocation17] sm:$0xff] %v6421
    // Predicated region
    $region70: #{tpu_custom_call.1} parent=1 // pred_check
      _
    $region71: #{tpu_custom_call.1} parent=1 // pred_check_branch
      %6425 = sbr.rel (0) target = $region73
    $region72: #{tpu_custom_call.1} parent=1 // pred_region
      %s6427 = ssub.s32 128, 128
      %6428 = vsyncadd [#allocation5], %s6427
      %s6430 = sshll.u32 [#allocation17], 4
      %s6431 = int_to_ptr.vmem [resolvable:$true] %s6430
      %6433 = dma.vmem_to_hbm [thread:$0]  %s6431, 128, %s9, [#allocation5]
    $region73: #{tpu_custom_call.1} parent=1 // pred_fallthru
      _
    // Predicated region
    $region74: #{tpu_custom_call.1} parent=1 // pred_check
      _
    $region75: #{tpu_custom_call.1} parent=1 // pred_check_branch
      %6435 = sbr.rel (0) target = $region77
    $region76: #{tpu_custom_call.1} parent=1 // pred_region
      %6436 = dma.done [#allocation5], 128
    $region77: #{tpu_custom_call.1} parent=1 // pred_fallthru
      _
    %6437 = vsyncpa [#allocation4], 1
    %6438 = vsyncpa [#allocation7], 1
    %6439 = vsyncpa [#allocation10], 1
    %6440 = vsyncpa [#allocation13], 1
    %6441 = vsyncpa [#allocation16], 1
    %6442 = vsyncpa [#allocation5], 1

</llo_original>
